<compile_context>
chip_gen: v6e
topology: v6e:2x2x1
jax: 0.10.0
libtpu: 0.0.40
codegen_flags: <defaults>
</compile_context>

<pallas_src>
import functools

import numpy as np
import jax
import jax.numpy as jnp
from jax import lax
from jax.experimental import pallas as pl
from jax.experimental.pallas import tpu as pltpu


# ----------------------------------------------------------------------------
# Fused ConvSequence kernel: one grid step processes a block of B images.
# All activations are lane-dense: (rows, width*C) with width*C a multiple of
# 128 (except the tiny stage-1 input, whose minor dim W*Cin=64 is full-extent).
# ----------------------------------------------------------------------------
def _conv_sequence_kernel(x_ref, wc_ref, bc_ref, wr_ref, br_ref, sel_ref,
                          o_ref, padf_ref, pooly_ref, padh_ref,
                          *, B, H, W, Cin, C):
    Ho, Wo = H // 2, W // 2
    WC, WoC = W * C, Wo * C
    f32 = jnp.float32
    NEG = -jnp.inf

    # ---- stage 1: conv3x3 (Cin -> C) as 3 banded matmuls --------------------
    # Single zero fill per grid step (tiny buffer); interior overwritten below.
    padf_ref[...] = jnp.zeros(padf_ref.shape, f32)
    padf_ref[:, 1:1 + H, Cin:Cin + W * Cin] = x_ref[...].astype(f32)
    y = None
    for dy in range(3):
        slab = padf_ref[:, dy:dy + H, :].reshape(B * H, (W + 2) * Cin)
        part = jnp.dot(slab, wc_ref[dy], preferred_element_type=f32)
        y = part if y is None else y + part
    y = y + bc_ref[...]                                   # (B*H, W*C) lane-dense

    # ---- stage 2: max_pool2d(kernel=3, stride=2, padding=1), separable ------
    # Vertical 3-max at even rows only, using a (H+1)-row scratch whose row 0
    # is the -inf "top pad": rows {2i-1, 2i, 2i+1} of y are rows {2i, 2i+1,
    # 2i+2} of the scratch, extracted with pair-reshapes (no strided slicing).
    pooly_ref[:, 0:1, :] = jnp.full((B, 1, WC), NEG, f32)
    pooly_ref[:, 1:1 + H, :] = y.reshape(B, H, WC)
    low = pooly_ref[:, 0:H, :].reshape(B, Ho, 2, WC)
    up_rows = low[:, :, 0, :]                              # y[2i-1] (row -1 = -inf)
    mid_rows = low[:, :, 1, :]                             # y[2i]
    dn_rows = pooly_ref[:, 1:1 + H, :].reshape(B, Ho, 2, WC)[:, :, 1, :]  # y[2i+1]
    vmax = jnp.maximum(jnp.maximum(up_rows, mid_rows), dn_rows)  # (B, Ho, W*C)

    # Horizontal 3-max: neighbour columns are +/- C lanes away (lane-dense).
    neg_col = jnp.full((B, Ho, C), NEG, f32)
    left = jnp.concatenate([neg_col, vmax[:, :, :WC - C]], axis=2)   # x-1
    right = jnp.concatenate([vmax[:, :, C:], neg_col], axis=2)       # x+1
    hmax = jnp.maximum(jnp.maximum(vmax, left), right)               # (B, Ho, W*C)

    # Even-column subsample via a 0/1 selection matmul on the (idle) MXU; this
    # avoids a minor-dim reshape/relayout and keeps z lane-dense.
    z = jnp.dot(hmax.reshape(B * Ho, WC), sel_ref[...],
                preferred_element_type=f32)                          # (B*Ho, Wo*C)

    # ---- stages 3 & 4: two residual blocks (banded-matmul convs) ------------
    # One zero fill covers the halo for all four convs (interior overwritten
    # each call, halo never touched, relu(0) == 0 keeps padding exact).
    padh_ref[...] = jnp.zeros(padh_ref.shape, f32)

    def conv_half(a, idx):
        # a: (B*Ho, Wo*C), already ReLU'd by the caller.
        padh_ref[:, 1:1 + Ho, C:C + WoC] = a.reshape(B, Ho, WoC)
        acc = None
        for dy in range(3):
            slab = padh_ref[:, dy:dy + Ho, :].reshape(B * Ho, (Wo + 2) * C)
            part = jnp.dot(slab, wr_ref[idx, dy], preferred_element_type=f32)
            acc = part if acc is None else acc + part
        return acc + br_ref[idx]                           # (B*Ho, Wo*C)

    for blk in range(2):
        h = conv_half(jnp.maximum(z, 0.0), 2 * blk)
        h = conv_half(jnp.maximum(h, 0.0), 2 * blk + 1)
        z = h + z

    # Lane-dense store: last dim Wo*C = 256 (multiple of 128).
    o_ref[...] = z.reshape(B, Ho, WoC).astype(o_ref.dtype)


# ----------------------------------------------------------------------------
# Wrapper: layout plumbing + banded-weight construction in plain JAX;
# everything hot lives inside the single pallas_call.
# ----------------------------------------------------------------------------
def _banded_weight(w, width):
    """(3,3,ci,co) conv weight -> (3, (width+2)*ci, width*co) banded matrices.

    big[dy, xin*ci+cin, xout*co+cout] = w[dy, xin-xout, cin, cout] if
    0 <= xin-xout <= 2 else 0, so  conv = sum_dy row_slab(dy) @ big[dy].
    """
    _, _, ci, co = w.shape
    xo = np.arange(width)[:, None, None]
    xi = np.arange(width + 2)[None, :, None]
    dx = np.arange(3)[None, None, :]
    sel = jnp.asarray((xi == xo + dx).astype(np.float32))          # (o, i, d)
    big = jnp.einsum('oid,ydcf->yicof', sel, w.astype(jnp.float32))
    return big.reshape(3, (width + 2) * ci, width * co)


def _even_col_selector(W, Wo, C):
    """(W*C, Wo*C) 0/1 matrix picking channel groups at even columns."""
    k = np.arange(W * C)
    n = np.arange(Wo * C)
    sel = ((k[:, None] // C == 2 * (n[None, :] // C)) &
           (k[:, None] % C == n[None, :] % C))
    return jnp.asarray(sel.astype(np.float32))


def conv_sequence_forward(x_nchw, params, block_n=None):
    N, Cin, H, W = x_nchw.shape
    C = params["conv"]["w"].shape[-1]
    # TODO(synk): odd H/W (pool output (h+1)//2) not handled; IMPALA/procgen
    # inputs have even spatial dims.
    assert H % 2 == 0 and W % 2 == 0, "kernel assumes even spatial dims"
    Ho, Wo = H // 2, W // 2

    if block_n is None:
        # VMEM-derived cap: per-image footprint (blocks + scratches +
        # temporaries) is ~0.3 MiB and the resident banded weights ~11 MiB
        # (double-buffered), so 32 images/step stays well under the 32 MiB
        # scoped limit set below on every chip generation.  Keep >= 2 grid
        # steps, and prefer an EVEN step count so v7x's two TensorCores get
        # balanced work.
        cap = max(1, min(32, N // 2))
        divisors = [d for d in range(1, cap + 1) if N % d == 0]
        even_steps = [d for d in divisors if (N // d) % 2 == 0]
        block_n = max(even_steps) if even_steps else max(divisors)
    while N % block_n:
        block_n -= 1
    B = block_n

    # Lane-dense input: NCHW -> NHWC -> (N, H, W*Cin) (full-bandwidth DMA).
    x = jnp.transpose(x_nchw, (0, 2, 3, 1)).reshape(N, H, W * Cin)

    # Banded weights + width-tiled biases (built once per call, plain JAX).
    wc = _banded_weight(params["conv"]["w"], W)                 # (3, (W+2)*Cin, W*C)
    bc = jnp.tile(params["conv"]["b"], W).reshape(1, W * C)
    wr = jnp.stack([_banded_weight(params["res0"]["w0"], Wo),
                    _banded_weight(params["res0"]["w1"], Wo),
                    _banded_weight(params["res1"]["w0"], Wo),
                    _banded_weight(params["res1"]["w1"], Wo)])  # (4, 3, (Wo+2)*C, Wo*C)
    br = jnp.stack([jnp.tile(params["res0"]["b0"], Wo).reshape(1, Wo * C),
                    jnp.tile(params["res0"]["b1"], Wo).reshape(1, Wo * C),
                    jnp.tile(params["res1"]["b0"], Wo).reshape(1, Wo * C),
                    jnp.tile(params["res1"]["b1"], Wo).reshape(1, Wo * C)])
    sel = _even_col_selector(W, Wo, C)                          # (W*C, Wo*C)

    kernel = functools.partial(_conv_sequence_kernel,
                               B=B, H=H, W=W, Cin=Cin, C=C)

    out = pl.pallas_call(
        kernel,
        out_shape=jax.ShapeDtypeStruct((N, Ho, Wo * C), x.dtype),
        grid=(N // B,),
        in_specs=[
            pl.BlockSpec((B, H, W * Cin), lambda n: (n, 0, 0)),
            pl.BlockSpec((3, (W + 2) * Cin, W * C), lambda n: (0, 0, 0)),
            pl.BlockSpec((1, W * C), lambda n: (0, 0)),
            pl.BlockSpec((4, 3, (Wo + 2) * C, Wo * C), lambda n: (0, 0, 0, 0)),
            pl.BlockSpec((4, 1, Wo * C), lambda n: (0, 0, 0)),
            pl.BlockSpec((W * C, Wo * C), lambda n: (0, 0)),
        ],
        out_specs=pl.BlockSpec((B, Ho, Wo * C), lambda n: (n, 0, 0)),
        scratch_shapes=[
            pltpu.VMEM((B, H + 2, (W + 2) * Cin), jnp.float32),   # stage-1 pad
            pltpu.VMEM((B, H + 1, W * C), jnp.float32),           # pool rows (+ -inf top)
            pltpu.VMEM((B, Ho + 2, (Wo + 2) * C), jnp.float32),   # half-res pad
        ],
        compiler_params=pltpu.CompilerParams(
            dimension_semantics=("parallel",),
            vmem_limit_bytes=32 * 1024 * 1024),
    )(x, wc, bc, wr, br, sel)

    out = out.reshape(N, Ho, Wo, C)
    return jnp.transpose(out, (0, 3, 1, 2))                     # back to NCHW


def init_params(key, in_channels, out_channels):
    ks = jax.random.split(key, 5)

    def conv_params(k, cin, cout):
        kw, kb = jax.random.split(k)
        return {
            "w": 0.1 * jax.random.normal(kw, (3, 3, cin, cout), jnp.float32),
            "b": 0.1 * jax.random.normal(kb, (cout,), jnp.float32),
        }

    c = conv_params(ks[0], in_channels, out_channels)
    r0a = conv_params(ks[1], out_channels, out_channels)
    r0b = conv_params(ks[2], out_channels, out_channels)
    r1a = conv_params(ks[3], out_channels, out_channels)
    r1b = conv_params(ks[4], out_channels, out_channels)
    return {
        "conv": c,
        "res0": {"w0": r0a["w"], "b0": r0a["b"], "w1": r0b["w"], "b1": r0b["b"]},
        "res1": {"w0": r1a["w"], "b0": r1a["b"], "w1": r1b["w"], "b1": r1b["b"]},
    }


# ----------------------------------------------------------------------------
# Pure-JAX reference (for correctness check only)
# ----------------------------------------------------------------------------
def _ref_conv(x, w, b):
    y = lax.conv_general_dilated(
        x, w, window_strides=(1, 1), padding=((1, 1), (1, 1)),
        dimension_numbers=("NHWC", "HWIO", "NHWC"),
        precision=lax.Precision.HIGHEST)
    return y + b


def _ref_forward(x_nchw, params):
    x = jnp.transpose(x_nchw, (0, 2, 3, 1))
    x = _ref_conv(x, params["conv"]["w"], params["conv"]["b"])
    x = lax.reduce_window(x, -jnp.inf, lax.max, (1, 3, 3, 1), (1, 2, 2, 1),
                          padding=((0, 0), (1, 1), (1, 1), (0, 0)))
    for name in ("res0", "res1"):
        p = params[name]
        h = _ref_conv(jax.nn.relu(x), p["w0"], p["b0"])
        x = _ref_conv(jax.nn.relu(h), p["w1"], p["b1"]) + x
    return jnp.transpose(x, (0, 3, 1, 2))


if __name__ == "__main__":
    key = jax.random.PRNGKey(0)
    kx, kp = jax.random.split(key)

    N, C_in, H, W = 2, 4, 16, 16      # input_shape = (4, 16, 16)
    C_out = 32                        # out_channels

    x = jax.random.normal(kx, (N, C_in, H, W), jnp.float32)    # NCHW like torch
    params = init_params(kp, C_in, C_out)

    out = jax.block_until_ready(conv_sequence_forward(x, params))

    # get_output_shape() check: (out_channels, (h+1)//2, (w+1)//2)
    assert out.shape == (N, C_out, (H + 1) // 2, (W + 1) // 2), out.shape

    ref = jax.block_until_ready(_ref_forward(x, params))
    # Tolerance accounts for the f32-MXU accumulation path vs. XLA's
    # Precision.HIGHEST conv in the reference.
    assert jnp.allclose(out, ref, atol=1e-2, rtol=1e-2), float(
        jnp.max(jnp.abs(out - ref)))

    print("KERNEL_OK")
</pallas_src>

<mosaic_0001>
module attributes {stable_mosaic.version = 11 : i64} {
  func.func @_conv_sequence_kernel(%arg0: i32, %arg1: memref<1x16x64xf32, #tpu.memory_space<vmem>>, %arg2: memref<3x72x512xf32, #tpu.memory_space<vmem>>, %arg3: memref<1x512xf32, #tpu.memory_space<vmem>>, %arg4: memref<4x3x320x256xf32, #tpu.memory_space<vmem>>, %arg5: memref<4x1x256xf32, #tpu.memory_space<vmem>>, %arg6: memref<512x256xf32, #tpu.memory_space<vmem>>, %arg7: memref<1x8x256xf32, #tpu.memory_space<vmem>>, %arg8: memref<1x18x72xf32, #tpu.memory_space<vmem>>, %arg9: memref<1x17x512xf32, #tpu.memory_space<vmem>>, %arg10: memref<1x10x320xf32, #tpu.memory_space<vmem>>) attributes {dimension_semantics = [#tpu.dimension_semantics<parallel>], iteration_bounds = array<i64: 2>, scalar_prefetch = 0 : i64, scratch_operands = 3 : i64, tpu.core_type = #tpu.core_type<tc>, window_params = [{transform_indices = @transform_0, window_bounds = array<i64: 1, 16, 64>}, {pipeline_mode = #tpu.pipeline_mode<synchronous>, transform_indices = @transform_1, window_bounds = array<i64: 3, 72, 512>}, {pipeline_mode = #tpu.pipeline_mode<synchronous>, transform_indices = @transform_2, window_bounds = array<i64: 1, 512>}, {pipeline_mode = #tpu.pipeline_mode<synchronous>, transform_indices = @transform_3, window_bounds = array<i64: 4, 3, 320, 256>}, {pipeline_mode = #tpu.pipeline_mode<synchronous>, transform_indices = @transform_4, window_bounds = array<i64: 4, 1, 256>}, {pipeline_mode = #tpu.pipeline_mode<synchronous>, transform_indices = @transform_5, window_bounds = array<i64: 512, 256>}, {transform_indices = @transform_6, window_bounds = array<i64: 1, 8, 256>}]} {
    %cst = arith.constant 0.000000e+00 : f32
    %0 = vector.broadcast %cst : f32 to vector<1x18x72xf32>
    %c0 = arith.constant 0 : index
    %c0_0 = arith.constant 0 : index
    %c0_1 = arith.constant 0 : index
    %1 = vector.load %arg8[%c0, %c0_0, %c0_1] : memref<1x18x72xf32, #tpu.memory_space<vmem>>, vector<1x18x72xf32>
    tpu.vector_store %arg8[%c0, %c0_0, %c0_1], %0 {strides = array<i32>} : memref<1x18x72xf32, #tpu.memory_space<vmem>>, vector<1x18x72xf32>,
    %c0_2 = arith.constant 0 : index
    %c0_3 = arith.constant 0 : index
    %c0_4 = arith.constant 0 : index
    %2 = vector.load %arg1[%c0_2, %c0_3, %c0_4] : memref<1x16x64xf32, #tpu.memory_space<vmem>>, vector<1x16x64xf32>
    %c0_5 = arith.constant 0 : index
    %c1 = arith.constant 1 : index
    %c4 = arith.constant 4 : index
    %3 = vector.load %arg8[%c0_5, %c1, %c4] : memref<1x18x72xf32, #tpu.memory_space<vmem>>, vector<1x16x64xf32>
    tpu.vector_store %arg8[%c0_5, %c1, %c4], %2 {strides = array<i32>} : memref<1x18x72xf32, #tpu.memory_space<vmem>>, vector<1x16x64xf32>,
    %c0_6 = arith.constant 0 : index
    %c0_7 = arith.constant 0 : index
    %c0_8 = arith.constant 0 : index
    %4 = vector.load %arg8[%c0_6, %c0_7, %c0_8] : memref<1x18x72xf32, #tpu.memory_space<vmem>>, vector<1x16x72xf32>
    %5 = vector.shape_cast %4 : vector<1x16x72xf32> to vector<16x72xf32>
    %c0_9 = arith.constant 0 : index
    %c0_10 = arith.constant 0 : index
    %c0_11 = arith.constant 0 : index
    %6 = vector.load %arg2[%c0_9, %c0_10, %c0_11] : memref<3x72x512xf32, #tpu.memory_space<vmem>>, vector<1x72x512xf32>
    %7 = vector.shape_cast %6 : vector<1x72x512xf32> to vector<72x512xf32>
    %cst_12 = arith.constant dense<0.000000e+00> : vector<16x512xf32>
    %8 = tpu.matmul %5, %7, %cst_12 {dimension_numbers = #tpu.dot_dimension_numbers<[1], [0], [0], [1], [0, 0, 1, 1], [], []>} : vector<16x72xf32>, vector<72x512xf32>, vector<16x512xf32> -> vector<16x512xf32>
    %c0_13 = arith.constant 0 : index
    %c1_14 = arith.constant 1 : index
    %c0_15 = arith.constant 0 : index
    %9 = vector.load %arg8[%c0_13, %c1_14, %c0_15] : memref<1x18x72xf32, #tpu.memory_space<vmem>>, vector<1x16x72xf32>
    %10 = vector.shape_cast %9 : vector<1x16x72xf32> to vector<16x72xf32>
    %c1_16 = arith.constant 1 : index
    %c0_17 = arith.constant 0 : index
    %c0_18 = arith.constant 0 : index
    %11 = vector.load %arg2[%c1_16, %c0_17, %c0_18] : memref<3x72x512xf32, #tpu.memory_space<vmem>>, vector<1x72x512xf32>
    %12 = vector.shape_cast %11 : vector<1x72x512xf32> to vector<72x512xf32>
    %cst_19 = arith.constant dense<0.000000e+00> : vector<16x512xf32>
    %13 = tpu.matmul %10, %12, %cst_19 {dimension_numbers = #tpu.dot_dimension_numbers<[1], [0], [0], [1], [0, 0, 1, 1], [], []>} : vector<16x72xf32>, vector<72x512xf32>, vector<16x512xf32> -> vector<16x512xf32>
    %14 = arith.addf %8, %13 : vector<16x512xf32>
    %c0_20 = arith.constant 0 : index
    %c2 = arith.constant 2 : index
    %c0_21 = arith.constant 0 : index
    %15 = vector.load %arg8[%c0_20, %c2, %c0_21] : memref<1x18x72xf32, #tpu.memory_space<vmem>>, vector<1x16x72xf32>
    %16 = vector.shape_cast %15 : vector<1x16x72xf32> to vector<16x72xf32>
    %c2_22 = arith.constant 2 : index
    %c0_23 = arith.constant 0 : index
    %c0_24 = arith.constant 0 : index
    %17 = vector.load %arg2[%c2_22, %c0_23, %c0_24] : memref<3x72x512xf32, #tpu.memory_space<vmem>>, vector<1x72x512xf32>
    %18 = vector.shape_cast %17 : vector<1x72x512xf32> to vector<72x512xf32>
    %cst_25 = arith.constant dense<0.000000e+00> : vector<16x512xf32>
    %19 = tpu.matmul %16, %18, %cst_25 {dimension_numbers = #tpu.dot_dimension_numbers<[1], [0], [0], [1], [0, 0, 1, 1], [], []>} : vector<16x72xf32>, vector<72x512xf32>, vector<16x512xf32> -> vector<16x512xf32>
    %20 = arith.addf %14, %19 : vector<16x512xf32>
    %c0_26 = arith.constant 0 : index
    %c0_27 = arith.constant 0 : index
    %21 = vector.load %arg3[%c0_26, %c0_27] : memref<1x512xf32, #tpu.memory_space<vmem>>, vector<1x512xf32>
    %22 = vector.broadcast %21 : vector<1x512xf32> to vector<16x512xf32>
    %23 = arith.addf %20, %22 : vector<16x512xf32>
    %cst_28 = arith.constant 0xFF800000 : f32
    %24 = vector.broadcast %cst_28 : f32 to vector<1x1x512xf32>
    %c0_29 = arith.constant 0 : index
    %c0_30 = arith.constant 0 : index
    %c0_31 = arith.constant 0 : index
    %25 = vector.load %arg9[%c0_29, %c0_30, %c0_31] : memref<1x17x512xf32, #tpu.memory_space<vmem>>, vector<1x1x512xf32>
    tpu.vector_store %arg9[%c0_29, %c0_30, %c0_31], %24 {strides = array<i32>} : memref<1x17x512xf32, #tpu.memory_space<vmem>>, vector<1x1x512xf32>,
    %26 = vector.shape_cast %23 : vector<16x512xf32> to vector<1x16x512xf32>
    %c0_32 = arith.constant 0 : index
    %c1_33 = arith.constant 1 : index
    %c0_34 = arith.constant 0 : index
    %27 = vector.load %arg9[%c0_32, %c1_33, %c0_34] : memref<1x17x512xf32, #tpu.memory_space<vmem>>, vector<1x16x512xf32>
    tpu.vector_store %arg9[%c0_32, %c1_33, %c0_34], %26 {strides = array<i32>} : memref<1x17x512xf32, #tpu.memory_space<vmem>>, vector<1x16x512xf32>,
    %c0_35 = arith.constant 0 : index
    %c0_36 = arith.constant 0 : index
    %c0_37 = arith.constant 0 : index
    %28 = vector.load %arg9[%c0_35, %c0_36, %c0_37] : memref<1x17x512xf32, #tpu.memory_space<vmem>>, vector<1x16x512xf32>
    %29 = vector.shape_cast %28 : vector<1x16x512xf32> to vector<1x8x2x512xf32>
    %30 = vector.extract_strided_slice %29 {offsets = [0, 0, 0, 0], sizes = [1, 8, 1, 512], strides = [1, 1, 1, 1]} : vector<1x8x2x512xf32> to vector<1x8x1x512xf32>
    %31 = vector.shape_cast %30 : vector<1x8x1x512xf32> to vector<1x8x512xf32>
    %32 = vector.extract_strided_slice %29 {offsets = [0, 0, 1, 0], sizes = [1, 8, 1, 512], strides = [1, 1, 1, 1]} : vector<1x8x2x512xf32> to vector<1x8x1x512xf32>
    %33 = vector.shape_cast %32 : vector<1x8x1x512xf32> to vector<1x8x512xf32>
    %c0_38 = arith.constant 0 : index
    %c1_39 = arith.constant 1 : index
    %c0_40 = arith.constant 0 : index
    %34 = vector.load %arg9[%c0_38, %c1_39, %c0_40] : memref<1x17x512xf32, #tpu.memory_space<vmem>>, vector<1x16x512xf32>
    %35 = vector.shape_cast %34 : vector<1x16x512xf32> to vector<1x8x2x512xf32>
    %36 = vector.extract_strided_slice %35 {offsets = [0, 0, 1, 0], sizes = [1, 8, 1, 512], strides = [1, 1, 1, 1]} : vector<1x8x2x512xf32> to vector<1x8x1x512xf32>
    %37 = vector.shape_cast %36 : vector<1x8x1x512xf32> to vector<1x8x512xf32>
    %38 = arith.maximumf %31, %33 : vector<1x8x512xf32>
    %39 = arith.maximumf %38, %37 : vector<1x8x512xf32>
    %cst_41 = arith.constant 0xFF800000 : f32
    %40 = vector.broadcast %cst_41 : f32 to vector<1x8x32xf32>
    %41 = vector.extract_strided_slice %39 {offsets = [0, 0, 0], sizes = [1, 8, 480], strides = [1, 1, 1]} : vector<1x8x512xf32> to vector<1x8x480xf32>
    %42 = tpu.concatenate %40, %41 in 2 : vector<1x8x32xf32>, vector<1x8x480xf32> -> vector<1x8x512xf32>
    %43 = vector.extract_strided_slice %39 {offsets = [0, 0, 32], sizes = [1, 8, 480], strides = [1, 1, 1]} : vector<1x8x512xf32> to vector<1x8x480xf32>
    %44 = tpu.concatenate %43, %40 in 2 : vector<1x8x480xf32>, vector<1x8x32xf32> -> vector<1x8x512xf32>
    %45 = arith.maximumf %39, %42 : vector<1x8x512xf32>
    %46 = arith.maximumf %45, %44 : vector<1x8x512xf32>
    %47 = vector.shape_cast %46 : vector<1x8x512xf32> to vector<8x512xf32>
    %c0_42 = arith.constant 0 : index
    %c0_43 = arith.constant 0 : index
    %48 = vector.load %arg6[%c0_42, %c0_43] : memref<512x256xf32, #tpu.memory_space<vmem>>, vector<512x256xf32>
    %cst_44 = arith.constant dense<0.000000e+00> : vector<8x256xf32>
    %49 = tpu.matmul %47, %48, %cst_44 {dimension_numbers = #tpu.dot_dimension_numbers<[1], [0], [0], [1], [0, 0, 1, 1], [], []>} : vector<8x512xf32>, vector<512x256xf32>, vector<8x256xf32> -> vector<8x256xf32>
    %cst_45 = arith.constant 0.000000e+00 : f32
    %50 = vector.broadcast %cst_45 : f32 to vector<1x10x320xf32>
    %c0_46 = arith.constant 0 : index
    %c0_47 = arith.constant 0 : index
    %c0_48 = arith.constant 0 : index
    %51 = vector.load %arg10[%c0_46, %c0_47, %c0_48] : memref<1x10x320xf32, #tpu.memory_space<vmem>>, vector<1x10x320xf32>
    tpu.vector_store %arg10[%c0_46, %c0_47, %c0_48], %50 {strides = array<i32>} : memref<1x10x320xf32, #tpu.memory_space<vmem>>, vector<1x10x320xf32>,
    %cst_49 = arith.constant 0.000000e+00 : f32
    %52 = vector.broadcast %cst_49 : f32 to vector<8x256xf32>
    %53 = arith.maximumf %49, %52 : vector<8x256xf32>
    %54 = vector.shape_cast %53 : vector<8x256xf32> to vector<1x8x256xf32>
    %c0_50 = arith.constant 0 : index
    %c1_51 = arith.constant 1 : index
    %c32 = arith.constant 32 : index
    %55 = vector.load %arg10[%c0_50, %c1_51, %c32] : memref<1x10x320xf32, #tpu.memory_space<vmem>>, vector<1x8x256xf32>
    tpu.vector_store %arg10[%c0_50, %c1_51, %c32], %54 {strides = array<i32>} : memref<1x10x320xf32, #tpu.memory_space<vmem>>, vector<1x8x256xf32>,
    %c0_52 = arith.constant 0 : index
    %c0_53 = arith.constant 0 : index
    %c0_54 = arith.constant 0 : index
    %56 = vector.load %arg10[%c0_52, %c0_53, %c0_54] : memref<1x10x320xf32, #tpu.memory_space<vmem>>, vector<1x8x320xf32>
    %57 = vector.shape_cast %56 : vector<1x8x320xf32> to vector<8x320xf32>
    %c0_55 = arith.constant 0 : index
    %c0_56 = arith.constant 0 : index
    %c0_57 = arith.constant 0 : index
    %c0_58 = arith.constant 0 : index
    %58 = vector.load %arg4[%c0_55, %c0_56, %c0_57, %c0_58] : memref<4x3x320x256xf32, #tpu.memory_space<vmem>>, vector<1x1x320x256xf32>
    %59 = vector.shape_cast %58 : vector<1x1x320x256xf32> to vector<320x256xf32>
    %cst_59 = arith.constant dense<0.000000e+00> : vector<8x256xf32>
    %60 = tpu.matmul %57, %59, %cst_59 {dimension_numbers = #tpu.dot_dimension_numbers<[1], [0], [0], [1], [0, 0, 1, 1], [], []>} : vector<8x320xf32>, vector<320x256xf32>, vector<8x256xf32> -> vector<8x256xf32>
    %c0_60 = arith.constant 0 : index
    %c1_61 = arith.constant 1 : index
    %c0_62 = arith.constant 0 : index
    %61 = vector.load %arg10[%c0_60, %c1_61, %c0_62] : memref<1x10x320xf32, #tpu.memory_space<vmem>>, vector<1x8x320xf32>
    %62 = vector.shape_cast %61 : vector<1x8x320xf32> to vector<8x320xf32>
    %c0_63 = arith.constant 0 : index
    %c1_64 = arith.constant 1 : index
    %c0_65 = arith.constant 0 : index
    %c0_66 = arith.constant 0 : index
    %63 = vector.load %arg4[%c0_63, %c1_64, %c0_65, %c0_66] : memref<4x3x320x256xf32, #tpu.memory_space<vmem>>, vector<1x1x320x256xf32>
    %64 = vector.shape_cast %63 : vector<1x1x320x256xf32> to vector<320x256xf32>
    %cst_67 = arith.constant dense<0.000000e+00> : vector<8x256xf32>
    %65 = tpu.matmul %62, %64, %cst_67 {dimension_numbers = #tpu.dot_dimension_numbers<[1], [0], [0], [1], [0, 0, 1, 1], [], []>} : vector<8x320xf32>, vector<320x256xf32>, vector<8x256xf32> -> vector<8x256xf32>
    %66 = arith.addf %60, %65 : vector<8x256xf32>
    %c0_68 = arith.constant 0 : index
    %c2_69 = arith.constant 2 : index
    %c0_70 = arith.constant 0 : index
    %67 = vector.load %arg10[%c0_68, %c2_69, %c0_70] : memref<1x10x320xf32, #tpu.memory_space<vmem>>, vector<1x8x320xf32>
    %68 = vector.shape_cast %67 : vector<1x8x320xf32> to vector<8x320xf32>
    %c0_71 = arith.constant 0 : index
    %c2_72 = arith.constant 2 : index
    %c0_73 = arith.constant 0 : index
    %c0_74 = arith.constant 0 : index
    %69 = vector.load %arg4[%c0_71, %c2_72, %c0_73, %c0_74] : memref<4x3x320x256xf32, #tpu.memory_space<vmem>>, vector<1x1x320x256xf32>
    %70 = vector.shape_cast %69 : vector<1x1x320x256xf32> to vector<320x256xf32>
    %cst_75 = arith.constant dense<0.000000e+00> : vector<8x256xf32>
    %71 = tpu.matmul %68, %70, %cst_75 {dimension_numbers = #tpu.dot_dimension_numbers<[1], [0], [0], [1], [0, 0, 1, 1], [], []>} : vector<8x320xf32>, vector<320x256xf32>, vector<8x256xf32> -> vector<8x256xf32>
    %72 = arith.addf %66, %71 : vector<8x256xf32>
    %c0_76 = arith.constant 0 : index
    %c0_77 = arith.constant 0 : index
    %c0_78 = arith.constant 0 : index
    %73 = vector.load %arg5[%c0_76, %c0_77, %c0_78] : memref<4x1x256xf32, #tpu.memory_space<vmem>>, vector<1x1x256xf32>
    %74 = vector.shape_cast %73 : vector<1x1x256xf32> to vector<1x256xf32>
    %75 = vector.broadcast %74 : vector<1x256xf32> to vector<8x256xf32>
    %76 = arith.addf %72, %75 : vector<8x256xf32>
    %cst_79 = arith.constant 0.000000e+00 : f32
    %77 = vector.broadcast %cst_79 : f32 to vector<8x256xf32>
    %78 = arith.maximumf %76, %77 : vector<8x256xf32>
    %79 = vector.shape_cast %78 : vector<8x256xf32> to vector<1x8x256xf32>
    %c0_80 = arith.constant 0 : index
    %c1_81 = arith.constant 1 : index
    %c32_82 = arith.constant 32 : index
    %80 = vector.load %arg10[%c0_80, %c1_81, %c32_82] : memref<1x10x320xf32, #tpu.memory_space<vmem>>, vector<1x8x256xf32>
    tpu.vector_store %arg10[%c0_80, %c1_81, %c32_82], %79 {strides = array<i32>} : memref<1x10x320xf32, #tpu.memory_space<vmem>>, vector<1x8x256xf32>,
    %c0_83 = arith.constant 0 : index
    %c0_84 = arith.constant 0 : index
    %c0_85 = arith.constant 0 : index
    %81 = vector.load %arg10[%c0_83, %c0_84, %c0_85] : memref<1x10x320xf32, #tpu.memory_space<vmem>>, vector<1x8x320xf32>
    %82 = vector.shape_cast %81 : vector<1x8x320xf32> to vector<8x320xf32>
    %c1_86 = arith.constant 1 : index
    %c0_87 = arith.constant 0 : index
    %c0_88 = arith.constant 0 : index
    %c0_89 = arith.constant 0 : index
    %83 = vector.load %arg4[%c1_86, %c0_87, %c0_88, %c0_89] : memref<4x3x320x256xf32, #tpu.memory_space<vmem>>, vector<1x1x320x256xf32>
    %84 = vector.shape_cast %83 : vector<1x1x320x256xf32> to vector<320x256xf32>
    %cst_90 = arith.constant dense<0.000000e+00> : vector<8x256xf32>
    %85 = tpu.matmul %82, %84, %cst_90 {dimension_numbers = #tpu.dot_dimension_numbers<[1], [0], [0], [1], [0, 0, 1, 1], [], []>} : vector<8x320xf32>, vector<320x256xf32>, vector<8x256xf32> -> vector<8x256xf32>
    %c0_91 = arith.constant 0 : index
    %c1_92 = arith.constant 1 : index
    %c0_93 = arith.constant 0 : index
    %86 = vector.load %arg10[%c0_91, %c1_92, %c0_93] : memref<1x10x320xf32, #tpu.memory_space<vmem>>, vector<1x8x320xf32>
    %87 = vector.shape_cast %86 : vector<1x8x320xf32> to vector<8x320xf32>
    %c1_94 = arith.constant 1 : index
    %c1_95 = arith.constant 1 : index
    %c0_96 = arith.constant 0 : index
    %c0_97 = arith.constant 0 : index
    %88 = vector.load %arg4[%c1_94, %c1_95, %c0_96, %c0_97] : memref<4x3x320x256xf32, #tpu.memory_space<vmem>>, vector<1x1x320x256xf32>
    %89 = vector.shape_cast %88 : vector<1x1x320x256xf32> to vector<320x256xf32>
    %cst_98 = arith.constant dense<0.000000e+00> : vector<8x256xf32>
    %90 = tpu.matmul %87, %89, %cst_98 {dimension_numbers = #tpu.dot_dimension_numbers<[1], [0], [0], [1], [0, 0, 1, 1], [], []>} : vector<8x320xf32>, vector<320x256xf32>, vector<8x256xf32> -> vector<8x256xf32>
    %91 = arith.addf %85, %90 : vector<8x256xf32>
    %c0_99 = arith.constant 0 : index
    %c2_100 = arith.constant 2 : index
    %c0_101 = arith.constant 0 : index
    %92 = vector.load %arg10[%c0_99, %c2_100, %c0_101] : memref<1x10x320xf32, #tpu.memory_space<vmem>>, vector<1x8x320xf32>
    %93 = vector.shape_cast %92 : vector<1x8x320xf32> to vector<8x320xf32>
    %c1_102 = arith.constant 1 : index
    %c2_103 = arith.constant 2 : index
    %c0_104 = arith.constant 0 : index
    %c0_105 = arith.constant 0 : index
    %94 = vector.load %arg4[%c1_102, %c2_103, %c0_104, %c0_105] : memref<4x3x320x256xf32, #tpu.memory_space<vmem>>, vector<1x1x320x256xf32>
    %95 = vector.shape_cast %94 : vector<1x1x320x256xf32> to vector<320x256xf32>
    %cst_106 = arith.constant dense<0.000000e+00> : vector<8x256xf32>
    %96 = tpu.matmul %93, %95, %cst_106 {dimension_numbers = #tpu.dot_dimension_numbers<[1], [0], [0], [1], [0, 0, 1, 1], [], []>} : vector<8x320xf32>, vector<320x256xf32>, vector<8x256xf32> -> vector<8x256xf32>
    %97 = arith.addf %91, %96 : vector<8x256xf32>
    %c1_107 = arith.constant 1 : index
    %c0_108 = arith.constant 0 : index
    %c0_109 = arith.constant 0 : index
    %98 = vector.load %arg5[%c1_107, %c0_108, %c0_109] : memref<4x1x256xf32, #tpu.memory_space<vmem>>, vector<1x1x256xf32>
    %99 = vector.shape_cast %98 : vector<1x1x256xf32> to vector<1x256xf32>
    %100 = vector.broadcast %99 : vector<1x256xf32> to vector<8x256xf32>
    %101 = arith.addf %97, %100 : vector<8x256xf32>
    %102 = arith.addf %101, %49 : vector<8x256xf32>
    %cst_110 = arith.constant 0.000000e+00 : f32
    %103 = vector.broadcast %cst_110 : f32 to vector<8x256xf32>
    %104 = arith.maximumf %102, %103 : vector<8x256xf32>
    %105 = vector.shape_cast %104 : vector<8x256xf32> to vector<1x8x256xf32>
    %c0_111 = arith.constant 0 : index
    %c1_112 = arith.constant 1 : index
    %c32_113 = arith.constant 32 : index
    %106 = vector.load %arg10[%c0_111, %c1_112, %c32_113] : memref<1x10x320xf32, #tpu.memory_space<vmem>>, vector<1x8x256xf32>
    tpu.vector_store %arg10[%c0_111, %c1_112, %c32_113], %105 {strides = array<i32>} : memref<1x10x320xf32, #tpu.memory_space<vmem>>, vector<1x8x256xf32>,
    %c0_114 = arith.constant 0 : index
    %c0_115 = arith.constant 0 : index
    %c0_116 = arith.constant 0 : index
    %107 = vector.load %arg10[%c0_114, %c0_115, %c0_116] : memref<1x10x320xf32, #tpu.memory_space<vmem>>, vector<1x8x320xf32>
    %108 = vector.shape_cast %107 : vector<1x8x320xf32> to vector<8x320xf32>
    %c2_117 = arith.constant 2 : index
    %c0_118 = arith.constant 0 : index
    %c0_119 = arith.constant 0 : index
    %c0_120 = arith.constant 0 : index
    %109 = vector.load %arg4[%c2_117, %c0_118, %c0_119, %c0_120] : memref<4x3x320x256xf32, #tpu.memory_space<vmem>>, vector<1x1x320x256xf32>
    %110 = vector.shape_cast %109 : vector<1x1x320x256xf32> to vector<320x256xf32>
    %cst_121 = arith.constant dense<0.000000e+00> : vector<8x256xf32>
    %111 = tpu.matmul %108, %110, %cst_121 {dimension_numbers = #tpu.dot_dimension_numbers<[1], [0], [0], [1], [0, 0, 1, 1], [], []>} : vector<8x320xf32>, vector<320x256xf32>, vector<8x256xf32> -> vector<8x256xf32>
    %c0_122 = arith.constant 0 : index
    %c1_123 = arith.constant 1 : index
    %c0_124 = arith.constant 0 : index
    %112 = vector.load %arg10[%c0_122, %c1_123, %c0_124] : memref<1x10x320xf32, #tpu.memory_space<vmem>>, vector<1x8x320xf32>
    %113 = vector.shape_cast %112 : vector<1x8x320xf32> to vector<8x320xf32>
    %c2_125 = arith.constant 2 : index
    %c1_126 = arith.constant 1 : index
    %c0_127 = arith.constant 0 : index
    %c0_128 = arith.constant 0 : index
    %114 = vector.load %arg4[%c2_125, %c1_126, %c0_127, %c0_128] : memref<4x3x320x256xf32, #tpu.memory_space<vmem>>, vector<1x1x320x256xf32>
    %115 = vector.shape_cast %114 : vector<1x1x320x256xf32> to vector<320x256xf32>
    %cst_129 = arith.constant dense<0.000000e+00> : vector<8x256xf32>
    %116 = tpu.matmul %113, %115, %cst_129 {dimension_numbers = #tpu.dot_dimension_numbers<[1], [0], [0], [1], [0, 0, 1, 1], [], []>} : vector<8x320xf32>, vector<320x256xf32>, vector<8x256xf32> -> vector<8x256xf32>
    %117 = arith.addf %111, %116 : vector<8x256xf32>
    %c0_130 = arith.constant 0 : index
    %c2_131 = arith.constant 2 : index
    %c0_132 = arith.constant 0 : index
    %118 = vector.load %arg10[%c0_130, %c2_131, %c0_132] : memref<1x10x320xf32, #tpu.memory_space<vmem>>, vector<1x8x320xf32>
    %119 = vector.shape_cast %118 : vector<1x8x320xf32> to vector<8x320xf32>
    %c2_133 = arith.constant 2 : index
    %c2_134 = arith.constant 2 : index
    %c0_135 = arith.constant 0 : index
    %c0_136 = arith.constant 0 : index
    %120 = vector.load %arg4[%c2_133, %c2_134, %c0_135, %c0_136] : memref<4x3x320x256xf32, #tpu.memory_space<vmem>>, vector<1x1x320x256xf32>
    %121 = vector.shape_cast %120 : vector<1x1x320x256xf32> to vector<320x256xf32>
    %cst_137 = arith.constant dense<0.000000e+00> : vector<8x256xf32>
    %122 = tpu.matmul %119, %121, %cst_137 {dimension_numbers = #tpu.dot_dimension_numbers<[1], [0], [0], [1], [0, 0, 1, 1], [], []>} : vector<8x320xf32>, vector<320x256xf32>, vector<8x256xf32> -> vector<8x256xf32>
    %123 = arith.addf %117, %122 : vector<8x256xf32>
    %c2_138 = arith.constant 2 : index
    %c0_139 = arith.constant 0 : index
    %c0_140 = arith.constant 0 : index
    %124 = vector.load %arg5[%c2_138, %c0_139, %c0_140] : memref<4x1x256xf32, #tpu.memory_space<vmem>>, vector<1x1x256xf32>
    %125 = vector.shape_cast %124 : vector<1x1x256xf32> to vector<1x256xf32>
    %126 = vector.broadcast %125 : vector<1x256xf32> to vector<8x256xf32>
    %127 = arith.addf %123, %126 : vector<8x256xf32>
    %cst_141 = arith.constant 0.000000e+00 : f32
    %128 = vector.broadcast %cst_141 : f32 to vector<8x256xf32>
    %129 = arith.maximumf %127, %128 : vector<8x256xf32>
    %130 = vector.shape_cast %129 : vector<8x256xf32> to vector<1x8x256xf32>
    %c0_142 = arith.constant 0 : index
    %c1_143 = arith.constant 1 : index
    %c32_144 = arith.constant 32 : index
    %131 = vector.load %arg10[%c0_142, %c1_143, %c32_144] : memref<1x10x320xf32, #tpu.memory_space<vmem>>, vector<1x8x256xf32>
    tpu.vector_store %arg10[%c0_142, %c1_143, %c32_144], %130 {strides = array<i32>} : memref<1x10x320xf32, #tpu.memory_space<vmem>>, vector<1x8x256xf32>,
    %c0_145 = arith.constant 0 : index
    %c0_146 = arith.constant 0 : index
    %c0_147 = arith.constant 0 : index
    %132 = vector.load %arg10[%c0_145, %c0_146, %c0_147] : memref<1x10x320xf32, #tpu.memory_space<vmem>>, vector<1x8x320xf32>
    %133 = vector.shape_cast %132 : vector<1x8x320xf32> to vector<8x320xf32>
    %c3 = arith.constant 3 : index
    %c0_148 = arith.constant 0 : index
    %c0_149 = arith.constant 0 : index
    %c0_150 = arith.constant 0 : index
    %134 = vector.load %arg4[%c3, %c0_148, %c0_149, %c0_150] : memref<4x3x320x256xf32, #tpu.memory_space<vmem>>, vector<1x1x320x256xf32>
    %135 = vector.shape_cast %134 : vector<1x1x320x256xf32> to vector<320x256xf32>
    %cst_151 = arith.constant dense<0.000000e+00> : vector<8x256xf32>
    %136 = tpu.matmul %133, %135, %cst_151 {dimension_numbers = #tpu.dot_dimension_numbers<[1], [0], [0], [1], [0, 0, 1, 1], [], []>} : vector<8x320xf32>, vector<320x256xf32>, vector<8x256xf32> -> vector<8x256xf32>
    %c0_152 = arith.constant 0 : index
    %c1_153 = arith.constant 1 : index
    %c0_154 = arith.constant 0 : index
    %137 = vector.load %arg10[%c0_152, %c1_153, %c0_154] : memref<1x10x320xf32, #tpu.memory_space<vmem>>, vector<1x8x320xf32>
    %138 = vector.shape_cast %137 : vector<1x8x320xf32> to vector<8x320xf32>
    %c3_155 = arith.constant 3 : index
    %c1_156 = arith.constant 1 : index
    %c0_157 = arith.constant 0 : index
    %c0_158 = arith.constant 0 : index
    %139 = vector.load %arg4[%c3_155, %c1_156, %c0_157, %c0_158] : memref<4x3x320x256xf32, #tpu.memory_space<vmem>>, vector<1x1x320x256xf32>
    %140 = vector.shape_cast %139 : vector<1x1x320x256xf32> to vector<320x256xf32>
    %cst_159 = arith.constant dense<0.000000e+00> : vector<8x256xf32>
    %141 = tpu.matmul %138, %140, %cst_159 {dimension_numbers = #tpu.dot_dimension_numbers<[1], [0], [0], [1], [0, 0, 1, 1], [], []>} : vector<8x320xf32>, vector<320x256xf32>, vector<8x256xf32> -> vector<8x256xf32>
    %142 = arith.addf %136, %141 : vector<8x256xf32>
    %c0_160 = arith.constant 0 : index
    %c2_161 = arith.constant 2 : index
    %c0_162 = arith.constant 0 : index
    %143 = vector.load %arg10[%c0_160, %c2_161, %c0_162] : memref<1x10x320xf32, #tpu.memory_space<vmem>>, vector<1x8x320xf32>
    %144 = vector.shape_cast %143 : vector<1x8x320xf32> to vector<8x320xf32>
    %c3_163 = arith.constant 3 : index
    %c2_164 = arith.constant 2 : index
    %c0_165 = arith.constant 0 : index
    %c0_166 = arith.constant 0 : index
    %145 = vector.load %arg4[%c3_163, %c2_164, %c0_165, %c0_166] : memref<4x3x320x256xf32, #tpu.memory_space<vmem>>, vector<1x1x320x256xf32>
    %146 = vector.shape_cast %145 : vector<1x1x320x256xf32> to vector<320x256xf32>
    %cst_167 = arith.constant dense<0.000000e+00> : vector<8x256xf32>
    %147 = tpu.matmul %144, %146, %cst_167 {dimension_numbers = #tpu.dot_dimension_numbers<[1], [0], [0], [1], [0, 0, 1, 1], [], []>} : vector<8x320xf32>, vector<320x256xf32>, vector<8x256xf32> -> vector<8x256xf32>
    %148 = arith.addf %142, %147 : vector<8x256xf32>
    %c3_168 = arith.constant 3 : index
    %c0_169 = arith.constant 0 : index
    %c0_170 = arith.constant 0 : index
    %149 = vector.load %arg5[%c3_168, %c0_169, %c0_170] : memref<4x1x256xf32, #tpu.memory_space<vmem>>, vector<1x1x256xf32>
    %150 = vector.shape_cast %149 : vector<1x1x256xf32> to vector<1x256xf32>
    %151 = vector.broadcast %150 : vector<1x256xf32> to vector<8x256xf32>
    %152 = arith.addf %148, %151 : vector<8x256xf32>
    %153 = arith.addf %152, %102 : vector<8x256xf32>
    %154 = vector.shape_cast %153 : vector<8x256xf32> to vector<1x8x256xf32>
    %c0_171 = arith.constant 0 : index
    %c0_172 = arith.constant 0 : index
    %c0_173 = arith.constant 0 : index
    %155 = vector.load %arg7[%c0_171, %c0_172, %c0_173] : memref<1x8x256xf32, #tpu.memory_space<vmem>>, vector<1x8x256xf32>
    tpu.vector_store %arg7[%c0_171, %c0_172, %c0_173], %154 {strides = array<i32>} : memref<1x8x256xf32, #tpu.memory_space<vmem>>, vector<1x8x256xf32>,
    return
  }
  func.func @transform_0(%arg0: i32) -> (i32, i32, i32) {
    %c0_i32 = arith.constant 0 : i32
    %c0_i32_0 = arith.constant 0 : i32
    %c0_i32_1 = arith.constant 0 : i32
    return %arg0, %c0_i32, %c0_i32_0 : i32, i32, i32
  }
  func.func @transform_1(%arg0: i32) -> (i32, i32, i32) {
    %c0_i32 = arith.constant 0 : i32
    %c0_i32_0 = arith.constant 0 : i32
    %c0_i32_1 = arith.constant 0 : i32
    %c0_i32_2 = arith.constant 0 : i32
    return %c0_i32, %c0_i32_0, %c0_i32_1 : i32, i32, i32
  }
  func.func @transform_2(%arg0: i32) -> (i32, i32) {
    %c0_i32 = arith.constant 0 : i32
    %c0_i32_0 = arith.constant 0 : i32
    %c0_i32_1 = arith.constant 0 : i32
    return %c0_i32, %c0_i32_0 : i32, i32
  }
  func.func @transform_3(%arg0: i32) -> (i32, i32, i32, i32) {
    %c0_i32 = arith.constant 0 : i32
    %c0_i32_0 = arith.constant 0 : i32
    %c0_i32_1 = arith.constant 0 : i32
    %c0_i32_2 = arith.constant 0 : i32
    %c0_i32_3 = arith.constant 0 : i32
    return %c0_i32, %c0_i32_0, %c0_i32_1, %c0_i32_2 : i32, i32, i32, i32
  }
  func.func @transform_4(%arg0: i32) -> (i32, i32, i32) {
    %c0_i32 = arith.constant 0 : i32
    %c0_i32_0 = arith.constant 0 : i32
    %c0_i32_1 = arith.constant 0 : i32
    %c0_i32_2 = arith.constant 0 : i32
    return %c0_i32, %c0_i32_0, %c0_i32_1 : i32, i32, i32
  }
  func.func @transform_5(%arg0: i32) -> (i32, i32) {
    %c0_i32 = arith.constant 0 : i32
    %c0_i32_0 = arith.constant 0 : i32
    %c0_i32_1 = arith.constant 0 : i32
    return %c0_i32, %c0_i32_0 : i32, i32
  }
  func.func @transform_6(%arg0: i32) -> (i32, i32, i32) {
    %c0_i32 = arith.constant 0 : i32
    %c0_i32_0 = arith.constant 0 : i32
    %c0_i32_1 = arith.constant 0 : i32
    return %arg0, %c0_i32, %c0_i32_0 : i32, i32, i32
  }
}

</mosaic_0001>

<llo_original>
// kernel: tpu_custom_call.1
$region0: #{tpu_custom_call.1}
  #allocation0 [shape = 'u32[]', space=smem, size = 0x4, offset = 0x4, fixed_abs, tag = 'smem constant byte address 0x4 - core index']
  #allocation1 [shape = 'u32[144,128]{1,0:T(1,128)}', space=vmem, size = 0x12000, scoped, tag = 'internal scratch']
  #allocation2 [shape = 'f32[1,18,72]{2,1,0:T(8,128)}', space=vmem, size = 0x3000, scoped, tag = 'scratch operand']
  #allocation3 [shape = 'f32[1,17,512]{2,1,0:T(8,128)}', space=vmem, size = 0xc000, scoped, tag = 'scratch operand']
  #allocation4 [shape = 'f32[1,10,320]{2,1,0:T(8,128)}', space=vmem, size = 0x6000, scoped, tag = 'scratch operand']
  %s0 = inlined_call_operand.hbm [shape: f32[2,16,64], index: 0, kind: input, shape index: {}]
  %s1 = inlined_call_operand.hbm [shape: f32[3,72,512], index: 1, kind: input, shape index: {}]
  %s2 = inlined_call_operand.hbm [shape: f32[1,512], index: 2, kind: input, shape index: {}]
  %s3 = inlined_call_operand.hbm [shape: f32[4,3,320,256], index: 3, kind: input, shape index: {}]
  %s4 = inlined_call_operand.hbm [shape: f32[4,1,256], index: 4, kind: input, shape index: {}]
  %s5 = inlined_call_operand.hbm [shape: f32[512,256], index: 5, kind: input, shape index: {}]
  %s6 = inlined_call_operand.hbm [shape: f32[2,8,256], index: 6, kind: output, shape index: {}]
  %s7 = sld [smem:[#allocation0]]
  $region81: #{tpu_custom_call.1} parent=0
    _
  %s9 = ssub.s32 1, %s7
  %s10 = scalar_select 0, %s9, %s7
  $region1: #{tpu_custom_call.1} parent=0
    #allocation5 [shape = 'u8[16384]{0}', space=vmem, size = 0x4000, scoped, tag = 'input window, operand 0']
    #allocation6 [shape = 's32[2]{0}', space=sflag, size = 0x8, scoped, tag = 'scoped memory for tpu_custom_call.1']
    #allocation7 [shape = 's32[2]{0}', space=sflag, size = 0x8, scoped, tag = 'scoped memory for tpu_custom_call.1']
    #allocation8 [shape = 'u8[442368]{0}', space=vmem, size = 0x6c000, scoped, tag = 'input window, operand 1, single buffered']
    #allocation9 [shape = 's32[1]{0}', space=sflag, size = 0x4, scoped, tag = 'scoped memory for tpu_custom_call.1']
    #allocation10 [shape = 'u8[2048]{0}', space=vmem, size = 0x800, scoped, tag = 'input window, operand 2, single buffered']
    #allocation11 [shape = 'u8[3932160]{0}', space=vmem, size = 0x3c0000, scoped, tag = 'input window, operand 3, single buffered']
    #allocation12 [shape = 's32[1]{0}', space=sflag, size = 0x4, scoped, tag = 'scoped memory for tpu_custom_call.1']
    #allocation13 [shape = 'u8[4096]{0}', space=vmem, size = 0x1000, scoped, tag = 'input window, operand 4, single buffered']
    #allocation14 [shape = 'u8[524288]{0}', space=vmem, size = 0x80000, scoped, tag = 'input window, operand 5, single buffered']
    #allocation15 [shape = 's32[1]{0}', space=sflag, size = 0x4, scoped, tag = 'scoped memory for tpu_custom_call.1']
    #allocation16 [shape = 'u8[16384]{0}', space=vmem, size = 0x4000, scoped, tag = 'output window, operand 0']
    %11 = vsyncpa [#allocation6], 0
    %s12 = scalar_lea.sflag [#allocation6], 1
    %13 = vsyncpa %s12, 0
    %14 = vsyncpa [#allocation9], 0
    %15 = vsyncpa [#allocation12], 0
    %16 = vsyncpa [#allocation15], 0
    %17 = vsyncpa [#allocation7], 0
    %s18 = scalar_lea.sflag [#allocation7], 1
    %19 = vsyncpa %s18, 0
    loop: start=0, step=1, limit=4
    $region2: #{tpu_custom_call.1} parent=1 // loop_pre_header
      _
    $region3: #{tpu_custom_call.1} parent=1 // loop_header
      %s21 = sphi 0, %s25
      %p22 = scmp.ge.s32.totalorder %s21, 4
      %s31 = sphi 0, %s33
      %s34 = sphi 0, %s31
      %s35 = sphi 0, %s34
      %s51 = sphi 0, %s35
      %s55 = sphi 0, %s55
      %s57 = sphi 0, %s55
      %s58 = sphi 0, %s57
      %s72 = sphi 0, %s58
      %s76 = sphi 0, %s76
      %s78 = sphi 0, %s76
      %s79 = sphi 0, %s78
      %s93 = sphi 0, %s79
      %s97 = sphi 0, %s97
      %s99 = sphi 0, %s97
      %s100 = sphi 0, %s99
      %s114 = sphi 0, %s100
      %s118 = sphi 0, %s118
      %s120 = sphi 0, %s118
      %s121 = sphi 0, %s120
      %s135 = sphi 0, %s121
      %s139 = sphi 0, %s139
      %s141 = sphi 0, %s139
      %s142 = sphi 0, %s141
      %s156 = sphi 0, %s142
      %s162 = sphi 0, %s164
      %s165 = sphi 0, %s162
      %s166 = sphi 0, %s165
      %s182 = sphi 0, %s166
    $region4: #{tpu_custom_call.1} parent=1 // loop_header_branch
      %24 = sbr.rel (%p22) target = $region8
    $region5: #{tpu_custom_call.1} parent=1 // loop_body
      %s26 = ssub.s32 %s21, 1
      %s27 = ssub.s32 %s21, 2
      %s28 = sadd.s32 %s21, 1
      %s29 = ssub.s32 %s21, %s28
      %p30 = scmp.eq.s32.totalorder %s29, 0
      %s32 = sadd.s32 %s31, 1
      %s33 = scalar_select %p30, %s31, %s32
      %p36 = pneg %p30
      %p37 = scmp.eq.s32.totalorder %s21, 1
      %p38 = por %p36, %p37
      %p39 = scmp.ne.s32.totalorder %s31, %s34
      %p40 = scmp.eq.s32.totalorder %s21, 0
      %p41 = por %p39, %p40
      %p42 = scmp.ne.s32.totalorder %s31, %s34
      %p43 = scmp.eq.s32.totalorder %s26, 1
      %p44 = por %p42, %p43
      %p45 = scmp.ne.s32.totalorder %s34, %s35
      %p46 = scmp.eq.s32.totalorder %s26, 0
      %p47 = por %p45, %p46
      %p48 = scmp.ne.s32.totalorder %s34, %s35
      %p49 = scmp.eq.s32.totalorder %s27, 1
      %p50 = por %p48, %p49
      %p52 = scmp.ne.s32.totalorder %s35, %s51
      %p53 = scmp.eq.s32.totalorder %s27, 0
      %p54 = por %p52, %p53
      %s56 = sadd.s32 %s55, 1
      %p59 = scmp.eq.s32.totalorder %s21, 1
      %p60 = scmp.ne.s32.totalorder %s55, %s57
      %p61 = scmp.eq.s32.totalorder %s21, 0
      %p62 = por %p60, %p61
      %p63 = scmp.ne.s32.totalorder %s55, %s57
      %p64 = scmp.eq.s32.totalorder %s26, 1
      %p65 = por %p63, %p64
      %p66 = scmp.ne.s32.totalorder %s57, %s58
      %p67 = scmp.eq.s32.totalorder %s26, 0
      %p68 = por %p66, %p67
      %p69 = scmp.ne.s32.totalorder %s57, %s58
      %p70 = scmp.eq.s32.totalorder %s27, 1
      %p71 = por %p69, %p70
      %p73 = scmp.ne.s32.totalorder %s58, %s72
      %p74 = scmp.eq.s32.totalorder %s27, 0
      %p75 = por %p73, %p74
      %s77 = sadd.s32 %s76, 1
      %p80 = scmp.eq.s32.totalorder %s21, 1
      %p81 = scmp.ne.s32.totalorder %s76, %s78
      %p82 = scmp.eq.s32.totalorder %s21, 0
      %p83 = por %p81, %p82
      %p84 = scmp.ne.s32.totalorder %s76, %s78
      %p85 = scmp.eq.s32.totalorder %s26, 1
      %p86 = por %p84, %p85
      %p87 = scmp.ne.s32.totalorder %s78, %s79
      %p88 = scmp.eq.s32.totalorder %s26, 0
      %p89 = por %p87, %p88
      %p90 = scmp.ne.s32.totalorder %s78, %s79
      %p91 = scmp.eq.s32.totalorder %s27, 1
      %p92 = por %p90, %p91
      %p94 = scmp.ne.s32.totalorder %s79, %s93
      %p95 = scmp.eq.s32.totalorder %s27, 0
      %p96 = por %p94, %p95
      %s98 = sadd.s32 %s97, 1
      %p101 = scmp.eq.s32.totalorder %s21, 1
      %p102 = scmp.ne.s32.totalorder %s97, %s99
      %p103 = scmp.eq.s32.totalorder %s21, 0
      %p104 = por %p102, %p103
      %p105 = scmp.ne.s32.totalorder %s97, %s99
      %p106 = scmp.eq.s32.totalorder %s26, 1
      %p107 = por %p105, %p106
      %p108 = scmp.ne.s32.totalorder %s99, %s100
      %p109 = scmp.eq.s32.totalorder %s26, 0
      %p110 = por %p108, %p109
      %p111 = scmp.ne.s32.totalorder %s99, %s100
      %p112 = scmp.eq.s32.totalorder %s27, 1
      %p113 = por %p111, %p112
      %p115 = scmp.ne.s32.totalorder %s100, %s114
      %p116 = scmp.eq.s32.totalorder %s27, 0
      %p117 = por %p115, %p116
      %s119 = sadd.s32 %s118, 1
      %p122 = scmp.eq.s32.totalorder %s21, 1
      %p123 = scmp.ne.s32.totalorder %s118, %s120
      %p124 = scmp.eq.s32.totalorder %s21, 0
      %p125 = por %p123, %p124
      %p126 = scmp.ne.s32.totalorder %s118, %s120
      %p127 = scmp.eq.s32.totalorder %s26, 1
      %p128 = por %p126, %p127
      %p129 = scmp.ne.s32.totalorder %s120, %s121
      %p130 = scmp.eq.s32.totalorder %s26, 0
      %p131 = por %p129, %p130
      %p132 = scmp.ne.s32.totalorder %s120, %s121
      %p133 = scmp.eq.s32.totalorder %s27, 1
      %p134 = por %p132, %p133
      %p136 = scmp.ne.s32.totalorder %s121, %s135
      %p137 = scmp.eq.s32.totalorder %s27, 0
      %p138 = por %p136, %p137
      %s140 = sadd.s32 %s139, 1
      %p143 = scmp.eq.s32.totalorder %s21, 1
      %p144 = scmp.ne.s32.totalorder %s139, %s141
      %p145 = scmp.eq.s32.totalorder %s21, 0
      %p146 = por %p144, %p145
      %p147 = scmp.ne.s32.totalorder %s139, %s141
      %p148 = scmp.eq.s32.totalorder %s26, 1
      %p149 = por %p147, %p148
      %p150 = scmp.ne.s32.totalorder %s141, %s142
      %p151 = scmp.eq.s32.totalorder %s26, 0
      %p152 = por %p150, %p151
      %p153 = scmp.ne.s32.totalorder %s141, %s142
      %p154 = scmp.eq.s32.totalorder %s27, 1
      %p155 = por %p153, %p154
      %p157 = scmp.ne.s32.totalorder %s142, %s156
      %p158 = scmp.eq.s32.totalorder %s27, 0
      %p159 = por %p157, %p158
      %s160 = ssub.s32 %s21, %s28
      %p161 = scmp.eq.s32.totalorder %s160, 0
      %s163 = sadd.s32 %s162, 1
      %s164 = scalar_select %p161, %s162, %s163
      %p167 = pneg %p161
      %p168 = scmp.eq.s32.totalorder %s21, 1
      %p169 = por %p167, %p168
      %p170 = scmp.ne.s32.totalorder %s162, %s165
      %p171 = scmp.eq.s32.totalorder %s21, 0
      %p172 = por %p170, %p171
      %p173 = scmp.ne.s32.totalorder %s162, %s165
      %p174 = scmp.eq.s32.totalorder %s26, 1
      %p175 = por %p173, %p174
      %p176 = scmp.ne.s32.totalorder %s165, %s166
      %p177 = scmp.eq.s32.totalorder %s26, 0
      %p178 = por %p176, %p177
      %p179 = scmp.ne.s32.totalorder %s165, %s166
      %p180 = scmp.eq.s32.totalorder %s27, 1
      %p181 = por %p179, %p180
      %p183 = scmp.ne.s32.totalorder %s166, %s182
      %p184 = scmp.eq.s32.totalorder %s27, 0
      %p185 = por %p183, %p184
      %p186 = scmp.le.s32.totalorder 1, %s21
      %p187 = scmp.lt.s32.totalorder %s21, 3
      %p188 = pnand %p186, %p187
      %p189 = pneg %p188
      // Predicated region
      $region9: #{tpu_custom_call.1} parent=5 // pred_check
        _
      $region10: #{tpu_custom_call.1} parent=5 // pred_check_branch
        %191 = sbr.rel (%p188) target = $region12
      $region11: #{tpu_custom_call.1} parent=5 // pred_region
        %s192 = ssub.s32 %s21, 1
        // Predicated region
        $region13: #{tpu_custom_call.1} parent=11 // pred_check
          %p193 = pneg %p68
        $region14: #{tpu_custom_call.1} parent=11 // pred_check_branch
          %195 = sbr.rel (%p193) target = $region16
        $region15: #{tpu_custom_call.1} parent=11 // pred_region
          %s197 = ssub.s32 13824, 13824
          %198 = vsyncadd [#allocation9], %s197
          %s199 = sshll.u32 [#allocation8], 4
          %s200 = int_to_ptr.vmem [resolvable:$true] %s199
          %205 = dma.hbm_to_vmem [thread:$0]  %s1, 13824, %s200, [#allocation9], 512, 512, 32
        $region16: #{tpu_custom_call.1} parent=11 // pred_fallthru
          _
        // Predicated region
        $region17: #{tpu_custom_call.1} parent=11 // pred_check
          %p206 = pneg %p89
        $region18: #{tpu_custom_call.1} parent=11 // pred_check_branch
          %208 = sbr.rel (%p206) target = $region20
        $region19: #{tpu_custom_call.1} parent=11 // pred_region
          %s210 = ssub.s32 64, 64
          %211 = vsyncadd [#allocation9], %s210
          %s213 = sshll.u32 [#allocation10], 4
          %s214 = int_to_ptr.vmem [resolvable:$true] %s213
          %216 = dma.hbm_to_vmem [thread:$0]  %s2, 64, %s214, [#allocation9]
        $region20: #{tpu_custom_call.1} parent=11 // pred_fallthru
          _
        // Predicated region
        $region21: #{tpu_custom_call.1} parent=11 // pred_check
          %p217 = pneg %p110
        $region22: #{tpu_custom_call.1} parent=11 // pred_check_branch
          %219 = sbr.rel (%p217) target = $region24
        $region23: #{tpu_custom_call.1} parent=11 // pred_region
          %s221 = ssub.s32 122880, 122880
          %222 = vsyncadd [#allocation12], %s221
          %s223 = sshll.u32 [#allocation11], 4
          %s224 = int_to_ptr.vmem [resolvable:$true] %s223
          %229 = dma.hbm_to_vmem [thread:$0]  %s3, 122880, %s224, [#allocation12], 256, 256, 16
        $region24: #{tpu_custom_call.1} parent=11 // pred_fallthru
          _
        // Predicated region
        $region25: #{tpu_custom_call.1} parent=11 // pred_check
          %p230 = pneg %p131
        $region26: #{tpu_custom_call.1} parent=11 // pred_check_branch
          %232 = sbr.rel (%p230) target = $region28
        $region27: #{tpu_custom_call.1} parent=11 // pred_region
          %s234 = ssub.s32 128, 128
          %235 = vsyncadd [#allocation12], %s234
          %s236 = sshll.u32 [#allocation13], 4
          %s237 = int_to_ptr.vmem [resolvable:$true] %s236
          %242 = dma.hbm_to_vmem [thread:$0]  %s4, 128, %s237, [#allocation12], 32, 32, 2
        $region28: #{tpu_custom_call.1} parent=11 // pred_fallthru
          _
        // Predicated region
        $region29: #{tpu_custom_call.1} parent=11 // pred_check
          %p243 = pneg %p152
        $region30: #{tpu_custom_call.1} parent=11 // pred_check_branch
          %245 = sbr.rel (%p243) target = $region32
        $region31: #{tpu_custom_call.1} parent=11 // pred_region
          %s247 = ssub.s32 16384, 16384
          %248 = vsyncadd [#allocation15], %s247
          %s249 = sshll.u32 [#allocation14], 4
          %s250 = int_to_ptr.vmem [resolvable:$true] %s249
          %255 = dma.hbm_to_vmem [thread:$0]  %s5, 16384, %s250, [#allocation15], 256, 256, 16
        $region32: #{tpu_custom_call.1} parent=11 // pred_fallthru
          _
      $region12: #{tpu_custom_call.1} parent=5 // pred_fallthru
        _
      %p256 = scmp.lt.s32.totalorder %s21, 2
      // Predicated region
      $region33: #{tpu_custom_call.1} parent=5 // pred_check
        %p257 = pneg %p256
      $region34: #{tpu_custom_call.1} parent=5 // pred_check_branch
        %259 = sbr.rel (%p257) target = $region36
      $region35: #{tpu_custom_call.1} parent=5 // pred_region
        // Predicated region
        $region37: #{tpu_custom_call.1} parent=35 // pred_check
          %p260 = pneg %p41
        $region38: #{tpu_custom_call.1} parent=35 // pred_check_branch
          %262 = sbr.rel (%p260) target = $region40
        $region39: #{tpu_custom_call.1} parent=35 // pred_region
          %s263 = sand.u32 %s31, 1
          %s264 = scalar_lea.sflag [#allocation6], %s263
          %s265 = sand.u32 %s31, 1
          %s266 = smul.addr %s265, 16
          %s267 = scalar_lea.vmem [#allocation5], %s266
          %s269 = ssub.s32 256, 256
          %270 = vsyncadd %s264, %s269
          %s271 = smul.addr %s21, 2
          %s272 = smul.addr %s271, 128
          %s273 = scalar_lea.hbm %s0, %s272
          %s274 = sshll.u32 %s267, 4
          %s275 = int_to_ptr.vmem [resolvable:$true] %s274
          %280 = dma.hbm_to_vmem [thread:$0]  %s273, 256, %s275, %s264, 128, 128, 8
        $region40: #{tpu_custom_call.1} parent=35 // pred_fallthru
          _
      $region36: #{tpu_custom_call.1} parent=5 // pred_fallthru
        _
      %p281 = scmp.le.s32.totalorder 1, %s21
      %p282 = scmp.lt.s32.totalorder %s21, 3
      %p283 = pnand %p281, %p282
      %p284 = pneg %p283
      // Predicated region
      $region41: #{tpu_custom_call.1} parent=5 // pred_check
        _
      $region42: #{tpu_custom_call.1} parent=5 // pred_check_branch
        %286 = sbr.rel (%p283) target = $region44
      $region43: #{tpu_custom_call.1} parent=5 // pred_region
        %s287 = ssub.s32 %s21, 1
        %s288 = sand.u32 %s34, 1
        %s289 = scalar_lea.sflag [#allocation6], %s288
        %s290 = sand.u32 %s34, 1
        %s291 = smul.addr %s290, 16
        %s292 = scalar_lea.vmem [#allocation5], %s291
        // Predicated region
        $region45: #{tpu_custom_call.1} parent=43 // pred_check
          %p293 = pneg %p47
        $region46: #{tpu_custom_call.1} parent=43 // pred_check_branch
          %295 = sbr.rel (%p293) target = $region48
        $region47: #{tpu_custom_call.1} parent=43 // pred_region
          %296 = dma.done %s289, 256
        $region48: #{tpu_custom_call.1} parent=43 // pred_fallthru
          _
        // Predicated region
        $region49: #{tpu_custom_call.1} parent=43 // pred_check
          %p297 = pneg %p68
        $region50: #{tpu_custom_call.1} parent=43 // pred_check_branch
          %299 = sbr.rel (%p297) target = $region52
        $region51: #{tpu_custom_call.1} parent=43 // pred_region
          %300 = dma.done [#allocation9], 13824
        $region52: #{tpu_custom_call.1} parent=43 // pred_fallthru
          _
        // Predicated region
        $region53: #{tpu_custom_call.1} parent=43 // pred_check
          %p301 = pneg %p89
        $region54: #{tpu_custom_call.1} parent=43 // pred_check_branch
          %303 = sbr.rel (%p301) target = $region56
        $region55: #{tpu_custom_call.1} parent=43 // pred_region
          %304 = dma.done [#allocation9], 64
        $region56: #{tpu_custom_call.1} parent=43 // pred_fallthru
          _
        // Predicated region
        $region57: #{tpu_custom_call.1} parent=43 // pred_check
          %p305 = pneg %p110
        $region58: #{tpu_custom_call.1} parent=43 // pred_check_branch
          %307 = sbr.rel (%p305) target = $region60
        $region59: #{tpu_custom_call.1} parent=43 // pred_region
          %308 = dma.done [#allocation12], 122880
        $region60: #{tpu_custom_call.1} parent=43 // pred_fallthru
          _
        // Predicated region
        $region61: #{tpu_custom_call.1} parent=43 // pred_check
          %p309 = pneg %p131
        $region62: #{tpu_custom_call.1} parent=43 // pred_check_branch
          %311 = sbr.rel (%p309) target = $region64
        $region63: #{tpu_custom_call.1} parent=43 // pred_region
          %312 = dma.done [#allocation12], 128
        $region64: #{tpu_custom_call.1} parent=43 // pred_fallthru
          _
        // Predicated region
        $region65: #{tpu_custom_call.1} parent=43 // pred_check
          %p313 = pneg %p152
        $region66: #{tpu_custom_call.1} parent=43 // pred_check_branch
          %315 = sbr.rel (%p313) target = $region68
        $region67: #{tpu_custom_call.1} parent=43 // pred_region
          %316 = dma.done [#allocation15], 16384
        $region68: #{tpu_custom_call.1} parent=43 // pred_fallthru
          _
        %s317 = sand.u32 %s34, 1
        %s318 = scalar_lea.sflag [#allocation6], %s317
        %s319 = sand.u32 %s34, 1
        %s320 = smul.addr %s319, 16
        %s321 = scalar_lea.vmem [#allocation5], %s320
        %p322 = pneg %p47
        %p323 = pneg %p44
        %p324 = pneg %p68
        %p325 = pneg %p65
        %p326 = pneg %p89
        %p327 = pneg %p86
        %p328 = pneg %p110
        %p329 = pneg %p107
        %p330 = pneg %p131
        %p331 = pneg %p128
        %p332 = pneg %p152
        %p333 = pneg %p149
        %p334 = pneg %p178
        %p335 = pneg %p175
        %s336 = sand.u32 %s165, 1
        %s337 = scalar_lea.sflag [#allocation7], %s336
        %s338 = sand.u32 %s165, 1
        %s339 = smul.addr %s338, 16
        %s340 = scalar_lea.vmem [#allocation16], %s339
        %vm341 = vcmask 588800
        %342 = vst.msk [vmem:[#allocation2] sm:$0xff] %vm341, 0.0
        %343 = vst.msk [vmem:[#allocation2 + $0x8] sm:$0xff] %vm341, 0.0
        %vm344 = vcmask 582656
        %345 = vst.msk [vmem:[#allocation2 + $0x10] sm:$0x3] %vm344, 0.0
        %v346 = vld [vmem:[%s292] sm:$0xff]
        %v347 = vld [vmem:[%s292 + $0x8] sm:$0xff]
        %350 = vrot.lane.b32.xlu0 %v346, 4
        %v351 = vpop.permute.xlu0 %350
        %352 = vrot.lane.b32.xlu0 %v347, 4
        %v353 = vpop.permute.xlu0 %352
        %vm356 = vcmask 556064
        %357 = vst.msk [vmem:[#allocation2 + $0x1] sm:$0xff] %vm356, %v351
        %358 = vst.msk [vmem:[#allocation2 + $0x9] sm:$0xff] %vm356, %v353
        %v359 = vld [vmem:[#allocation2] sm:$0xff]
        %v360 = vld [vmem:[#allocation2 + $0x8] sm:$0xff]
        %v361 = vld [vmem:[#allocation8] sm:$0xff]
        %v362 = vld [vmem:[#allocation8 + $0x8] sm:$0xff]
        %v363 = vld [vmem:[#allocation8 + $0x10] sm:$0xff]
        %v364 = vld [vmem:[#allocation8 + $0x18] sm:$0xff]
        %v365 = vld [vmem:[#allocation8 + $0x20] sm:$0xff]
        %v366 = vld [vmem:[#allocation8 + $0x28] sm:$0xff]
        %v367 = vld [vmem:[#allocation8 + $0x30] sm:$0xff]
        %v368 = vld [vmem:[#allocation8 + $0x38] sm:$0xff]
        %v369 = vld [vmem:[#allocation8 + $0x40] sm:$0xff]
        %v370 = vld [vmem:[#allocation8 + $0x48] sm:$0xff]
        %v371 = vld [vmem:[#allocation8 + $0x50] sm:$0xff]
        %v372 = vld [vmem:[#allocation8 + $0x58] sm:$0xff]
        %v373 = vld [vmem:[#allocation8 + $0x60] sm:$0xff]
        %v374 = vld [vmem:[#allocation8 + $0x68] sm:$0xff]
        %v375 = vld [vmem:[#allocation8 + $0x70] sm:$0xff]
        %v376 = vld [vmem:[#allocation8 + $0x78] sm:$0xff]
        %v377 = vld [vmem:[#allocation8 + $0x80] sm:$0xff]
        %v378 = vld [vmem:[#allocation8 + $0x88] sm:$0xff]
        %v379 = vld [vmem:[#allocation8 + $0x90] sm:$0xff]
        %v380 = vld [vmem:[#allocation8 + $0x98] sm:$0xff]
        %v381 = vld [vmem:[#allocation8 + $0xa0] sm:$0xff]
        %v382 = vld [vmem:[#allocation8 + $0xa8] sm:$0xff]
        %v383 = vld [vmem:[#allocation8 + $0xb0] sm:$0xff]
        %v384 = vld [vmem:[#allocation8 + $0xb8] sm:$0xff]
        %v385 = vld [vmem:[#allocation8 + $0xc0] sm:$0xff]
        %v386 = vld [vmem:[#allocation8 + $0xc8] sm:$0xff]
        %v387 = vld [vmem:[#allocation8 + $0xd0] sm:$0xff]
        %v388 = vld [vmem:[#allocation8 + $0xd8] sm:$0xff]
        %v389 = vld [vmem:[#allocation8 + $0xe0] sm:$0xff]
        %v390 = vld [vmem:[#allocation8 + $0xe8] sm:$0xff]
        %v391 = vld [vmem:[#allocation8 + $0xf0] sm:$0xff]
        %v392 = vld [vmem:[#allocation8 + $0xf8] sm:$0xff]
        %v393 = vld [vmem:[#allocation8 + $0x100] sm:$0xff]
        %v394 = vld [vmem:[#allocation8 + $0x108] sm:$0xff]
        %v395 = vld [vmem:[#allocation8 + $0x110] sm:$0xff]
        %v396 = vld [vmem:[#allocation8 + $0x118] sm:$0xff]
        %v397 = vld [vmem:[#allocation2 + $0x1] sm:$0xff]
        %v398 = vld [vmem:[#allocation2 + $0x9] sm:$0xff]
        %s399 = scalar_lea.vmem [#allocation8], 288
        %v400 = vld [vmem:[%s399] sm:$0xff]
        %v401 = vld [vmem:[%s399 + $0x8] sm:$0xff]
        %v402 = vld [vmem:[%s399 + $0x10] sm:$0xff]
        %v403 = vld [vmem:[%s399 + $0x18] sm:$0xff]
        %v404 = vld [vmem:[%s399 + $0x20] sm:$0xff]
        %v405 = vld [vmem:[%s399 + $0x28] sm:$0xff]
        %v406 = vld [vmem:[%s399 + $0x30] sm:$0xff]
        %v407 = vld [vmem:[%s399 + $0x38] sm:$0xff]
        %v408 = vld [vmem:[%s399 + $0x40] sm:$0xff]
        %v409 = vld [vmem:[%s399 + $0x48] sm:$0xff]
        %v410 = vld [vmem:[%s399 + $0x50] sm:$0xff]
        %v411 = vld [vmem:[%s399 + $0x58] sm:$0xff]
        %v412 = vld [vmem:[%s399 + $0x60] sm:$0xff]
        %v413 = vld [vmem:[%s399 + $0x68] sm:$0xff]
        %v414 = vld [vmem:[%s399 + $0x70] sm:$0xff]
        %v415 = vld [vmem:[%s399 + $0x78] sm:$0xff]
        %v416 = vld [vmem:[%s399 + $0x80] sm:$0xff]
        %v417 = vld [vmem:[%s399 + $0x88] sm:$0xff]
        %v418 = vld [vmem:[%s399 + $0x90] sm:$0xff]
        %v419 = vld [vmem:[%s399 + $0x98] sm:$0xff]
        %v420 = vld [vmem:[%s399 + $0xa0] sm:$0xff]
        %v421 = vld [vmem:[%s399 + $0xa8] sm:$0xff]
        %v422 = vld [vmem:[%s399 + $0xb0] sm:$0xff]
        %v423 = vld [vmem:[%s399 + $0xb8] sm:$0xff]
        %v424 = vld [vmem:[%s399 + $0xc0] sm:$0xff]
        %v425 = vld [vmem:[%s399 + $0xc8] sm:$0xff]
        %v426 = vld [vmem:[%s399 + $0xd0] sm:$0xff]
        %v427 = vld [vmem:[%s399 + $0xd8] sm:$0xff]
        %v428 = vld [vmem:[%s399 + $0xe0] sm:$0xff]
        %v429 = vld [vmem:[%s399 + $0xe8] sm:$0xff]
        %v430 = vld [vmem:[%s399 + $0xf0] sm:$0xff]
        %v431 = vld [vmem:[%s399 + $0xf8] sm:$0xff]
        %v432 = vld [vmem:[%s399 + $0x100] sm:$0xff]
        %v433 = vld [vmem:[%s399 + $0x108] sm:$0xff]
        %v434 = vld [vmem:[%s399 + $0x110] sm:$0xff]
        %v435 = vld [vmem:[%s399 + $0x118] sm:$0xff]
        %v437 = vsel %vm341, %v397, 0
        %v440 = vsel %vm341, %v398, 0
        %442 = vmatprep.subr.mxu0 0.0
        %443 = vmatpush1.msra.mxu0 0.0
        %444 = vmatprep.subr.mxu0 0.0
        %445 = vmatpush1.msra.mxu0 0.0
        %446 = vmatprep.subr.mxu0 0.0
        %447 = vmatpush1.msra.mxu0 0.0
        %448 = vmatprep.subr.mxu0 0.0
        %449 = vmatpush1.msra.mxu0 0.0
        %450 = vmatprep.subr.mxu0 0.0
        %451 = vmatpush1.msra.mxu0 0.0
        %452 = vmatprep.subr.mxu0 0.0
        %453 = vmatpush1.msra.mxu0 0.0
        %454 = vmatprep.subr.mxu0 0.0
        %455 = vmatpush1.msra.mxu0 0.0
        %456 = vmatprep.subr.mxu0 %v433
        %457 = vmatpush1.msra.mxu0 %v432
        %458 = vmatprep.subr.mxu0 %v429
        %459 = vmatpush1.msra.mxu0 %v428
        %460 = vmatprep.subr.mxu0 %v425
        %461 = vmatpush1.msra.mxu0 %v424
        %462 = vmatprep.subr.mxu0 %v421
        %463 = vmatpush1.msra.mxu0 %v420
        %464 = vmatprep.subr.mxu0 %v417
        %465 = vmatpush1.msra.mxu0 %v416
        %466 = vmatprep.subr.mxu0 %v413
        %467 = vmatpush1.msra.mxu0 %v412
        %468 = vmatprep.subr.mxu0 %v409
        %469 = vmatpush1.msra.mxu0 %v408
        %470 = vmatprep.subr.mxu0 %v405
        %471 = vmatpush1.msra.mxu0 %v404
        %472 = vmatprep.subr.mxu0 %v401
        %473 = vmatpush1.msra.mxu0 %v400
        %474 = vmatprep.subr.mxu0 0.0
        %475 = vmatpush2.msra.mxu0 0.0
        %476 = vmatprep.subr.mxu0 0.0
        %477 = vmatpush2.msra.mxu0 0.0
        %478 = vmatprep.subr.mxu0 0.0
        %479 = vmatpush2.msra.mxu0 0.0
        %480 = vmatprep.subr.mxu0 0.0
        %481 = vmatpush2.msra.mxu0 0.0
        %482 = vmatprep.subr.mxu0 0.0
        %483 = vmatpush2.msra.mxu0 0.0
        %484 = vmatprep.subr.mxu0 0.0
        %485 = vmatpush2.msra.mxu0 0.0
        %486 = vmatprep.subr.mxu0 0.0
        %487 = vmatpush2.msra.mxu0 0.0
        %488 = vmatprep.subr.mxu0 0.0
        %489 = vmatpush2.msra.mxu0 0.0
        %490 = vmatprep.subr.mxu0 0.0
        %491 = vmatpush2.msra.mxu0 0.0
        %492 = vmatprep.subr.mxu0 0.0
        %493 = vmatpush2.msra.mxu0 0.0
        %494 = vmatprep.subr.mxu0 0.0
        %495 = vmatpush2.msra.mxu0 0.0
        %496 = vmatprep.subr.mxu0 0.0
        %497 = vmatpush2.msra.mxu0 0.0
        %498 = vmatprep.subr.mxu0 0.0
        %499 = vmatpush2.msra.mxu0 0.0
        %500 = vmatprep.subr.mxu0 0.0
        %501 = vmatpush2.msra.mxu0 0.0
        %502 = vmatprep.subr.mxu0 0.0
        %503 = vmatpush2.msra.mxu0 0.0
        %504 = vmatprep.subr.mxu0 0.0
        %505 = vmatpush2.msra.mxu0 0.0
        %506 = vmatprep.mubr.f32.mxu0 0.0
        %507 = vmatmul.mubr.f32.gmra.mxu0 %v437
        %v508 = vpop.f32.mrf.mxu0
        %v509 = vadd.f32 0.0, %v508
        %v510 = vpop.f32.mrf.mxu0
        %v511 = vadd.f32 0.0, %v510
        %512 = vmatprep.mubr.f32.mxu0 0.0
        %513 = vmatmul.mubr.f32.gmra.mxu0 %v440
        %v514 = vpop.f32.mrf.mxu0
        %v515 = vadd.f32 0.0, %v514
        %v516 = vpop.f32.mrf.mxu0
        %v517 = vadd.f32 0.0, %v516
        %518 = vdwg.mxu0
        %519 = vmatprep.subr.mxu0 0.0
        %520 = vmatpush1.msra.mxu0 0.0
        %521 = vmatprep.subr.mxu0 0.0
        %522 = vmatpush1.msra.mxu0 0.0
        %523 = vmatprep.subr.mxu0 0.0
        %524 = vmatpush1.msra.mxu0 0.0
        %525 = vmatprep.subr.mxu0 0.0
        %526 = vmatpush1.msra.mxu0 0.0
        %527 = vmatprep.subr.mxu0 0.0
        %528 = vmatpush1.msra.mxu0 0.0
        %529 = vmatprep.subr.mxu0 0.0
        %530 = vmatpush1.msra.mxu0 0.0
        %531 = vmatprep.subr.mxu0 0.0
        %532 = vmatpush1.msra.mxu0 0.0
        %533 = vmatprep.subr.mxu0 %v435
        %534 = vmatpush1.msra.mxu0 %v434
        %535 = vmatprep.subr.mxu0 %v431
        %536 = vmatpush1.msra.mxu0 %v430
        %537 = vmatprep.subr.mxu0 %v427
        %538 = vmatpush1.msra.mxu0 %v426
        %539 = vmatprep.subr.mxu0 %v423
        %540 = vmatpush1.msra.mxu0 %v422
        %541 = vmatprep.subr.mxu0 %v419
        %542 = vmatpush1.msra.mxu0 %v418
        %543 = vmatprep.subr.mxu0 %v415
        %544 = vmatpush1.msra.mxu0 %v414
        %545 = vmatprep.subr.mxu0 %v411
        %546 = vmatpush1.msra.mxu0 %v410
        %547 = vmatprep.subr.mxu0 %v407
        %548 = vmatpush1.msra.mxu0 %v406
        %549 = vmatprep.subr.mxu0 %v403
        %550 = vmatpush1.msra.mxu0 %v402
        %551 = vmatprep.subr.mxu0 0.0
        %552 = vmatpush2.msra.mxu0 0.0
        %553 = vmatprep.subr.mxu0 0.0
        %554 = vmatpush2.msra.mxu0 0.0
        %555 = vmatprep.subr.mxu0 0.0
        %556 = vmatpush2.msra.mxu0 0.0
        %557 = vmatprep.subr.mxu0 0.0
        %558 = vmatpush2.msra.mxu0 0.0
        %559 = vmatprep.subr.mxu0 0.0
        %560 = vmatpush2.msra.mxu0 0.0
        %561 = vmatprep.subr.mxu0 0.0
        %562 = vmatpush2.msra.mxu0 0.0
        %563 = vmatprep.subr.mxu0 0.0
        %564 = vmatpush2.msra.mxu0 0.0
        %565 = vmatprep.subr.mxu0 0.0
        %566 = vmatpush2.msra.mxu0 0.0
        %567 = vmatprep.subr.mxu0 0.0
        %568 = vmatpush2.msra.mxu0 0.0
        %569 = vmatprep.subr.mxu0 0.0
        %570 = vmatpush2.msra.mxu0 0.0
        %571 = vmatprep.subr.mxu0 0.0
        %572 = vmatpush2.msra.mxu0 0.0
        %573 = vmatprep.subr.mxu0 0.0
        %574 = vmatpush2.msra.mxu0 0.0
        %575 = vmatprep.subr.mxu0 0.0
        %576 = vmatpush2.msra.mxu0 0.0
        %577 = vmatprep.subr.mxu0 0.0
        %578 = vmatpush2.msra.mxu0 0.0
        %579 = vmatprep.subr.mxu0 0.0
        %580 = vmatpush2.msra.mxu0 0.0
        %581 = vmatprep.subr.mxu0 0.0
        %582 = vmatpush2.msra.mxu0 0.0
        %583 = vmatprep.mubr.f32.mxu0 0.0
        %584 = vmatmul.mubr.f32.gmra.mxu0 %v437
        %v585 = vpop.f32.mrf.mxu0
        %v586 = vadd.f32 0.0, %v585
        %v587 = vpop.f32.mrf.mxu0
        %v588 = vadd.f32 0.0, %v587
        %589 = vmatprep.mubr.f32.mxu0 0.0
        %590 = vmatmul.mubr.f32.gmra.mxu0 %v440
        %v591 = vpop.f32.mrf.mxu0
        %v592 = vadd.f32 0.0, %v591
        %v593 = vpop.f32.mrf.mxu0
        %v594 = vadd.f32 0.0, %v593
        %595 = vdwg.mxu0
        %v597 = vsel %vm341, %v359, 0
        %v600 = vsel %vm341, %v360, 0
        %602 = vmatprep.subr.mxu0 0.0
        %603 = vmatpush1.msra.mxu0 0.0
        %604 = vmatprep.subr.mxu0 0.0
        %605 = vmatpush1.msra.mxu0 0.0
        %606 = vmatprep.subr.mxu0 0.0
        %607 = vmatpush1.msra.mxu0 0.0
        %608 = vmatprep.subr.mxu0 0.0
        %609 = vmatpush1.msra.mxu0 0.0
        %610 = vmatprep.subr.mxu0 0.0
        %611 = vmatpush1.msra.mxu0 0.0
        %612 = vmatprep.subr.mxu0 0.0
        %613 = vmatpush1.msra.mxu0 0.0
        %614 = vmatprep.subr.mxu0 0.0
        %615 = vmatpush1.msra.mxu0 0.0
        %616 = vmatprep.subr.mxu0 %v394
        %617 = vmatpush1.msra.mxu0 %v393
        %618 = vmatprep.subr.mxu0 %v390
        %619 = vmatpush1.msra.mxu0 %v389
        %620 = vmatprep.subr.mxu0 %v386
        %621 = vmatpush1.msra.mxu0 %v385
        %622 = vmatprep.subr.mxu0 %v382
        %623 = vmatpush1.msra.mxu0 %v381
        %624 = vmatprep.subr.mxu0 %v378
        %625 = vmatpush1.msra.mxu0 %v377
        %626 = vmatprep.subr.mxu0 %v374
        %627 = vmatpush1.msra.mxu0 %v373
        %628 = vmatprep.subr.mxu0 %v370
        %629 = vmatpush1.msra.mxu0 %v369
        %630 = vmatprep.subr.mxu0 %v366
        %631 = vmatpush1.msra.mxu0 %v365
        %632 = vmatprep.subr.mxu0 %v362
        %633 = vmatpush1.msra.mxu0 %v361
        %634 = vmatprep.subr.mxu0 0.0
        %635 = vmatpush2.msra.mxu0 0.0
        %636 = vmatprep.subr.mxu0 0.0
        %637 = vmatpush2.msra.mxu0 0.0
        %638 = vmatprep.subr.mxu0 0.0
        %639 = vmatpush2.msra.mxu0 0.0
        %640 = vmatprep.subr.mxu0 0.0
        %641 = vmatpush2.msra.mxu0 0.0
        %642 = vmatprep.subr.mxu0 0.0
        %643 = vmatpush2.msra.mxu0 0.0
        %644 = vmatprep.subr.mxu0 0.0
        %645 = vmatpush2.msra.mxu0 0.0
        %646 = vmatprep.subr.mxu0 0.0
        %647 = vmatpush2.msra.mxu0 0.0
        %648 = vmatprep.subr.mxu0 0.0
        %649 = vmatpush2.msra.mxu0 0.0
        %650 = vmatprep.subr.mxu0 0.0
        %651 = vmatpush2.msra.mxu0 0.0
        %652 = vmatprep.subr.mxu0 0.0
        %653 = vmatpush2.msra.mxu0 0.0
        %654 = vmatprep.subr.mxu0 0.0
        %655 = vmatpush2.msra.mxu0 0.0
        %656 = vmatprep.subr.mxu0 0.0
        %657 = vmatpush2.msra.mxu0 0.0
        %658 = vmatprep.subr.mxu0 0.0
        %659 = vmatpush2.msra.mxu0 0.0
        %660 = vmatprep.subr.mxu0 0.0
        %661 = vmatpush2.msra.mxu0 0.0
        %662 = vmatprep.subr.mxu0 0.0
        %663 = vmatpush2.msra.mxu0 0.0
        %664 = vmatprep.subr.mxu0 0.0
        %665 = vmatpush2.msra.mxu0 0.0
        %666 = vmatprep.mubr.f32.mxu0 0.0
        %667 = vmatmul.mubr.f32.gmra.mxu0 %v597
        %v668 = vpop.f32.mrf.mxu0
        %v669 = vadd.f32 %v509, %v668
        %v670 = vpop.f32.mrf.mxu0
        %v671 = vadd.f32 %v511, %v670
        %672 = vmatprep.mubr.f32.mxu0 0.0
        %673 = vmatmul.mubr.f32.gmra.mxu0 %v600
        %v674 = vpop.f32.mrf.mxu0
        %v675 = vadd.f32 %v515, %v674
        %v676 = vpop.f32.mrf.mxu0
        %v677 = vadd.f32 %v517, %v676
        %678 = vdwg.mxu0
        %679 = vmatprep.subr.mxu0 0.0
        %680 = vmatpush1.msra.mxu0 0.0
        %681 = vmatprep.subr.mxu0 0.0
        %682 = vmatpush1.msra.mxu0 0.0
        %683 = vmatprep.subr.mxu0 0.0
        %684 = vmatpush1.msra.mxu0 0.0
        %685 = vmatprep.subr.mxu0 0.0
        %686 = vmatpush1.msra.mxu0 0.0
        %687 = vmatprep.subr.mxu0 0.0
        %688 = vmatpush1.msra.mxu0 0.0
        %689 = vmatprep.subr.mxu0 0.0
        %690 = vmatpush1.msra.mxu0 0.0
        %691 = vmatprep.subr.mxu0 0.0
        %692 = vmatpush1.msra.mxu0 0.0
        %693 = vmatprep.subr.mxu0 %v396
        %694 = vmatpush1.msra.mxu0 %v395
        %695 = vmatprep.subr.mxu0 %v392
        %696 = vmatpush1.msra.mxu0 %v391
        %697 = vmatprep.subr.mxu0 %v388
        %698 = vmatpush1.msra.mxu0 %v387
        %699 = vmatprep.subr.mxu0 %v384
        %700 = vmatpush1.msra.mxu0 %v383
        %701 = vmatprep.subr.mxu0 %v380
        %702 = vmatpush1.msra.mxu0 %v379
        %703 = vmatprep.subr.mxu0 %v376
        %704 = vmatpush1.msra.mxu0 %v375
        %705 = vmatprep.subr.mxu0 %v372
        %706 = vmatpush1.msra.mxu0 %v371
        %707 = vmatprep.subr.mxu0 %v368
        %708 = vmatpush1.msra.mxu0 %v367
        %709 = vmatprep.subr.mxu0 %v364
        %710 = vmatpush1.msra.mxu0 %v363
        %711 = vmatprep.subr.mxu0 0.0
        %712 = vmatpush2.msra.mxu0 0.0
        %713 = vmatprep.subr.mxu0 0.0
        %714 = vmatpush2.msra.mxu0 0.0
        %715 = vmatprep.subr.mxu0 0.0
        %716 = vmatpush2.msra.mxu0 0.0
        %717 = vmatprep.subr.mxu0 0.0
        %718 = vmatpush2.msra.mxu0 0.0
        %719 = vmatprep.subr.mxu0 0.0
        %720 = vmatpush2.msra.mxu0 0.0
        %721 = vmatprep.subr.mxu0 0.0
        %722 = vmatpush2.msra.mxu0 0.0
        %723 = vmatprep.subr.mxu0 0.0
        %724 = vmatpush2.msra.mxu0 0.0
        %725 = vmatprep.subr.mxu0 0.0
        %726 = vmatpush2.msra.mxu0 0.0
        %727 = vmatprep.subr.mxu0 0.0
        %728 = vmatpush2.msra.mxu0 0.0
        %729 = vmatprep.subr.mxu0 0.0
        %730 = vmatpush2.msra.mxu0 0.0
        %731 = vmatprep.subr.mxu0 0.0
        %732 = vmatpush2.msra.mxu0 0.0
        %733 = vmatprep.subr.mxu0 0.0
        %734 = vmatpush2.msra.mxu0 0.0
        %735 = vmatprep.subr.mxu0 0.0
        %736 = vmatpush2.msra.mxu0 0.0
        %737 = vmatprep.subr.mxu0 0.0
        %738 = vmatpush2.msra.mxu0 0.0
        %739 = vmatprep.subr.mxu0 0.0
        %740 = vmatpush2.msra.mxu0 0.0
        %741 = vmatprep.subr.mxu0 0.0
        %742 = vmatpush2.msra.mxu0 0.0
        %743 = vmatprep.mubr.f32.mxu0 0.0
        %744 = vmatmul.mubr.f32.gmra.mxu0 %v597
        %v745 = vpop.f32.mrf.mxu0
        %v746 = vadd.f32 %v586, %v745
        %v747 = vpop.f32.mrf.mxu0
        %v748 = vadd.f32 %v588, %v747
        %749 = vmatprep.mubr.f32.mxu0 0.0
        %750 = vmatmul.mubr.f32.gmra.mxu0 %v600
        %v751 = vpop.f32.mrf.mxu0
        %v752 = vadd.f32 %v592, %v751
        %v753 = vpop.f32.mrf.mxu0
        %v754 = vadd.f32 %v594, %v753
        %755 = vdwg.mxu0
        %v756 = vld [vmem:[#allocation2 + $0x2] sm:$0xff]
        %v757 = vld [vmem:[#allocation2 + $0xa] sm:$0xff]
        %s758 = scalar_lea.vmem [#allocation8], 576
        %v759 = vld [vmem:[%s758] sm:$0xff]
        %v760 = vld [vmem:[%s758 + $0x8] sm:$0xff]
        %v761 = vld [vmem:[%s758 + $0x10] sm:$0xff]
        %v762 = vld [vmem:[%s758 + $0x18] sm:$0xff]
        %v763 = vld [vmem:[%s758 + $0x20] sm:$0xff]
        %v764 = vld [vmem:[%s758 + $0x28] sm:$0xff]
        %v765 = vld [vmem:[%s758 + $0x30] sm:$0xff]
        %v766 = vld [vmem:[%s758 + $0x38] sm:$0xff]
        %v767 = vld [vmem:[%s758 + $0x40] sm:$0xff]
        %v768 = vld [vmem:[%s758 + $0x48] sm:$0xff]
        %v769 = vld [vmem:[%s758 + $0x50] sm:$0xff]
        %v770 = vld [vmem:[%s758 + $0x58] sm:$0xff]
        %v771 = vld [vmem:[%s758 + $0x60] sm:$0xff]
        %v772 = vld [vmem:[%s758 + $0x68] sm:$0xff]
        %v773 = vld [vmem:[%s758 + $0x70] sm:$0xff]
        %v774 = vld [vmem:[%s758 + $0x78] sm:$0xff]
        %v775 = vld [vmem:[%s758 + $0x80] sm:$0xff]
        %v776 = vld [vmem:[%s758 + $0x88] sm:$0xff]
        %v777 = vld [vmem:[%s758 + $0x90] sm:$0xff]
        %v778 = vld [vmem:[%s758 + $0x98] sm:$0xff]
        %v779 = vld [vmem:[%s758 + $0xa0] sm:$0xff]
        %v780 = vld [vmem:[%s758 + $0xa8] sm:$0xff]
        %v781 = vld [vmem:[%s758 + $0xb0] sm:$0xff]
        %v782 = vld [vmem:[%s758 + $0xb8] sm:$0xff]
        %v783 = vld [vmem:[%s758 + $0xc0] sm:$0xff]
        %v784 = vld [vmem:[%s758 + $0xc8] sm:$0xff]
        %v785 = vld [vmem:[%s758 + $0xd0] sm:$0xff]
        %v786 = vld [vmem:[%s758 + $0xd8] sm:$0xff]
        %v787 = vld [vmem:[%s758 + $0xe0] sm:$0xff]
        %v788 = vld [vmem:[%s758 + $0xe8] sm:$0xff]
        %v789 = vld [vmem:[%s758 + $0xf0] sm:$0xff]
        %v790 = vld [vmem:[%s758 + $0xf8] sm:$0xff]
        %v791 = vld [vmem:[%s758 + $0x100] sm:$0xff]
        %v792 = vld [vmem:[%s758 + $0x108] sm:$0xff]
        %v793 = vld [vmem:[%s758 + $0x110] sm:$0xff]
        %v794 = vld [vmem:[%s758 + $0x118] sm:$0xff]
        %v796 = vsel %vm341, %v756, 0
        %v799 = vsel %vm341, %v757, 0
        %801 = vmatprep.subr.mxu0 0.0
        %802 = vmatpush1.msra.mxu0 0.0
        %803 = vmatprep.subr.mxu0 0.0
        %804 = vmatpush1.msra.mxu0 0.0
        %805 = vmatprep.subr.mxu0 0.0
        %806 = vmatpush1.msra.mxu0 0.0
        %807 = vmatprep.subr.mxu0 0.0
        %808 = vmatpush1.msra.mxu0 0.0
        %809 = vmatprep.subr.mxu0 0.0
        %810 = vmatpush1.msra.mxu0 0.0
        %811 = vmatprep.subr.mxu0 0.0
        %812 = vmatpush1.msra.mxu0 0.0
        %813 = vmatprep.subr.mxu0 0.0
        %814 = vmatpush1.msra.mxu0 0.0
        %815 = vmatprep.subr.mxu0 %v792
        %816 = vmatpush1.msra.mxu0 %v791
        %817 = vmatprep.subr.mxu0 %v788
        %818 = vmatpush1.msra.mxu0 %v787
        %819 = vmatprep.subr.mxu0 %v784
        %820 = vmatpush1.msra.mxu0 %v783
        %821 = vmatprep.subr.mxu0 %v780
        %822 = vmatpush1.msra.mxu0 %v779
        %823 = vmatprep.subr.mxu0 %v776
        %824 = vmatpush1.msra.mxu0 %v775
        %825 = vmatprep.subr.mxu0 %v772
        %826 = vmatpush1.msra.mxu0 %v771
        %827 = vmatprep.subr.mxu0 %v768
        %828 = vmatpush1.msra.mxu0 %v767
        %829 = vmatprep.subr.mxu0 %v764
        %830 = vmatpush1.msra.mxu0 %v763
        %831 = vmatprep.subr.mxu0 %v760
        %832 = vmatpush1.msra.mxu0 %v759
        %833 = vmatprep.subr.mxu0 0.0
        %834 = vmatpush2.msra.mxu0 0.0
        %835 = vmatprep.subr.mxu0 0.0
        %836 = vmatpush2.msra.mxu0 0.0
        %837 = vmatprep.subr.mxu0 0.0
        %838 = vmatpush2.msra.mxu0 0.0
        %839 = vmatprep.subr.mxu0 0.0
        %840 = vmatpush2.msra.mxu0 0.0
        %841 = vmatprep.subr.mxu0 0.0
        %842 = vmatpush2.msra.mxu0 0.0
        %843 = vmatprep.subr.mxu0 0.0
        %844 = vmatpush2.msra.mxu0 0.0
        %845 = vmatprep.subr.mxu0 0.0
        %846 = vmatpush2.msra.mxu0 0.0
        %847 = vmatprep.subr.mxu0 0.0
        %848 = vmatpush2.msra.mxu0 0.0
        %849 = vmatprep.subr.mxu0 0.0
        %850 = vmatpush2.msra.mxu0 0.0
        %851 = vmatprep.subr.mxu0 0.0
        %852 = vmatpush2.msra.mxu0 0.0
        %853 = vmatprep.subr.mxu0 0.0
        %854 = vmatpush2.msra.mxu0 0.0
        %855 = vmatprep.subr.mxu0 0.0
        %856 = vmatpush2.msra.mxu0 0.0
        %857 = vmatprep.subr.mxu0 0.0
        %858 = vmatpush2.msra.mxu0 0.0
        %859 = vmatprep.subr.mxu0 0.0
        %860 = vmatpush2.msra.mxu0 0.0
        %861 = vmatprep.subr.mxu0 0.0
        %862 = vmatpush2.msra.mxu0 0.0
        %863 = vmatprep.subr.mxu0 0.0
        %864 = vmatpush2.msra.mxu0 0.0
        %865 = vmatprep.mubr.f32.mxu0 0.0
        %866 = vmatmul.mubr.f32.gmra.mxu0 %v796
        %v867 = vpop.f32.mrf.mxu0
        %v868 = vadd.f32 0.0, %v867
        %v869 = vpop.f32.mrf.mxu0
        %v870 = vadd.f32 0.0, %v869
        %871 = vmatprep.mubr.f32.mxu0 0.0
        %872 = vmatmul.mubr.f32.gmra.mxu0 %v799
        %v873 = vpop.f32.mrf.mxu0
        %v874 = vadd.f32 0.0, %v873
        %v875 = vpop.f32.mrf.mxu0
        %v876 = vadd.f32 0.0, %v875
        %877 = vdwg.mxu0
        %878 = vmatprep.subr.mxu0 0.0
        %879 = vmatpush1.msra.mxu0 0.0
        %880 = vmatprep.subr.mxu0 0.0
        %881 = vmatpush1.msra.mxu0 0.0
        %882 = vmatprep.subr.mxu0 0.0
        %883 = vmatpush1.msra.mxu0 0.0
        %884 = vmatprep.subr.mxu0 0.0
        %885 = vmatpush1.msra.mxu0 0.0
        %886 = vmatprep.subr.mxu0 0.0
        %887 = vmatpush1.msra.mxu0 0.0
        %888 = vmatprep.subr.mxu0 0.0
        %889 = vmatpush1.msra.mxu0 0.0
        %890 = vmatprep.subr.mxu0 0.0
        %891 = vmatpush1.msra.mxu0 0.0
        %892 = vmatprep.subr.mxu0 %v794
        %893 = vmatpush1.msra.mxu0 %v793
        %894 = vmatprep.subr.mxu0 %v790
        %895 = vmatpush1.msra.mxu0 %v789
        %896 = vmatprep.subr.mxu0 %v786
        %897 = vmatpush1.msra.mxu0 %v785
        %898 = vmatprep.subr.mxu0 %v782
        %899 = vmatpush1.msra.mxu0 %v781
        %900 = vmatprep.subr.mxu0 %v778
        %901 = vmatpush1.msra.mxu0 %v777
        %902 = vmatprep.subr.mxu0 %v774
        %903 = vmatpush1.msra.mxu0 %v773
        %904 = vmatprep.subr.mxu0 %v770
        %905 = vmatpush1.msra.mxu0 %v769
        %906 = vmatprep.subr.mxu0 %v766
        %907 = vmatpush1.msra.mxu0 %v765
        %908 = vmatprep.subr.mxu0 %v762
        %909 = vmatpush1.msra.mxu0 %v761
        %910 = vmatprep.subr.mxu0 0.0
        %911 = vmatpush2.msra.mxu0 0.0
        %912 = vmatprep.subr.mxu0 0.0
        %913 = vmatpush2.msra.mxu0 0.0
        %914 = vmatprep.subr.mxu0 0.0
        %915 = vmatpush2.msra.mxu0 0.0
        %916 = vmatprep.subr.mxu0 0.0
        %917 = vmatpush2.msra.mxu0 0.0
        %918 = vmatprep.subr.mxu0 0.0
        %919 = vmatpush2.msra.mxu0 0.0
        %920 = vmatprep.subr.mxu0 0.0
        %921 = vmatpush2.msra.mxu0 0.0
        %922 = vmatprep.subr.mxu0 0.0
        %923 = vmatpush2.msra.mxu0 0.0
        %924 = vmatprep.subr.mxu0 0.0
        %925 = vmatpush2.msra.mxu0 0.0
        %926 = vmatprep.subr.mxu0 0.0
        %927 = vmatpush2.msra.mxu0 0.0
        %928 = vmatprep.subr.mxu0 0.0
        %929 = vmatpush2.msra.mxu0 0.0
        %930 = vmatprep.subr.mxu0 0.0
        %931 = vmatpush2.msra.mxu0 0.0
        %932 = vmatprep.subr.mxu0 0.0
        %933 = vmatpush2.msra.mxu0 0.0
        %934 = vmatprep.subr.mxu0 0.0
        %935 = vmatpush2.msra.mxu0 0.0
        %936 = vmatprep.subr.mxu0 0.0
        %937 = vmatpush2.msra.mxu0 0.0
        %938 = vmatprep.subr.mxu0 0.0
        %939 = vmatpush2.msra.mxu0 0.0
        %940 = vmatprep.subr.mxu0 0.0
        %941 = vmatpush2.msra.mxu0 0.0
        %942 = vmatprep.mubr.f32.mxu0 0.0
        %943 = vmatmul.mubr.f32.gmra.mxu0 %v796
        %v944 = vpop.f32.mrf.mxu0
        %v945 = vadd.f32 0.0, %v944
        %v946 = vpop.f32.mrf.mxu0
        %v947 = vadd.f32 0.0, %v946
        %948 = vmatprep.mubr.f32.mxu0 0.0
        %949 = vmatmul.mubr.f32.gmra.mxu0 %v799
        %v950 = vpop.f32.mrf.mxu0
        %v951 = vadd.f32 0.0, %v950
        %v952 = vpop.f32.mrf.mxu0
        %v953 = vadd.f32 0.0, %v952
        %954 = vdwg.mxu0
        %v955 = vadd.f32 %v669, %v868
        %v956 = vadd.f32 %v671, %v870
        %v957 = vadd.f32 %v746, %v945
        %v958 = vadd.f32 %v748, %v947
        %v959 = vadd.f32 %v675, %v874
        %v960 = vadd.f32 %v677, %v876
        %v961 = vadd.f32 %v752, %v951
        %v962 = vadd.f32 %v754, %v953
        %v963 = vld [vmem:[#allocation10] sm:$0xf]
        %v965 = vlaneseq
        %v966 = vshrl.u32 %v965, 7
        %v967 = vsub.s32 0, %v966
        %v968 = vrot.slane %v963, %v967
        %v969 = vlaneseq
        %v970 = vshrl.u32 %v969, 7
        %v971 = vsub.s32 1, %v970
        %v972 = vrot.slane %v963, %v971
        %v973 = vlaneseq
        %v974 = vshrl.u32 %v973, 7
        %v975 = vsub.s32 2, %v974
        %v976 = vrot.slane %v963, %v975
        %v977 = vlaneseq
        %v978 = vshrl.u32 %v977, 7
        %v979 = vsub.s32 3, %v978
        %v980 = vrot.slane %v963, %v979
        %v985 = vadd.f32 %v955, %v968
        %v986 = vadd.f32 %v956, %v972
        %v987 = vadd.f32 %v957, %v976
        %v988 = vadd.f32 %v958, %v980
        %v989 = vadd.f32 %v959, %v968
        %v990 = vadd.f32 %v960, %v972
        %v991 = vadd.f32 %v961, %v976
        %v992 = vadd.f32 %v962, %v980
        %v993 = vlaneseq
        %vm994 = vcmp.ge.s32.totalorder %v993, 0
        %vm995 = vcmp.lt.s32.totalorder %v993, 512
        %vm996 = vmand %vm994, %vm995
        %997 = vst.msk [vmem:[#allocation3] ss:$8 sm:$0xf] %vm996, -inf
        %998 = vst.msk [vmem:[#allocation3] ss:$8 sm:$0x0] %vm996, -inf
        %vm1007 = vcmask 1040384
        %v1008 = vrot.slane %v985, 7
        %v1009 = vrot.slane %v986, 7
        %v1010 = vrot.slane %v987, 7
        %v1011 = vrot.slane %v988, 7
        %v1012 = vrot.slane %v989, 7
        %v1013 = vsel %vm1007, %v1008, %v1012
        %v1014 = vrot.slane %v990, 7
        %v1015 = vsel %vm1007, %v1009, %v1014
        %v1016 = vrot.slane %v991, 7
        %v1017 = vsel %vm1007, %v1010, %v1016
        %v1018 = vrot.slane %v992, 7
        %v1019 = vsel %vm1007, %v1011, %v1018
        %1032 = vst [vmem:[#allocation3] sm:$0xfe] %v1008
        %1033 = vst [vmem:[#allocation3 + $0x8] sm:$0xfe] %v1009
        %1034 = vst [vmem:[#allocation3 + $0x10] sm:$0xfe] %v1010
        %1035 = vst [vmem:[#allocation3 + $0x18] sm:$0xfe] %v1011
        %1036 = vst [vmem:[#allocation3 + $0x20] sm:$0xff] %v1013
        %1037 = vst [vmem:[#allocation3 + $0x28] sm:$0xff] %v1015
        %1038 = vst [vmem:[#allocation3 + $0x30] sm:$0xff] %v1017
        %1039 = vst [vmem:[#allocation3 + $0x38] sm:$0xff] %v1019
        %1040 = vst [vmem:[#allocation3 + $0x40] sm:$0x1] %v1012
        %1041 = vst [vmem:[#allocation3 + $0x48] sm:$0x1] %v1014
        %1042 = vst [vmem:[#allocation3 + $0x50] sm:$0x1] %v1016
        %1043 = vst [vmem:[#allocation3 + $0x58] sm:$0x1] %v1018
        %v1044 = vld [vmem:[#allocation3] sm:$0xff]
        %v1045 = vld [vmem:[#allocation3 + $0x8] sm:$0xff]
        %v1046 = vld [vmem:[#allocation3 + $0x10] sm:$0xff]
        %v1047 = vld [vmem:[#allocation3 + $0x18] sm:$0xff]
        %v1048 = vld [vmem:[#allocation3 + $0x20] sm:$0xff]
        %v1049 = vld [vmem:[#allocation3 + $0x28] sm:$0xff]
        %v1050 = vld [vmem:[#allocation3 + $0x30] sm:$0xff]
        %v1051 = vld [vmem:[#allocation3 + $0x38] sm:$0xff]
        %v1060 = vcombine.low %v1044, %v1045
        %v1061 = vcombine.high %v1044, %v1045
        %v1062 = vcombine.low %v1046, %v1047
        %v1063 = vcombine.high %v1046, %v1047
        %v1065 = vunpack.c.l.s4 1983009808
        %v1066 = vunpack.c.0.s8 %v1065
        %v1067 = vlaneseq
        %v1068 = vshrl.u32 %v1067, 7
        %v1069 = vsub.s32 %v1066, %v1068
        %v1070 = vrot.slane %v1060, %v1069
        %v1072 = vunpack.c.l.s4 1983009808
        %v1073 = vunpack.c.0.s8 %v1072
        %v1074 = vlaneseq
        %v1075 = vshrl.u32 %v1074, 7
        %v1076 = vsub.s32 %v1073, %v1075
        %v1077 = vrot.slane %v1061, %v1076
        %v1079 = vunpack.c.l.s4 1983009808
        %v1080 = vunpack.c.0.s8 %v1079
        %v1081 = vlaneseq
        %v1082 = vshrl.u32 %v1081, 7
        %v1083 = vsub.s32 %v1080, %v1082
        %v1084 = vrot.slane %v1062, %v1083
        %v1086 = vunpack.c.l.s4 1983009808
        %v1087 = vunpack.c.0.s8 %v1086
        %v1088 = vlaneseq
        %v1089 = vshrl.u32 %v1088, 7
        %v1090 = vsub.s32 %v1087, %v1089
        %v1091 = vrot.slane %v1063, %v1090
        %v1092 = vcombine.low %v1070, %v1084
        %v1093 = vcombine.high %v1070, %v1084
        %v1094 = vcombine.low %v1077, %v1091
        %v1095 = vcombine.high %v1077, %v1091
        %v1096 = vcombine.low %v1048, %v1049
        %v1097 = vcombine.high %v1048, %v1049
        %v1098 = vcombine.low %v1050, %v1051
        %v1099 = vcombine.high %v1050, %v1051
        %v1101 = vunpack.c.l.s4 1983009808
        %v1102 = vunpack.c.0.s8 %v1101
        %v1103 = vlaneseq
        %v1104 = vshrl.u32 %v1103, 7
        %v1105 = vsub.s32 %v1102, %v1104
        %v1106 = vrot.slane %v1096, %v1105
        %v1108 = vunpack.c.l.s4 1983009808
        %v1109 = vunpack.c.0.s8 %v1108
        %v1110 = vlaneseq
        %v1111 = vshrl.u32 %v1110, 7
        %v1112 = vsub.s32 %v1109, %v1111
        %v1113 = vrot.slane %v1097, %v1112
        %v1115 = vunpack.c.l.s4 1983009808
        %v1116 = vunpack.c.0.s8 %v1115
        %v1117 = vlaneseq
        %v1118 = vshrl.u32 %v1117, 7
        %v1119 = vsub.s32 %v1116, %v1118
        %v1120 = vrot.slane %v1098, %v1119
        %v1122 = vunpack.c.l.s4 1983009808
        %v1123 = vunpack.c.0.s8 %v1122
        %v1124 = vlaneseq
        %v1125 = vshrl.u32 %v1124, 7
        %v1126 = vsub.s32 %v1123, %v1125
        %v1127 = vrot.slane %v1099, %v1126
        %v1128 = vcombine.low %v1106, %v1120
        %v1129 = vcombine.high %v1106, %v1120
        %v1130 = vcombine.low %v1113, %v1127
        %v1131 = vcombine.high %v1113, %v1127
        %v1140 = vld [vmem:[#allocation3] sm:$0xfe]
        %v1141 = vld [vmem:[#allocation3 + $0x8] sm:$0xfe]
        %v1142 = vld [vmem:[#allocation3 + $0x10] sm:$0xfe]
        %v1143 = vld [vmem:[#allocation3 + $0x18] sm:$0xfe]
        %v1144 = vld [vmem:[#allocation3 + $0x40] sm:$0x1]
        %v1145 = vld [vmem:[#allocation3 + $0x48] sm:$0x1]
        %v1146 = vld [vmem:[#allocation3 + $0x50] sm:$0x1]
        %v1147 = vld [vmem:[#allocation3 + $0x58] sm:$0x1]
        %v1156 = vcombine.low %v1140, %v1141
        %v1157 = vcombine.high %v1140, %v1141
        %v1158 = vcombine.low %v1142, %v1143
        %v1159 = vcombine.high %v1142, %v1143
        %v1161 = vunpack.c.l.s4 1983009808
        %v1162 = vunpack.c.0.s8 %v1161
        %v1163 = vlaneseq
        %v1164 = vshrl.u32 %v1163, 7
        %v1165 = vsub.s32 %v1162, %v1164
        %v1166 = vrot.slane %v1156, %v1165
        %v1168 = vunpack.c.l.s4 1983009808
        %v1169 = vunpack.c.0.s8 %v1168
        %v1170 = vlaneseq
        %v1171 = vshrl.u32 %v1170, 7
        %v1172 = vsub.s32 %v1169, %v1171
        %v1173 = vrot.slane %v1157, %v1172
        %v1175 = vunpack.c.l.s4 1983009808
        %v1176 = vunpack.c.0.s8 %v1175
        %v1177 = vlaneseq
        %v1178 = vshrl.u32 %v1177, 7
        %v1179 = vsub.s32 %v1176, %v1178
        %v1180 = vrot.slane %v1158, %v1179
        %v1182 = vunpack.c.l.s4 1983009808
        %v1183 = vunpack.c.0.s8 %v1182
        %v1184 = vlaneseq
        %v1185 = vshrl.u32 %v1184, 7
        %v1186 = vsub.s32 %v1183, %v1185
        %v1187 = vrot.slane %v1159, %v1186
        %v1188 = vcombine.low %v1166, %v1180
        %v1189 = vcombine.high %v1166, %v1180
        %v1190 = vcombine.low %v1173, %v1187
        %v1191 = vcombine.high %v1173, %v1187
        %v1192 = vcombine.low %v1144, %v1145
        %v1193 = vcombine.low %v1146, %v1147
        %v1195 = vunpack.c.l.s4 1983009808
        %v1196 = vunpack.c.0.s8 %v1195
        %v1197 = vlaneseq
        %v1198 = vshrl.u32 %v1197, 7
        %v1199 = vsub.s32 %v1196, %v1198
        %v1200 = vrot.slane %v1192, %v1199
        %v1202 = vunpack.c.l.s4 1983009808
        %v1203 = vunpack.c.0.s8 %v1202
        %v1204 = vlaneseq
        %v1205 = vshrl.u32 %v1204, 7
        %v1206 = vsub.s32 %v1203, %v1205
        %v1207 = vrot.slane %v1193, %v1206
        %v1208 = vcombine.low %v1200, %v1207
        %vm1209 = vcmask 1042434
        %vm1210 = vmor %vm1007, %vm1209
        %vm1211 = vcmask 1044484
        %vm1212 = vmor %vm1210, %vm1211
        %vm1213 = vcmask 1046534
        %vm1214 = vmor %vm1212, %vm1213
        %v1215 = vrot.slane %v1188, 7
        %v1216 = vrot.slane %v1215, 2
        %v1217 = vrot.slane %v1189, 7
        %v1218 = vsel %vm1214, %v1216, %v1217
        %v1219 = vrot.slane %v1217, 2
        %v1220 = vrot.slane %v1190, 7
        %v1221 = vsel %vm1214, %v1219, %v1220
        %v1222 = vrot.slane %v1220, 2
        %v1223 = vrot.slane %v1191, 7
        %v1224 = vsel %vm1214, %v1222, %v1223
        %v1225 = vrot.slane %v1223, 2
        %v1226 = vrot.slane %v1128, 7
        %v1227 = vsel %vm1214, %v1225, %v1226
        %v1228 = vrot.slane %v1226, 2
        %v1229 = vrot.slane %v1129, 7
        %v1230 = vsel %vm1214, %v1228, %v1229
        %v1231 = vrot.slane %v1229, 2
        %v1232 = vrot.slane %v1130, 7
        %v1233 = vsel %vm1214, %v1231, %v1232
        %v1234 = vrot.slane %v1232, 2
        %v1235 = vrot.slane %v1131, 7
        %v1236 = vsel %vm1214, %v1234, %v1235
        %v1237 = vrot.slane %v1235, 2
        %v1238 = vrot.slane %v1208, 7
        %v1239 = vsel %vm1214, %v1237, %v1238
        %v1240 = vrot.slane %v1092, 7
        %v1241 = vrot.slane %v1240, 2
        %v1242 = vrot.slane %v1093, 7
        %v1243 = vrot.slane %v1242, 2
        %v1244 = vrot.slane %v1094, 7
        %v1245 = vrot.slane %v1244, 2
        %v1246 = vrot.slane %v1095, 7
        %v1247 = vrot.slane %v1246, 2
        %v1256 = vmax.f32 %v1092, %v1241
        %v1257 = vmax.f32 %v1093, %v1243
        %v1258 = vmax.f32 %v1094, %v1245
        %v1259 = vmax.f32 %v1095, %v1247
        %v1260 = vmax.f32 %v1128, %v1228
        %v1261 = vmax.f32 %v1129, %v1231
        %v1262 = vmax.f32 %v1130, %v1234
        %v1263 = vmax.f32 %v1131, %v1237
        %v1264 = vrot.slane %v1218, 7
        %v1265 = vrot.slane %v1264, 2
        %v1266 = vrot.slane %v1221, 7
        %v1267 = vrot.slane %v1266, 2
        %v1268 = vrot.slane %v1224, 7
        %v1269 = vrot.slane %v1268, 2
        %v1270 = vrot.slane %v1227, 7
        %v1271 = vrot.slane %v1270, 2
        %v1272 = vrot.slane %v1230, 7
        %v1273 = vrot.slane %v1272, 2
        %v1274 = vrot.slane %v1233, 7
        %v1275 = vrot.slane %v1274, 2
        %v1276 = vrot.slane %v1236, 7
        %v1277 = vrot.slane %v1276, 2
        %v1278 = vrot.slane %v1239, 7
        %v1279 = vrot.slane %v1278, 2
        %v1288 = vmax.f32 %v1256, %v1265
        %v1289 = vmax.f32 %v1257, %v1267
        %v1290 = vmax.f32 %v1258, %v1269
        %v1291 = vmax.f32 %v1259, %v1271
        %v1292 = vmax.f32 %v1260, %v1273
        %v1293 = vmax.f32 %v1261, %v1275
        %v1294 = vmax.f32 %v1262, %v1277
        %v1295 = vmax.f32 %v1263, %v1279
        %v1304 = vlaneseq
        %v1305 = vshrl.u32 %v1304, 7
        %v1306 = vsub.s32 0, %v1305
        %v1307 = vrot.slane %v1288, %v1306
        %v1308 = vlaneseq
        %v1309 = vshrl.u32 %v1308, 7
        %v1310 = vsub.s32 2, %v1309
        %v1311 = vrot.slane %v1288, %v1310
        %v1312 = vlaneseq
        %v1313 = vshrl.u32 %v1312, 7
        %v1314 = vsub.s32 4, %v1313
        %v1315 = vrot.slane %v1288, %v1314
        %v1316 = vlaneseq
        %v1317 = vshrl.u32 %v1316, 7
        %v1318 = vsub.s32 6, %v1317
        %v1319 = vrot.slane %v1288, %v1318
        %v1320 = vlaneseq
        %v1321 = vshrl.u32 %v1320, 7
        %v1322 = vsub.s32 0, %v1321
        %v1323 = vrot.slane %v1289, %v1322
        %v1324 = vlaneseq
        %v1325 = vshrl.u32 %v1324, 7
        %v1326 = vsub.s32 2, %v1325
        %v1327 = vrot.slane %v1289, %v1326
        %v1328 = vlaneseq
        %v1329 = vshrl.u32 %v1328, 7
        %v1330 = vsub.s32 4, %v1329
        %v1331 = vrot.slane %v1289, %v1330
        %v1332 = vlaneseq
        %v1333 = vshrl.u32 %v1332, 7
        %v1334 = vsub.s32 6, %v1333
        %v1335 = vrot.slane %v1289, %v1334
        %v1336 = vlaneseq
        %v1337 = vshrl.u32 %v1336, 7
        %v1338 = vsub.s32 0, %v1337
        %v1339 = vrot.slane %v1290, %v1338
        %v1340 = vlaneseq
        %v1341 = vshrl.u32 %v1340, 7
        %v1342 = vsub.s32 2, %v1341
        %v1343 = vrot.slane %v1290, %v1342
        %v1344 = vlaneseq
        %v1345 = vshrl.u32 %v1344, 7
        %v1346 = vsub.s32 4, %v1345
        %v1347 = vrot.slane %v1290, %v1346
        %v1348 = vlaneseq
        %v1349 = vshrl.u32 %v1348, 7
        %v1350 = vsub.s32 6, %v1349
        %v1351 = vrot.slane %v1290, %v1350
        %v1352 = vlaneseq
        %v1353 = vshrl.u32 %v1352, 7
        %v1354 = vsub.s32 0, %v1353
        %v1355 = vrot.slane %v1291, %v1354
        %v1356 = vlaneseq
        %v1357 = vshrl.u32 %v1356, 7
        %v1358 = vsub.s32 2, %v1357
        %v1359 = vrot.slane %v1291, %v1358
        %v1360 = vlaneseq
        %v1361 = vshrl.u32 %v1360, 7
        %v1362 = vsub.s32 4, %v1361
        %v1363 = vrot.slane %v1291, %v1362
        %v1364 = vlaneseq
        %v1365 = vshrl.u32 %v1364, 7
        %v1366 = vsub.s32 6, %v1365
        %v1367 = vrot.slane %v1291, %v1366
        %v1368 = vlaneseq
        %v1369 = vshrl.u32 %v1368, 7
        %v1370 = vsub.s32 0, %v1369
        %v1371 = vrot.slane %v1292, %v1370
        %v1372 = vlaneseq
        %v1373 = vshrl.u32 %v1372, 7
        %v1374 = vsub.s32 2, %v1373
        %v1375 = vrot.slane %v1292, %v1374
        %v1376 = vlaneseq
        %v1377 = vshrl.u32 %v1376, 7
        %v1378 = vsub.s32 4, %v1377
        %v1379 = vrot.slane %v1292, %v1378
        %v1380 = vlaneseq
        %v1381 = vshrl.u32 %v1380, 7
        %v1382 = vsub.s32 6, %v1381
        %v1383 = vrot.slane %v1292, %v1382
        %v1384 = vlaneseq
        %v1385 = vshrl.u32 %v1384, 7
        %v1386 = vsub.s32 0, %v1385
        %v1387 = vrot.slane %v1293, %v1386
        %v1388 = vlaneseq
        %v1389 = vshrl.u32 %v1388, 7
        %v1390 = vsub.s32 2, %v1389
        %v1391 = vrot.slane %v1293, %v1390
        %v1392 = vlaneseq
        %v1393 = vshrl.u32 %v1392, 7
        %v1394 = vsub.s32 4, %v1393
        %v1395 = vrot.slane %v1293, %v1394
        %v1396 = vlaneseq
        %v1397 = vshrl.u32 %v1396, 7
        %v1398 = vsub.s32 6, %v1397
        %v1399 = vrot.slane %v1293, %v1398
        %v1400 = vlaneseq
        %v1401 = vshrl.u32 %v1400, 7
        %v1402 = vsub.s32 0, %v1401
        %v1403 = vrot.slane %v1294, %v1402
        %v1404 = vlaneseq
        %v1405 = vshrl.u32 %v1404, 7
        %v1406 = vsub.s32 2, %v1405
        %v1407 = vrot.slane %v1294, %v1406
        %v1408 = vlaneseq
        %v1409 = vshrl.u32 %v1408, 7
        %v1410 = vsub.s32 4, %v1409
        %v1411 = vrot.slane %v1294, %v1410
        %v1412 = vlaneseq
        %v1413 = vshrl.u32 %v1412, 7
        %v1414 = vsub.s32 6, %v1413
        %v1415 = vrot.slane %v1294, %v1414
        %v1416 = vlaneseq
        %v1417 = vshrl.u32 %v1416, 7
        %v1418 = vsub.s32 0, %v1417
        %v1419 = vrot.slane %v1295, %v1418
        %v1420 = vlaneseq
        %v1421 = vshrl.u32 %v1420, 7
        %v1422 = vsub.s32 2, %v1421
        %v1423 = vrot.slane %v1295, %v1422
        %v1424 = vlaneseq
        %v1425 = vshrl.u32 %v1424, 7
        %v1426 = vsub.s32 4, %v1425
        %v1427 = vrot.slane %v1295, %v1426
        %v1428 = vlaneseq
        %v1429 = vshrl.u32 %v1428, 7
        %v1430 = vsub.s32 6, %v1429
        %v1431 = vrot.slane %v1295, %v1430
        %vm1432 = vcmask 1041409
        %v1433 = vsel %vm1432, %v1323, %v1307
        %v1434 = vsel %vm1209, %v1339, %v1433
        %vm1435 = vcmask 1043459
        %v1436 = vsel %vm1435, %v1355, %v1434
        %v1437 = vsel %vm1211, %v1371, %v1436
        %vm1438 = vcmask 1045509
        %v1439 = vsel %vm1438, %v1387, %v1437
        %v1440 = vsel %vm1213, %v1403, %v1439
        %vm1441 = vcmask 1047559
        %v1442 = vsel %vm1441, %v1419, %v1440
        %v1443 = vsel %vm1432, %v1327, %v1311
        %v1444 = vsel %vm1209, %v1343, %v1443
        %v1445 = vsel %vm1435, %v1359, %v1444
        %v1446 = vsel %vm1211, %v1375, %v1445
        %v1447 = vsel %vm1438, %v1391, %v1446
        %v1448 = vsel %vm1213, %v1407, %v1447
        %v1449 = vsel %vm1441, %v1423, %v1448
        %v1450 = vsel %vm1432, %v1331, %v1315
        %v1451 = vsel %vm1209, %v1347, %v1450
        %v1452 = vsel %vm1435, %v1363, %v1451
        %v1453 = vsel %vm1211, %v1379, %v1452
        %v1454 = vsel %vm1438, %v1395, %v1453
        %v1455 = vsel %vm1213, %v1411, %v1454
        %v1456 = vsel %vm1441, %v1427, %v1455
        %v1457 = vsel %vm1432, %v1335, %v1319
        %v1458 = vsel %vm1209, %v1351, %v1457
        %v1459 = vsel %vm1435, %v1367, %v1458
        %v1460 = vsel %vm1211, %v1383, %v1459
        %v1461 = vsel %vm1438, %v1399, %v1460
        %v1462 = vsel %vm1213, %v1415, %v1461
        %v1463 = vsel %vm1441, %v1431, %v1462
        %1464 = vrot.lane.b32.xlu0 %v1442, 32
        %v1465 = vpop.permute.xlu0 %1464
        %1466 = vrot.lane.b32.xlu0 %v1449, 32
        %v1467 = vpop.permute.xlu0 %1466
        %1468 = vrot.lane.b32.xlu0 %v1456, 32
        %v1469 = vpop.permute.xlu0 %1468
        %1470 = vrot.lane.b32.xlu0 %v1463, 32
        %v1471 = vpop.permute.xlu0 %1470
        %vm1472 = vcmask 261120
        %v1473 = vsel %vm1472, %v1465, %v1467
        %v1474 = vsel %vm1472, %v1467, %v1469
        %v1475 = vsel %vm1472, %v1469, %v1471
        %v1477 = vsel %vm1472, -inf, %v1465
        %1478 = vrot.lane.b32.xlu0 %v1442, 96
        %v1479 = vpop.permute.xlu0 %1478
        %1480 = vrot.lane.b32.xlu0 %v1449, 96
        %v1481 = vpop.permute.xlu0 %1480
        %1482 = vrot.lane.b32.xlu0 %v1456, 96
        %v1483 = vpop.permute.xlu0 %1482
        %1484 = vrot.lane.b32.xlu0 %v1463, 96
        %v1485 = vpop.permute.xlu0 %1484
        %vm1486 = vcmask 785408
        %v1487 = vsel %vm1486, %v1479, %v1481
        %v1488 = vsel %vm1486, %v1481, %v1483
        %v1489 = vsel %vm1486, %v1483, %v1485
        %v1491 = vsel %vm1486, %v1485, -inf
        %v1493 = vcombine.low %v1477, %v1473
        %v1494 = vcombine.high %v1477, %v1473
        %v1495 = vcombine.low %v1474, %v1475
        %v1496 = vcombine.high %v1474, %v1475
        %v1498 = vunpack.c.l.s4 1983009808
        %v1499 = vunpack.c.0.s8 %v1498
        %v1500 = vlaneseq
        %v1501 = vshrl.u32 %v1500, 7
        %v1502 = vsub.s32 %v1499, %v1501
        %v1503 = vrot.slane %v1493, %v1502
        %v1505 = vunpack.c.l.s4 1983009808
        %v1506 = vunpack.c.0.s8 %v1505
        %v1507 = vlaneseq
        %v1508 = vshrl.u32 %v1507, 7
        %v1509 = vsub.s32 %v1506, %v1508
        %v1510 = vrot.slane %v1494, %v1509
        %v1512 = vunpack.c.l.s4 1983009808
        %v1513 = vunpack.c.0.s8 %v1512
        %v1514 = vlaneseq
        %v1515 = vshrl.u32 %v1514, 7
        %v1516 = vsub.s32 %v1513, %v1515
        %v1517 = vrot.slane %v1495, %v1516
        %v1519 = vunpack.c.l.s4 1983009808
        %v1520 = vunpack.c.0.s8 %v1519
        %v1521 = vlaneseq
        %v1522 = vshrl.u32 %v1521, 7
        %v1523 = vsub.s32 %v1520, %v1522
        %v1524 = vrot.slane %v1496, %v1523
        %v1525 = vcombine.low %v1503, %v1517
        %v1526 = vcombine.high %v1503, %v1517
        %v1527 = vcombine.low %v1510, %v1524
        %v1528 = vcombine.high %v1510, %v1524
        %v1529 = vrot.slane %v1525, 1
        %v1530 = vrot.slane %v1526, 1
        %v1531 = vrot.slane %v1527, 1
        %v1532 = vrot.slane %v1528, 1
        %v1541 = vmax.f32 %v1288, %v1525
        %v1542 = vmax.f32 %v1289, %v1529
        %v1543 = vmax.f32 %v1290, %v1526
        %v1544 = vmax.f32 %v1291, %v1530
        %v1545 = vmax.f32 %v1292, %v1527
        %v1546 = vmax.f32 %v1293, %v1531
        %v1547 = vmax.f32 %v1294, %v1528
        %v1548 = vmax.f32 %v1295, %v1532
        %v1550 = vcombine.low %v1487, %v1488
        %v1551 = vcombine.high %v1487, %v1488
        %v1552 = vcombine.low %v1489, %v1491
        %v1553 = vcombine.high %v1489, %v1491
        %v1555 = vunpack.c.l.s4 1983009808
        %v1556 = vunpack.c.0.s8 %v1555
        %v1557 = vlaneseq
        %v1558 = vshrl.u32 %v1557, 7
        %v1559 = vsub.s32 %v1556, %v1558
        %v1560 = vrot.slane %v1550, %v1559
        %v1562 = vunpack.c.l.s4 1983009808
        %v1563 = vunpack.c.0.s8 %v1562
        %v1564 = vlaneseq
        %v1565 = vshrl.u32 %v1564, 7
        %v1566 = vsub.s32 %v1563, %v1565
        %v1567 = vrot.slane %v1551, %v1566
        %v1569 = vunpack.c.l.s4 1983009808
        %v1570 = vunpack.c.0.s8 %v1569
        %v1571 = vlaneseq
        %v1572 = vshrl.u32 %v1571, 7
        %v1573 = vsub.s32 %v1570, %v1572
        %v1574 = vrot.slane %v1552, %v1573
        %v1576 = vunpack.c.l.s4 1983009808
        %v1577 = vunpack.c.0.s8 %v1576
        %v1578 = vlaneseq
        %v1579 = vshrl.u32 %v1578, 7
        %v1580 = vsub.s32 %v1577, %v1579
        %v1581 = vrot.slane %v1553, %v1580
        %v1582 = vcombine.low %v1560, %v1574
        %v1583 = vcombine.high %v1560, %v1574
        %v1584 = vcombine.low %v1567, %v1581
        %v1585 = vcombine.high %v1567, %v1581
        %v1586 = vrot.slane %v1582, 1
        %v1587 = vrot.slane %v1583, 1
        %v1588 = vrot.slane %v1584, 1
        %v1589 = vrot.slane %v1585, 1
        %v1598 = vmax.f32 %v1541, %v1582
        %v1599 = vmax.f32 %v1542, %v1586
        %v1600 = vmax.f32 %v1543, %v1583
        %v1601 = vmax.f32 %v1544, %v1587
        %v1602 = vmax.f32 %v1545, %v1584
        %v1603 = vmax.f32 %v1546, %v1588
        %v1604 = vmax.f32 %v1547, %v1585
        %v1605 = vmax.f32 %v1548, %v1589
        %v1606 = vld [vmem:[#allocation14] sm:$0xff]
        %v1607 = vld [vmem:[#allocation14 + $0x8] sm:$0xff]
        %v1608 = vld [vmem:[#allocation14 + $0x10] sm:$0xff]
        %v1609 = vld [vmem:[#allocation14 + $0x18] sm:$0xff]
        %v1610 = vld [vmem:[#allocation14 + $0x20] sm:$0xff]
        %v1611 = vld [vmem:[#allocation14 + $0x28] sm:$0xff]
        %v1612 = vld [vmem:[#allocation14 + $0x30] sm:$0xff]
        %v1613 = vld [vmem:[#allocation14 + $0x38] sm:$0xff]
        %v1614 = vld [vmem:[#allocation14 + $0x40] sm:$0xff]
        %v1615 = vld [vmem:[#allocation14 + $0x48] sm:$0xff]
        %v1616 = vld [vmem:[#allocation14 + $0x50] sm:$0xff]
        %v1617 = vld [vmem:[#allocation14 + $0x58] sm:$0xff]
        %v1618 = vld [vmem:[#allocation14 + $0x60] sm:$0xff]
        %v1619 = vld [vmem:[#allocation14 + $0x68] sm:$0xff]
        %v1620 = vld [vmem:[#allocation14 + $0x70] sm:$0xff]
        %v1621 = vld [vmem:[#allocation14 + $0x78] sm:$0xff]
        %v1622 = vld [vmem:[#allocation14 + $0x80] sm:$0xff]
        %v1623 = vld [vmem:[#allocation14 + $0x88] sm:$0xff]
        %v1624 = vld [vmem:[#allocation14 + $0x90] sm:$0xff]
        %v1625 = vld [vmem:[#allocation14 + $0x98] sm:$0xff]
        %v1626 = vld [vmem:[#allocation14 + $0xa0] sm:$0xff]
        %v1627 = vld [vmem:[#allocation14 + $0xa8] sm:$0xff]
        %v1628 = vld [vmem:[#allocation14 + $0xb0] sm:$0xff]
        %v1629 = vld [vmem:[#allocation14 + $0xb8] sm:$0xff]
        %v1630 = vld [vmem:[#allocation14 + $0xc0] sm:$0xff]
        %v1631 = vld [vmem:[#allocation14 + $0xc8] sm:$0xff]
        %v1632 = vld [vmem:[#allocation14 + $0xd0] sm:$0xff]
        %v1633 = vld [vmem:[#allocation14 + $0xd8] sm:$0xff]
        %v1634 = vld [vmem:[#allocation14 + $0xe0] sm:$0xff]
        %v1635 = vld [vmem:[#allocation14 + $0xe8] sm:$0xff]
        %v1636 = vld [vmem:[#allocation14 + $0xf0] sm:$0xff]
        %v1637 = vld [vmem:[#allocation14 + $0xf8] sm:$0xff]
        %v1638 = vld [vmem:[#allocation14 + $0x100] sm:$0xff]
        %v1639 = vld [vmem:[#allocation14 + $0x108] sm:$0xff]
        %v1640 = vld [vmem:[#allocation14 + $0x110] sm:$0xff]
        %v1641 = vld [vmem:[#allocation14 + $0x118] sm:$0xff]
        %v1642 = vld [vmem:[#allocation14 + $0x120] sm:$0xff]
        %v1643 = vld [vmem:[#allocation14 + $0x128] sm:$0xff]
        %v1644 = vld [vmem:[#allocation14 + $0x130] sm:$0xff]
        %v1645 = vld [vmem:[#allocation14 + $0x138] sm:$0xff]
        %v1646 = vld [vmem:[#allocation14 + $0x140] sm:$0xff]
        %v1647 = vld [vmem:[#allocation14 + $0x148] sm:$0xff]
        %v1648 = vld [vmem:[#allocation14 + $0x150] sm:$0xff]
        %v1649 = vld [vmem:[#allocation14 + $0x158] sm:$0xff]
        %v1650 = vld [vmem:[#allocation14 + $0x160] sm:$0xff]
        %v1651 = vld [vmem:[#allocation14 + $0x168] sm:$0xff]
        %v1652 = vld [vmem:[#allocation14 + $0x170] sm:$0xff]
        %v1653 = vld [vmem:[#allocation14 + $0x178] sm:$0xff]
        %v1654 = vld [vmem:[#allocation14 + $0x180] sm:$0xff]
        %v1655 = vld [vmem:[#allocation14 + $0x188] sm:$0xff]
        %v1656 = vld [vmem:[#allocation14 + $0x190] sm:$0xff]
        %v1657 = vld [vmem:[#allocation14 + $0x198] sm:$0xff]
        %v1658 = vld [vmem:[#allocation14 + $0x1a0] sm:$0xff]
        %v1659 = vld [vmem:[#allocation14 + $0x1a8] sm:$0xff]
        %v1660 = vld [vmem:[#allocation14 + $0x1b0] sm:$0xff]
        %v1661 = vld [vmem:[#allocation14 + $0x1b8] sm:$0xff]
        %v1662 = vld [vmem:[#allocation14 + $0x1c0] sm:$0xff]
        %v1663 = vld [vmem:[#allocation14 + $0x1c8] sm:$0xff]
        %v1664 = vld [vmem:[#allocation14 + $0x1d0] sm:$0xff]
        %v1665 = vld [vmem:[#allocation14 + $0x1d8] sm:$0xff]
        %v1666 = vld [vmem:[#allocation14 + $0x1e0] sm:$0xff]
        %v1667 = vld [vmem:[#allocation14 + $0x1e8] sm:$0xff]
        %v1668 = vld [vmem:[#allocation14 + $0x1f0] sm:$0xff]
        %v1669 = vld [vmem:[#allocation14 + $0x1f8] sm:$0xff]
        %v1670 = vld [vmem:[#allocation14 + $0x200] sm:$0xff]
        %v1671 = vld [vmem:[#allocation14 + $0x208] sm:$0xff]
        %v1672 = vld [vmem:[#allocation14 + $0x210] sm:$0xff]
        %v1673 = vld [vmem:[#allocation14 + $0x218] sm:$0xff]
        %v1674 = vld [vmem:[#allocation14 + $0x220] sm:$0xff]
        %v1675 = vld [vmem:[#allocation14 + $0x228] sm:$0xff]
        %v1676 = vld [vmem:[#allocation14 + $0x230] sm:$0xff]
        %v1677 = vld [vmem:[#allocation14 + $0x238] sm:$0xff]
        %v1678 = vld [vmem:[#allocation14 + $0x240] sm:$0xff]
        %v1679 = vld [vmem:[#allocation14 + $0x248] sm:$0xff]
        %v1680 = vld [vmem:[#allocation14 + $0x250] sm:$0xff]
        %v1681 = vld [vmem:[#allocation14 + $0x258] sm:$0xff]
        %v1682 = vld [vmem:[#allocation14 + $0x260] sm:$0xff]
        %v1683 = vld [vmem:[#allocation14 + $0x268] sm:$0xff]
        %v1684 = vld [vmem:[#allocation14 + $0x270] sm:$0xff]
        %v1685 = vld [vmem:[#allocation14 + $0x278] sm:$0xff]
        %v1686 = vld [vmem:[#allocation14 + $0x280] sm:$0xff]
        %v1687 = vld [vmem:[#allocation14 + $0x288] sm:$0xff]
        %v1688 = vld [vmem:[#allocation14 + $0x290] sm:$0xff]
        %v1689 = vld [vmem:[#allocation14 + $0x298] sm:$0xff]
        %v1690 = vld [vmem:[#allocation14 + $0x2a0] sm:$0xff]
        %v1691 = vld [vmem:[#allocation14 + $0x2a8] sm:$0xff]
        %v1692 = vld [vmem:[#allocation14 + $0x2b0] sm:$0xff]
        %v1693 = vld [vmem:[#allocation14 + $0x2b8] sm:$0xff]
        %v1694 = vld [vmem:[#allocation14 + $0x2c0] sm:$0xff]
        %v1695 = vld [vmem:[#allocation14 + $0x2c8] sm:$0xff]
        %v1696 = vld [vmem:[#allocation14 + $0x2d0] sm:$0xff]
        %v1697 = vld [vmem:[#allocation14 + $0x2d8] sm:$0xff]
        %v1698 = vld [vmem:[#allocation14 + $0x2e0] sm:$0xff]
        %v1699 = vld [vmem:[#allocation14 + $0x2e8] sm:$0xff]
        %v1700 = vld [vmem:[#allocation14 + $0x2f0] sm:$0xff]
        %v1701 = vld [vmem:[#allocation14 + $0x2f8] sm:$0xff]
        %v1702 = vld [vmem:[#allocation14 + $0x300] sm:$0xff]
        %v1703 = vld [vmem:[#allocation14 + $0x308] sm:$0xff]
        %v1704 = vld [vmem:[#allocation14 + $0x310] sm:$0xff]
        %v1705 = vld [vmem:[#allocation14 + $0x318] sm:$0xff]
        %v1706 = vld [vmem:[#allocation14 + $0x320] sm:$0xff]
        %v1707 = vld [vmem:[#allocation14 + $0x328] sm:$0xff]
        %v1708 = vld [vmem:[#allocation14 + $0x330] sm:$0xff]
        %v1709 = vld [vmem:[#allocation14 + $0x338] sm:$0xff]
        %v1710 = vld [vmem:[#allocation14 + $0x340] sm:$0xff]
        %v1711 = vld [vmem:[#allocation14 + $0x348] sm:$0xff]
        %v1712 = vld [vmem:[#allocation14 + $0x350] sm:$0xff]
        %v1713 = vld [vmem:[#allocation14 + $0x358] sm:$0xff]
        %v1714 = vld [vmem:[#allocation14 + $0x360] sm:$0xff]
        %v1715 = vld [vmem:[#allocation14 + $0x368] sm:$0xff]
        %v1716 = vld [vmem:[#allocation14 + $0x370] sm:$0xff]
        %v1717 = vld [vmem:[#allocation14 + $0x378] sm:$0xff]
        %v1718 = vld [vmem:[#allocation14 + $0x380] sm:$0xff]
        %v1719 = vld [vmem:[#allocation14 + $0x388] sm:$0xff]
        %v1720 = vld [vmem:[#allocation14 + $0x390] sm:$0xff]
        %v1721 = vld [vmem:[#allocation14 + $0x398] sm:$0xff]
        %v1722 = vld [vmem:[#allocation14 + $0x3a0] sm:$0xff]
        %v1723 = vld [vmem:[#allocation14 + $0x3a8] sm:$0xff]
        %v1724 = vld [vmem:[#allocation14 + $0x3b0] sm:$0xff]
        %v1725 = vld [vmem:[#allocation14 + $0x3b8] sm:$0xff]
        %v1726 = vld [vmem:[#allocation14 + $0x3c0] sm:$0xff]
        %v1727 = vld [vmem:[#allocation14 + $0x3c8] sm:$0xff]
        %v1728 = vld [vmem:[#allocation14 + $0x3d0] sm:$0xff]
        %v1729 = vld [vmem:[#allocation14 + $0x3d8] sm:$0xff]
        %v1730 = vld [vmem:[#allocation14 + $0x3e0] sm:$0xff]
        %v1731 = vld [vmem:[#allocation14 + $0x3e8] sm:$0xff]
        %v1732 = vld [vmem:[#allocation14 + $0x3f0] sm:$0xff]
        %v1733 = vld [vmem:[#allocation14 + $0x3f8] sm:$0xff]
        %v1742 = vlaneseq
        %v1743 = vshrl.u32 %v1742, 7
        %v1744 = vsub.s32 0, %v1743
        %v1745 = vrot.slane %v1598, %v1744
        %v1746 = vlaneseq
        %v1747 = vshrl.u32 %v1746, 7
        %v1748 = vsub.s32 2, %v1747
        %v1749 = vrot.slane %v1598, %v1748
        %v1750 = vlaneseq
        %v1751 = vshrl.u32 %v1750, 7
        %v1752 = vsub.s32 4, %v1751
        %v1753 = vrot.slane %v1598, %v1752
        %v1754 = vlaneseq
        %v1755 = vshrl.u32 %v1754, 7
        %v1756 = vsub.s32 6, %v1755
        %v1757 = vrot.slane %v1598, %v1756
        %v1758 = vlaneseq
        %v1759 = vshrl.u32 %v1758, 7
        %v1760 = vsub.s32 0, %v1759
        %v1761 = vrot.slane %v1599, %v1760
        %v1762 = vlaneseq
        %v1763 = vshrl.u32 %v1762, 7
        %v1764 = vsub.s32 2, %v1763
        %v1765 = vrot.slane %v1599, %v1764
        %v1766 = vlaneseq
        %v1767 = vshrl.u32 %v1766, 7
        %v1768 = vsub.s32 4, %v1767
        %v1769 = vrot.slane %v1599, %v1768
        %v1770 = vlaneseq
        %v1771 = vshrl.u32 %v1770, 7
        %v1772 = vsub.s32 6, %v1771
        %v1773 = vrot.slane %v1599, %v1772
        %v1774 = vlaneseq
        %v1775 = vshrl.u32 %v1774, 7
        %v1776 = vsub.s32 0, %v1775
        %v1777 = vrot.slane %v1600, %v1776
        %v1778 = vlaneseq
        %v1779 = vshrl.u32 %v1778, 7
        %v1780 = vsub.s32 2, %v1779
        %v1781 = vrot.slane %v1600, %v1780
        %v1782 = vlaneseq
        %v1783 = vshrl.u32 %v1782, 7
        %v1784 = vsub.s32 4, %v1783
        %v1785 = vrot.slane %v1600, %v1784
        %v1786 = vlaneseq
        %v1787 = vshrl.u32 %v1786, 7
        %v1788 = vsub.s32 6, %v1787
        %v1789 = vrot.slane %v1600, %v1788
        %v1790 = vlaneseq
        %v1791 = vshrl.u32 %v1790, 7
        %v1792 = vsub.s32 0, %v1791
        %v1793 = vrot.slane %v1601, %v1792
        %v1794 = vlaneseq
        %v1795 = vshrl.u32 %v1794, 7
        %v1796 = vsub.s32 2, %v1795
        %v1797 = vrot.slane %v1601, %v1796
        %v1798 = vlaneseq
        %v1799 = vshrl.u32 %v1798, 7
        %v1800 = vsub.s32 4, %v1799
        %v1801 = vrot.slane %v1601, %v1800
        %v1802 = vlaneseq
        %v1803 = vshrl.u32 %v1802, 7
        %v1804 = vsub.s32 6, %v1803
        %v1805 = vrot.slane %v1601, %v1804
        %v1806 = vlaneseq
        %v1807 = vshrl.u32 %v1806, 7
        %v1808 = vsub.s32 0, %v1807
        %v1809 = vrot.slane %v1602, %v1808
        %v1810 = vlaneseq
        %v1811 = vshrl.u32 %v1810, 7
        %v1812 = vsub.s32 2, %v1811
        %v1813 = vrot.slane %v1602, %v1812
        %v1814 = vlaneseq
        %v1815 = vshrl.u32 %v1814, 7
        %v1816 = vsub.s32 4, %v1815
        %v1817 = vrot.slane %v1602, %v1816
        %v1818 = vlaneseq
        %v1819 = vshrl.u32 %v1818, 7
        %v1820 = vsub.s32 6, %v1819
        %v1821 = vrot.slane %v1602, %v1820
        %v1822 = vlaneseq
        %v1823 = vshrl.u32 %v1822, 7
        %v1824 = vsub.s32 0, %v1823
        %v1825 = vrot.slane %v1603, %v1824
        %v1826 = vlaneseq
        %v1827 = vshrl.u32 %v1826, 7
        %v1828 = vsub.s32 2, %v1827
        %v1829 = vrot.slane %v1603, %v1828
        %v1830 = vlaneseq
        %v1831 = vshrl.u32 %v1830, 7
        %v1832 = vsub.s32 4, %v1831
        %v1833 = vrot.slane %v1603, %v1832
        %v1834 = vlaneseq
        %v1835 = vshrl.u32 %v1834, 7
        %v1836 = vsub.s32 6, %v1835
        %v1837 = vrot.slane %v1603, %v1836
        %v1838 = vlaneseq
        %v1839 = vshrl.u32 %v1838, 7
        %v1840 = vsub.s32 0, %v1839
        %v1841 = vrot.slane %v1604, %v1840
        %v1842 = vlaneseq
        %v1843 = vshrl.u32 %v1842, 7
        %v1844 = vsub.s32 2, %v1843
        %v1845 = vrot.slane %v1604, %v1844
        %v1846 = vlaneseq
        %v1847 = vshrl.u32 %v1846, 7
        %v1848 = vsub.s32 4, %v1847
        %v1849 = vrot.slane %v1604, %v1848
        %v1850 = vlaneseq
        %v1851 = vshrl.u32 %v1850, 7
        %v1852 = vsub.s32 6, %v1851
        %v1853 = vrot.slane %v1604, %v1852
        %v1854 = vlaneseq
        %v1855 = vshrl.u32 %v1854, 7
        %v1856 = vsub.s32 0, %v1855
        %v1857 = vrot.slane %v1605, %v1856
        %v1858 = vlaneseq
        %v1859 = vshrl.u32 %v1858, 7
        %v1860 = vsub.s32 2, %v1859
        %v1861 = vrot.slane %v1605, %v1860
        %v1862 = vlaneseq
        %v1863 = vshrl.u32 %v1862, 7
        %v1864 = vsub.s32 4, %v1863
        %v1865 = vrot.slane %v1605, %v1864
        %v1866 = vlaneseq
        %v1867 = vshrl.u32 %v1866, 7
        %v1868 = vsub.s32 6, %v1867
        %v1869 = vrot.slane %v1605, %v1868
        %v1870 = vsel %vm1432, %v1761, %v1745
        %v1871 = vsel %vm1209, %v1777, %v1870
        %v1872 = vsel %vm1435, %v1793, %v1871
        %v1873 = vsel %vm1211, %v1809, %v1872
        %v1874 = vsel %vm1438, %v1825, %v1873
        %v1875 = vsel %vm1213, %v1841, %v1874
        %v1876 = vsel %vm1441, %v1857, %v1875
        %v1877 = vsel %vm1432, %v1765, %v1749
        %v1878 = vsel %vm1209, %v1781, %v1877
        %v1879 = vsel %vm1435, %v1797, %v1878
        %v1880 = vsel %vm1211, %v1813, %v1879
        %v1881 = vsel %vm1438, %v1829, %v1880
        %v1882 = vsel %vm1213, %v1845, %v1881
        %v1883 = vsel %vm1441, %v1861, %v1882
        %v1884 = vsel %vm1432, %v1769, %v1753
        %v1885 = vsel %vm1209, %v1785, %v1884
        %v1886 = vsel %vm1435, %v1801, %v1885
        %v1887 = vsel %vm1211, %v1817, %v1886
        %v1888 = vsel %vm1438, %v1833, %v1887
        %v1889 = vsel %vm1213, %v1849, %v1888
        %v1890 = vsel %vm1441, %v1865, %v1889
        %v1891 = vsel %vm1432, %v1773, %v1757
        %v1892 = vsel %vm1209, %v1789, %v1891
        %v1893 = vsel %vm1435, %v1805, %v1892
        %v1894 = vsel %vm1211, %v1821, %v1893
        %v1895 = vsel %vm1438, %v1837, %v1894
        %v1896 = vsel %vm1213, %v1853, %v1895
        %v1897 = vsel %vm1441, %v1869, %v1896
        %1902 = vmatprep.subr.mxu0 %v1637
        %1903 = vmatpush1.msra.mxu0 %v1636
        %1904 = vmatprep.subr.mxu0 %v1635
        %1905 = vmatpush1.msra.mxu0 %v1634
        %1906 = vmatprep.subr.mxu0 %v1633
        %1907 = vmatpush1.msra.mxu0 %v1632
        %1908 = vmatprep.subr.mxu0 %v1631
        %1909 = vmatpush1.msra.mxu0 %v1630
        %1910 = vmatprep.subr.mxu0 %v1629
        %1911 = vmatpush1.msra.mxu0 %v1628
        %1912 = vmatprep.subr.mxu0 %v1627
        %1913 = vmatpush1.msra.mxu0 %v1626
        %1914 = vmatprep.subr.mxu0 %v1625
        %1915 = vmatpush1.msra.mxu0 %v1624
        %1916 = vmatprep.subr.mxu0 %v1623
        %1917 = vmatpush1.msra.mxu0 %v1622
        %1918 = vmatprep.subr.mxu0 %v1621
        %1919 = vmatpush1.msra.mxu0 %v1620
        %1920 = vmatprep.subr.mxu0 %v1619
        %1921 = vmatpush1.msra.mxu0 %v1618
        %1922 = vmatprep.subr.mxu0 %v1617
        %1923 = vmatpush1.msra.mxu0 %v1616
        %1924 = vmatprep.subr.mxu0 %v1615
        %1925 = vmatpush1.msra.mxu0 %v1614
        %1926 = vmatprep.subr.mxu0 %v1613
        %1927 = vmatpush1.msra.mxu0 %v1612
        %1928 = vmatprep.subr.mxu0 %v1611
        %1929 = vmatpush1.msra.mxu0 %v1610
        %1930 = vmatprep.subr.mxu0 %v1609
        %1931 = vmatpush1.msra.mxu0 %v1608
        %1932 = vmatprep.subr.mxu0 %v1607
        %1933 = vmatpush1.msra.mxu0 %v1606
        %1934 = vmatprep.subr.mxu0 %v1669
        %1935 = vmatpush2.msra.mxu0 %v1668
        %1936 = vmatprep.subr.mxu0 %v1667
        %1937 = vmatpush2.msra.mxu0 %v1666
        %1938 = vmatprep.subr.mxu0 %v1665
        %1939 = vmatpush2.msra.mxu0 %v1664
        %1940 = vmatprep.subr.mxu0 %v1663
        %1941 = vmatpush2.msra.mxu0 %v1662
        %1942 = vmatprep.subr.mxu0 %v1661
        %1943 = vmatpush2.msra.mxu0 %v1660
        %1944 = vmatprep.subr.mxu0 %v1659
        %1945 = vmatpush2.msra.mxu0 %v1658
        %1946 = vmatprep.subr.mxu0 %v1657
        %1947 = vmatpush2.msra.mxu0 %v1656
        %1948 = vmatprep.subr.mxu0 %v1655
        %1949 = vmatpush2.msra.mxu0 %v1654
        %1950 = vmatprep.subr.mxu0 %v1653
        %1951 = vmatpush2.msra.mxu0 %v1652
        %1952 = vmatprep.subr.mxu0 %v1651
        %1953 = vmatpush2.msra.mxu0 %v1650
        %1954 = vmatprep.subr.mxu0 %v1649
        %1955 = vmatpush2.msra.mxu0 %v1648
        %1956 = vmatprep.subr.mxu0 %v1647
        %1957 = vmatpush2.msra.mxu0 %v1646
        %1958 = vmatprep.subr.mxu0 %v1645
        %1959 = vmatpush2.msra.mxu0 %v1644
        %1960 = vmatprep.subr.mxu0 %v1643
        %1961 = vmatpush2.msra.mxu0 %v1642
        %1962 = vmatprep.subr.mxu0 %v1641
        %1963 = vmatpush2.msra.mxu0 %v1640
        %1964 = vmatprep.subr.mxu0 %v1639
        %1965 = vmatpush2.msra.mxu0 %v1638
        %1966 = vmatprep.mubr.f32.mxu0 %v1883
        %1967 = vmatmul.mubr.f32.gmra.mxu0 %v1876
        %v1968 = vpop.f32.mrf.mxu0
        %v1969 = vadd.f32 0.0, %v1968
        %v1970 = vpop.f32.mrf.mxu0
        %v1971 = vadd.f32 0.0, %v1970
        %1972 = vdwg.mxu0
        %1973 = vmatprep.subr.mxu0 %v1701
        %1974 = vmatpush1.msra.mxu0 %v1700
        %1975 = vmatprep.subr.mxu0 %v1699
        %1976 = vmatpush1.msra.mxu0 %v1698
        %1977 = vmatprep.subr.mxu0 %v1697
        %1978 = vmatpush1.msra.mxu0 %v1696
        %1979 = vmatprep.subr.mxu0 %v1695
        %1980 = vmatpush1.msra.mxu0 %v1694
        %1981 = vmatprep.subr.mxu0 %v1693
        %1982 = vmatpush1.msra.mxu0 %v1692
        %1983 = vmatprep.subr.mxu0 %v1691
        %1984 = vmatpush1.msra.mxu0 %v1690
        %1985 = vmatprep.subr.mxu0 %v1689
        %1986 = vmatpush1.msra.mxu0 %v1688
        %1987 = vmatprep.subr.mxu0 %v1687
        %1988 = vmatpush1.msra.mxu0 %v1686
        %1989 = vmatprep.subr.mxu0 %v1685
        %1990 = vmatpush1.msra.mxu0 %v1684
        %1991 = vmatprep.subr.mxu0 %v1683
        %1992 = vmatpush1.msra.mxu0 %v1682
        %1993 = vmatprep.subr.mxu0 %v1681
        %1994 = vmatpush1.msra.mxu0 %v1680
        %1995 = vmatprep.subr.mxu0 %v1679
        %1996 = vmatpush1.msra.mxu0 %v1678
        %1997 = vmatprep.subr.mxu0 %v1677
        %1998 = vmatpush1.msra.mxu0 %v1676
        %1999 = vmatprep.subr.mxu0 %v1675
        %2000 = vmatpush1.msra.mxu0 %v1674
        %2001 = vmatprep.subr.mxu0 %v1673
        %2002 = vmatpush1.msra.mxu0 %v1672
        %2003 = vmatprep.subr.mxu0 %v1671
        %2004 = vmatpush1.msra.mxu0 %v1670
        %2005 = vmatprep.subr.mxu0 %v1733
        %2006 = vmatpush2.msra.mxu0 %v1732
        %2007 = vmatprep.subr.mxu0 %v1731
        %2008 = vmatpush2.msra.mxu0 %v1730
        %2009 = vmatprep.subr.mxu0 %v1729
        %2010 = vmatpush2.msra.mxu0 %v1728
        %2011 = vmatprep.subr.mxu0 %v1727
        %2012 = vmatpush2.msra.mxu0 %v1726
        %2013 = vmatprep.subr.mxu0 %v1725
        %2014 = vmatpush2.msra.mxu0 %v1724
        %2015 = vmatprep.subr.mxu0 %v1723
        %2016 = vmatpush2.msra.mxu0 %v1722
        %2017 = vmatprep.subr.mxu0 %v1721
        %2018 = vmatpush2.msra.mxu0 %v1720
        %2019 = vmatprep.subr.mxu0 %v1719
        %2020 = vmatpush2.msra.mxu0 %v1718
        %2021 = vmatprep.subr.mxu0 %v1717
        %2022 = vmatpush2.msra.mxu0 %v1716
        %2023 = vmatprep.subr.mxu0 %v1715
        %2024 = vmatpush2.msra.mxu0 %v1714
        %2025 = vmatprep.subr.mxu0 %v1713
        %2026 = vmatpush2.msra.mxu0 %v1712
        %2027 = vmatprep.subr.mxu0 %v1711
        %2028 = vmatpush2.msra.mxu0 %v1710
        %2029 = vmatprep.subr.mxu0 %v1709
        %2030 = vmatpush2.msra.mxu0 %v1708
        %2031 = vmatprep.subr.mxu0 %v1707
        %2032 = vmatpush2.msra.mxu0 %v1706
        %2033 = vmatprep.subr.mxu0 %v1705
        %2034 = vmatpush2.msra.mxu0 %v1704
        %2035 = vmatprep.subr.mxu0 %v1703
        %2036 = vmatpush2.msra.mxu0 %v1702
        %2037 = vmatprep.mubr.f32.mxu0 %v1897
        %2038 = vmatmul.mubr.f32.gmra.mxu0 %v1890
        %v2039 = vpop.f32.mrf.mxu0
        %v2040 = vadd.f32 %v1969, %v2039
        %v2041 = vpop.f32.mrf.mxu0
        %v2042 = vadd.f32 %v1971, %v2041
        %2043 = vdwg.mxu0
        %2044 = vst [vmem:[#allocation4] sm:$0xff] 0.0
        %2045 = vst [vmem:[#allocation4 + $0x8] sm:$0xff] 0.0
        %vm2046 = vcmask 523264
        %2047 = vst.msk [vmem:[#allocation4 + $0x10] sm:$0xff] %vm2046, 0.0
        %2048 = vst [vmem:[#allocation4 + $0x18] sm:$0x3] 0.0
        %2049 = vst [vmem:[#allocation4 + $0x20] sm:$0x3] 0.0
        %vm2050 = vcmask 517120
        %2051 = vst.msk [vmem:[#allocation4 + $0x28] sm:$0x3] %vm2050, 0.0
        %v2052 = vmax.f32 %v2040, 0.0
        %v2053 = vmax.f32 %v2042, 0.0
        %v2056 = vrot.slane %v2052, 7
        %v2057 = vrot.slane %v2053, 7
        %2058 = vrot.lane.b32.xlu0 %v2056, 32
        %v2059 = vpop.permute.xlu0 %2058
        %2060 = vrot.lane.b32.xlu0 %v2057, 32
        %v2061 = vpop.permute.xlu0 %2060
        %v2062 = vsel %vm1472, %v2059, %v2061
        %vm2066 = vcmask 1047809
        %2067 = vst.msk [vmem:[#allocation4] sm:$0xfe] %vm2066, %v2059
        %2068 = vst [vmem:[#allocation4 + $0x8] sm:$0xfe] %v2062
        %vm2069 = vcmask 261121
        %2070 = vst.msk [vmem:[#allocation4 + $0x10] sm:$0xfe] %vm2069, %v2061
        %vm2071 = vcmask 1040640
        %2072 = vst.msk [vmem:[#allocation4 + $0x18] sm:$0x1] %vm2071, %v2059
        %2073 = vst [vmem:[#allocation4 + $0x20] sm:$0x1] %v2062
        %vm2074 = vcmask 253952
        %2075 = vst.msk [vmem:[#allocation4 + $0x28] sm:$0x1] %vm2074, %v2061
        %v2076 = vld [vmem:[#allocation4] sm:$0xff]
        %v2077 = vld [vmem:[#allocation4 + $0x8] sm:$0xff]
        %v2078 = vld [vmem:[#allocation4 + $0x10] sm:$0xff]
        %v2079 = vld [vmem:[#allocation11] sm:$0xff]
        %v2080 = vld [vmem:[#allocation11 + $0x8] sm:$0xff]
        %v2081 = vld [vmem:[#allocation11 + $0x10] sm:$0xff]
        %v2082 = vld [vmem:[#allocation11 + $0x18] sm:$0xff]
        %v2083 = vld [vmem:[#allocation11 + $0x20] sm:$0xff]
        %v2084 = vld [vmem:[#allocation11 + $0x28] sm:$0xff]
        %v2085 = vld [vmem:[#allocation11 + $0x30] sm:$0xff]
        %v2086 = vld [vmem:[#allocation11 + $0x38] sm:$0xff]
        %v2087 = vld [vmem:[#allocation11 + $0x40] sm:$0xff]
        %v2088 = vld [vmem:[#allocation11 + $0x48] sm:$0xff]
        %v2089 = vld [vmem:[#allocation11 + $0x50] sm:$0xff]
        %v2090 = vld [vmem:[#allocation11 + $0x58] sm:$0xff]
        %v2091 = vld [vmem:[#allocation11 + $0x60] sm:$0xff]
        %v2092 = vld [vmem:[#allocation11 + $0x68] sm:$0xff]
        %v2093 = vld [vmem:[#allocation11 + $0x70] sm:$0xff]
        %v2094 = vld [vmem:[#allocation11 + $0x78] sm:$0xff]
        %v2095 = vld [vmem:[#allocation11 + $0x80] sm:$0xff]
        %v2096 = vld [vmem:[#allocation11 + $0x88] sm:$0xff]
        %v2097 = vld [vmem:[#allocation11 + $0x90] sm:$0xff]
        %v2098 = vld [vmem:[#allocation11 + $0x98] sm:$0xff]
        %v2099 = vld [vmem:[#allocation11 + $0xa0] sm:$0xff]
        %v2100 = vld [vmem:[#allocation11 + $0xa8] sm:$0xff]
        %v2101 = vld [vmem:[#allocation11 + $0xb0] sm:$0xff]
        %v2102 = vld [vmem:[#allocation11 + $0xb8] sm:$0xff]
        %v2103 = vld [vmem:[#allocation11 + $0xc0] sm:$0xff]
        %v2104 = vld [vmem:[#allocation11 + $0xc8] sm:$0xff]
        %v2105 = vld [vmem:[#allocation11 + $0xd0] sm:$0xff]
        %v2106 = vld [vmem:[#allocation11 + $0xd8] sm:$0xff]
        %v2107 = vld [vmem:[#allocation11 + $0xe0] sm:$0xff]
        %v2108 = vld [vmem:[#allocation11 + $0xe8] sm:$0xff]
        %v2109 = vld [vmem:[#allocation11 + $0xf0] sm:$0xff]
        %v2110 = vld [vmem:[#allocation11 + $0xf8] sm:$0xff]
        %v2111 = vld [vmem:[#allocation11 + $0x100] sm:$0xff]
        %v2112 = vld [vmem:[#allocation11 + $0x108] sm:$0xff]
        %v2113 = vld [vmem:[#allocation11 + $0x110] sm:$0xff]
        %v2114 = vld [vmem:[#allocation11 + $0x118] sm:$0xff]
        %v2115 = vld [vmem:[#allocation11 + $0x120] sm:$0xff]
        %v2116 = vld [vmem:[#allocation11 + $0x128] sm:$0xff]
        %v2117 = vld [vmem:[#allocation11 + $0x130] sm:$0xff]
        %v2118 = vld [vmem:[#allocation11 + $0x138] sm:$0xff]
        %v2119 = vld [vmem:[#allocation11 + $0x140] sm:$0xff]
        %v2120 = vld [vmem:[#allocation11 + $0x148] sm:$0xff]
        %v2121 = vld [vmem:[#allocation11 + $0x150] sm:$0xff]
        %v2122 = vld [vmem:[#allocation11 + $0x158] sm:$0xff]
        %v2123 = vld [vmem:[#allocation11 + $0x160] sm:$0xff]
        %v2124 = vld [vmem:[#allocation11 + $0x168] sm:$0xff]
        %v2125 = vld [vmem:[#allocation11 + $0x170] sm:$0xff]
        %v2126 = vld [vmem:[#allocation11 + $0x178] sm:$0xff]
        %v2127 = vld [vmem:[#allocation11 + $0x180] sm:$0xff]
        %v2128 = vld [vmem:[#allocation11 + $0x188] sm:$0xff]
        %v2129 = vld [vmem:[#allocation11 + $0x190] sm:$0xff]
        %v2130 = vld [vmem:[#allocation11 + $0x198] sm:$0xff]
        %v2131 = vld [vmem:[#allocation11 + $0x1a0] sm:$0xff]
        %v2132 = vld [vmem:[#allocation11 + $0x1a8] sm:$0xff]
        %v2133 = vld [vmem:[#allocation11 + $0x1b0] sm:$0xff]
        %v2134 = vld [vmem:[#allocation11 + $0x1b8] sm:$0xff]
        %v2135 = vld [vmem:[#allocation11 + $0x1c0] sm:$0xff]
        %v2136 = vld [vmem:[#allocation11 + $0x1c8] sm:$0xff]
        %v2137 = vld [vmem:[#allocation11 + $0x1d0] sm:$0xff]
        %v2138 = vld [vmem:[#allocation11 + $0x1d8] sm:$0xff]
        %v2139 = vld [vmem:[#allocation11 + $0x1e0] sm:$0xff]
        %v2140 = vld [vmem:[#allocation11 + $0x1e8] sm:$0xff]
        %v2141 = vld [vmem:[#allocation11 + $0x1f0] sm:$0xff]
        %v2142 = vld [vmem:[#allocation11 + $0x1f8] sm:$0xff]
        %v2143 = vld [vmem:[#allocation11 + $0x200] sm:$0xff]
        %v2144 = vld [vmem:[#allocation11 + $0x208] sm:$0xff]
        %v2145 = vld [vmem:[#allocation11 + $0x210] sm:$0xff]
        %v2146 = vld [vmem:[#allocation11 + $0x218] sm:$0xff]
        %v2147 = vld [vmem:[#allocation11 + $0x220] sm:$0xff]
        %v2148 = vld [vmem:[#allocation11 + $0x228] sm:$0xff]
        %v2149 = vld [vmem:[#allocation11 + $0x230] sm:$0xff]
        %v2150 = vld [vmem:[#allocation11 + $0x238] sm:$0xff]
        %v2151 = vld [vmem:[#allocation11 + $0x240] sm:$0xff]
        %v2152 = vld [vmem:[#allocation11 + $0x248] sm:$0xff]
        %v2153 = vld [vmem:[#allocation11 + $0x250] sm:$0xff]
        %v2154 = vld [vmem:[#allocation11 + $0x258] sm:$0xff]
        %v2155 = vld [vmem:[#allocation11 + $0x260] sm:$0xff]
        %v2156 = vld [vmem:[#allocation11 + $0x268] sm:$0xff]
        %v2157 = vld [vmem:[#allocation11 + $0x270] sm:$0xff]
        %v2158 = vld [vmem:[#allocation11 + $0x278] sm:$0xff]
        %v2159 = vld [vmem:[#allocation4] sm:$0xfe]
        %v2160 = vld [vmem:[#allocation4 + $0x8] sm:$0xfe]
        %v2161 = vld [vmem:[#allocation4 + $0x10] sm:$0xfe]
        %v2162 = vld [vmem:[#allocation4 + $0x18] sm:$0x1]
        %v2163 = vld [vmem:[#allocation4 + $0x20] sm:$0x1]
        %v2164 = vld [vmem:[#allocation4 + $0x28] sm:$0x1]
        %s2165 = scalar_lea.vmem [#allocation11], 640
        %v2166 = vld [vmem:[%s2165] sm:$0xff]
        %v2167 = vld [vmem:[%s2165 + $0x8] sm:$0xff]
        %v2168 = vld [vmem:[%s2165 + $0x10] sm:$0xff]
        %v2169 = vld [vmem:[%s2165 + $0x18] sm:$0xff]
        %v2170 = vld [vmem:[%s2165 + $0x20] sm:$0xff]
        %v2171 = vld [vmem:[%s2165 + $0x28] sm:$0xff]
        %v2172 = vld [vmem:[%s2165 + $0x30] sm:$0xff]
        %v2173 = vld [vmem:[%s2165 + $0x38] sm:$0xff]
        %v2174 = vld [vmem:[%s2165 + $0x40] sm:$0xff]
        %v2175 = vld [vmem:[%s2165 + $0x48] sm:$0xff]
        %v2176 = vld [vmem:[%s2165 + $0x50] sm:$0xff]
        %v2177 = vld [vmem:[%s2165 + $0x58] sm:$0xff]
        %v2178 = vld [vmem:[%s2165 + $0x60] sm:$0xff]
        %v2179 = vld [vmem:[%s2165 + $0x68] sm:$0xff]
        %v2180 = vld [vmem:[%s2165 + $0x70] sm:$0xff]
        %v2181 = vld [vmem:[%s2165 + $0x78] sm:$0xff]
        %v2182 = vld [vmem:[%s2165 + $0x80] sm:$0xff]
        %v2183 = vld [vmem:[%s2165 + $0x88] sm:$0xff]
        %v2184 = vld [vmem:[%s2165 + $0x90] sm:$0xff]
        %v2185 = vld [vmem:[%s2165 + $0x98] sm:$0xff]
        %v2186 = vld [vmem:[%s2165 + $0xa0] sm:$0xff]
        %v2187 = vld [vmem:[%s2165 + $0xa8] sm:$0xff]
        %v2188 = vld [vmem:[%s2165 + $0xb0] sm:$0xff]
        %v2189 = vld [vmem:[%s2165 + $0xb8] sm:$0xff]
        %v2190 = vld [vmem:[%s2165 + $0xc0] sm:$0xff]
        %v2191 = vld [vmem:[%s2165 + $0xc8] sm:$0xff]
        %v2192 = vld [vmem:[%s2165 + $0xd0] sm:$0xff]
        %v2193 = vld [vmem:[%s2165 + $0xd8] sm:$0xff]
        %v2194 = vld [vmem:[%s2165 + $0xe0] sm:$0xff]
        %v2195 = vld [vmem:[%s2165 + $0xe8] sm:$0xff]
        %v2196 = vld [vmem:[%s2165 + $0xf0] sm:$0xff]
        %v2197 = vld [vmem:[%s2165 + $0xf8] sm:$0xff]
        %v2198 = vld [vmem:[%s2165 + $0x100] sm:$0xff]
        %v2199 = vld [vmem:[%s2165 + $0x108] sm:$0xff]
        %v2200 = vld [vmem:[%s2165 + $0x110] sm:$0xff]
        %v2201 = vld [vmem:[%s2165 + $0x118] sm:$0xff]
        %v2202 = vld [vmem:[%s2165 + $0x120] sm:$0xff]
        %v2203 = vld [vmem:[%s2165 + $0x128] sm:$0xff]
        %v2204 = vld [vmem:[%s2165 + $0x130] sm:$0xff]
        %v2205 = vld [vmem:[%s2165 + $0x138] sm:$0xff]
        %v2206 = vld [vmem:[%s2165 + $0x140] sm:$0xff]
        %v2207 = vld [vmem:[%s2165 + $0x148] sm:$0xff]
        %v2208 = vld [vmem:[%s2165 + $0x150] sm:$0xff]
        %v2209 = vld [vmem:[%s2165 + $0x158] sm:$0xff]
        %v2210 = vld [vmem:[%s2165 + $0x160] sm:$0xff]
        %v2211 = vld [vmem:[%s2165 + $0x168] sm:$0xff]
        %v2212 = vld [vmem:[%s2165 + $0x170] sm:$0xff]
        %v2213 = vld [vmem:[%s2165 + $0x178] sm:$0xff]
        %v2214 = vld [vmem:[%s2165 + $0x180] sm:$0xff]
        %v2215 = vld [vmem:[%s2165 + $0x188] sm:$0xff]
        %v2216 = vld [vmem:[%s2165 + $0x190] sm:$0xff]
        %v2217 = vld [vmem:[%s2165 + $0x198] sm:$0xff]
        %v2218 = vld [vmem:[%s2165 + $0x1a0] sm:$0xff]
        %v2219 = vld [vmem:[%s2165 + $0x1a8] sm:$0xff]
        %v2220 = vld [vmem:[%s2165 + $0x1b0] sm:$0xff]
        %v2221 = vld [vmem:[%s2165 + $0x1b8] sm:$0xff]
        %v2222 = vld [vmem:[%s2165 + $0x1c0] sm:$0xff]
        %v2223 = vld [vmem:[%s2165 + $0x1c8] sm:$0xff]
        %v2224 = vld [vmem:[%s2165 + $0x1d0] sm:$0xff]
        %v2225 = vld [vmem:[%s2165 + $0x1d8] sm:$0xff]
        %v2226 = vld [vmem:[%s2165 + $0x1e0] sm:$0xff]
        %v2227 = vld [vmem:[%s2165 + $0x1e8] sm:$0xff]
        %v2228 = vld [vmem:[%s2165 + $0x1f0] sm:$0xff]
        %v2229 = vld [vmem:[%s2165 + $0x1f8] sm:$0xff]
        %v2230 = vld [vmem:[%s2165 + $0x200] sm:$0xff]
        %v2231 = vld [vmem:[%s2165 + $0x208] sm:$0xff]
        %v2232 = vld [vmem:[%s2165 + $0x210] sm:$0xff]
        %v2233 = vld [vmem:[%s2165 + $0x218] sm:$0xff]
        %v2234 = vld [vmem:[%s2165 + $0x220] sm:$0xff]
        %v2235 = vld [vmem:[%s2165 + $0x228] sm:$0xff]
        %v2236 = vld [vmem:[%s2165 + $0x230] sm:$0xff]
        %v2237 = vld [vmem:[%s2165 + $0x238] sm:$0xff]
        %v2238 = vld [vmem:[%s2165 + $0x240] sm:$0xff]
        %v2239 = vld [vmem:[%s2165 + $0x248] sm:$0xff]
        %v2240 = vld [vmem:[%s2165 + $0x250] sm:$0xff]
        %v2241 = vld [vmem:[%s2165 + $0x258] sm:$0xff]
        %v2242 = vld [vmem:[%s2165 + $0x260] sm:$0xff]
        %v2243 = vld [vmem:[%s2165 + $0x268] sm:$0xff]
        %v2244 = vld [vmem:[%s2165 + $0x270] sm:$0xff]
        %v2245 = vld [vmem:[%s2165 + $0x278] sm:$0xff]
        %vm2252 = vcmask 1046528
        %v2253 = vrot.slane %v2159, 1
        %v2254 = vrot.slane %v2162, 1
        %v2255 = vsel %vm2252, %v2253, %v2254
        %v2256 = vrot.slane %v2160, 1
        %v2257 = vrot.slane %v2163, 1
        %v2258 = vsel %vm2252, %v2256, %v2257
        %v2259 = vrot.slane %v2161, 1
        %v2260 = vrot.slane %v2164, 1
        %v2261 = vsel %vm2252, %v2259, %v2260
        %v2264 = vsel %vm2046, %v2261, 0
        %2266 = vmatprep.subr.mxu0 %v2197
        %2267 = vmatpush1.msra.mxu0 %v2196
        %2268 = vmatprep.subr.mxu0 %v2195
        %2269 = vmatpush1.msra.mxu0 %v2194
        %2270 = vmatprep.subr.mxu0 %v2193
        %2271 = vmatpush1.msra.mxu0 %v2192
        %2272 = vmatprep.subr.mxu0 %v2191
        %2273 = vmatpush1.msra.mxu0 %v2190
        %2274 = vmatprep.subr.mxu0 %v2189
        %2275 = vmatpush1.msra.mxu0 %v2188
        %2276 = vmatprep.subr.mxu0 %v2187
        %2277 = vmatpush1.msra.mxu0 %v2186
        %2278 = vmatprep.subr.mxu0 %v2185
        %2279 = vmatpush1.msra.mxu0 %v2184
        %2280 = vmatprep.subr.mxu0 %v2183
        %2281 = vmatpush1.msra.mxu0 %v2182
        %2282 = vmatprep.subr.mxu0 %v2181
        %2283 = vmatpush1.msra.mxu0 %v2180
        %2284 = vmatprep.subr.mxu0 %v2179
        %2285 = vmatpush1.msra.mxu0 %v2178
        %2286 = vmatprep.subr.mxu0 %v2177
        %2287 = vmatpush1.msra.mxu0 %v2176
        %2288 = vmatprep.subr.mxu0 %v2175
        %2289 = vmatpush1.msra.mxu0 %v2174
        %2290 = vmatprep.subr.mxu0 %v2173
        %2291 = vmatpush1.msra.mxu0 %v2172
        %2292 = vmatprep.subr.mxu0 %v2171
        %2293 = vmatpush1.msra.mxu0 %v2170
        %2294 = vmatprep.subr.mxu0 %v2169
        %2295 = vmatpush1.msra.mxu0 %v2168
        %2296 = vmatprep.subr.mxu0 %v2167
        %2297 = vmatpush1.msra.mxu0 %v2166
        %2298 = vmatprep.subr.mxu0 %v2229
        %2299 = vmatpush2.msra.mxu0 %v2228
        %2300 = vmatprep.subr.mxu0 %v2227
        %2301 = vmatpush2.msra.mxu0 %v2226
        %2302 = vmatprep.subr.mxu0 %v2225
        %2303 = vmatpush2.msra.mxu0 %v2224
        %2304 = vmatprep.subr.mxu0 %v2223
        %2305 = vmatpush2.msra.mxu0 %v2222
        %2306 = vmatprep.subr.mxu0 %v2221
        %2307 = vmatpush2.msra.mxu0 %v2220
        %2308 = vmatprep.subr.mxu0 %v2219
        %2309 = vmatpush2.msra.mxu0 %v2218
        %2310 = vmatprep.subr.mxu0 %v2217
        %2311 = vmatpush2.msra.mxu0 %v2216
        %2312 = vmatprep.subr.mxu0 %v2215
        %2313 = vmatpush2.msra.mxu0 %v2214
        %2314 = vmatprep.subr.mxu0 %v2213
        %2315 = vmatpush2.msra.mxu0 %v2212
        %2316 = vmatprep.subr.mxu0 %v2211
        %2317 = vmatpush2.msra.mxu0 %v2210
        %2318 = vmatprep.subr.mxu0 %v2209
        %2319 = vmatpush2.msra.mxu0 %v2208
        %2320 = vmatprep.subr.mxu0 %v2207
        %2321 = vmatpush2.msra.mxu0 %v2206
        %2322 = vmatprep.subr.mxu0 %v2205
        %2323 = vmatpush2.msra.mxu0 %v2204
        %2324 = vmatprep.subr.mxu0 %v2203
        %2325 = vmatpush2.msra.mxu0 %v2202
        %2326 = vmatprep.subr.mxu0 %v2201
        %2327 = vmatpush2.msra.mxu0 %v2200
        %2328 = vmatprep.subr.mxu0 %v2199
        %2329 = vmatpush2.msra.mxu0 %v2198
        %2330 = vmatprep.mubr.f32.mxu0 %v2258
        %2331 = vmatmul.mubr.f32.gmra.mxu0 %v2255
        %v2332 = vpop.f32.mrf.mxu0
        %v2333 = vadd.f32 0.0, %v2332
        %v2334 = vpop.f32.mrf.mxu0
        %v2335 = vadd.f32 0.0, %v2334
        %2336 = vdwg.mxu0
        %2337 = vmatprep.subr.mxu0 0.0
        %2338 = vmatpush1.msra.mxu0 0.0
        %2339 = vmatprep.subr.mxu0 0.0
        %2340 = vmatpush1.msra.mxu0 0.0
        %2341 = vmatprep.subr.mxu0 0.0
        %2342 = vmatpush1.msra.mxu0 0.0
        %2343 = vmatprep.subr.mxu0 0.0
        %2344 = vmatpush1.msra.mxu0 0.0
        %2345 = vmatprep.subr.mxu0 0.0
        %2346 = vmatpush1.msra.mxu0 0.0
        %2347 = vmatprep.subr.mxu0 0.0
        %2348 = vmatpush1.msra.mxu0 0.0
        %2349 = vmatprep.subr.mxu0 0.0
        %2350 = vmatpush1.msra.mxu0 0.0
        %2351 = vmatprep.subr.mxu0 0.0
        %2352 = vmatpush1.msra.mxu0 0.0
        %2353 = vmatprep.subr.mxu0 %v2245
        %2354 = vmatpush1.msra.mxu0 %v2244
        %2355 = vmatprep.subr.mxu0 %v2243
        %2356 = vmatpush1.msra.mxu0 %v2242
        %2357 = vmatprep.subr.mxu0 %v2241
        %2358 = vmatpush1.msra.mxu0 %v2240
        %2359 = vmatprep.subr.mxu0 %v2239
        %2360 = vmatpush1.msra.mxu0 %v2238
        %2361 = vmatprep.subr.mxu0 %v2237
        %2362 = vmatpush1.msra.mxu0 %v2236
        %2363 = vmatprep.subr.mxu0 %v2235
        %2364 = vmatpush1.msra.mxu0 %v2234
        %2365 = vmatprep.subr.mxu0 %v2233
        %2366 = vmatpush1.msra.mxu0 %v2232
        %2367 = vmatprep.subr.mxu0 %v2231
        %2368 = vmatpush1.msra.mxu0 %v2230
        %2369 = vmatprep.subr.mxu0 0.0
        %2370 = vmatpush2.msra.mxu0 0.0
        %2371 = vmatprep.subr.mxu0 0.0
        %2372 = vmatpush2.msra.mxu0 0.0
        %2373 = vmatprep.subr.mxu0 0.0
        %2374 = vmatpush2.msra.mxu0 0.0
        %2375 = vmatprep.subr.mxu0 0.0
        %2376 = vmatpush2.msra.mxu0 0.0
        %2377 = vmatprep.subr.mxu0 0.0
        %2378 = vmatpush2.msra.mxu0 0.0
        %2379 = vmatprep.subr.mxu0 0.0
        %2380 = vmatpush2.msra.mxu0 0.0
        %2381 = vmatprep.subr.mxu0 0.0
        %2382 = vmatpush2.msra.mxu0 0.0
        %2383 = vmatprep.subr.mxu0 0.0
        %2384 = vmatpush2.msra.mxu0 0.0
        %2385 = vmatprep.subr.mxu0 0.0
        %2386 = vmatpush2.msra.mxu0 0.0
        %2387 = vmatprep.subr.mxu0 0.0
        %2388 = vmatpush2.msra.mxu0 0.0
        %2389 = vmatprep.subr.mxu0 0.0
        %2390 = vmatpush2.msra.mxu0 0.0
        %2391 = vmatprep.subr.mxu0 0.0
        %2392 = vmatpush2.msra.mxu0 0.0
        %2393 = vmatprep.subr.mxu0 0.0
        %2394 = vmatpush2.msra.mxu0 0.0
        %2395 = vmatprep.subr.mxu0 0.0
        %2396 = vmatpush2.msra.mxu0 0.0
        %2397 = vmatprep.subr.mxu0 0.0
        %2398 = vmatpush2.msra.mxu0 0.0
        %2399 = vmatprep.subr.mxu0 0.0
        %2400 = vmatpush2.msra.mxu0 0.0
        %2401 = vmatprep.mubr.f32.mxu0 0.0
        %2402 = vmatmul.mubr.f32.gmra.mxu0 %v2264
        %v2403 = vpop.f32.mrf.mxu0
        %v2404 = vadd.f32 %v2333, %v2403
        %v2405 = vpop.f32.mrf.mxu0
        %v2406 = vadd.f32 %v2335, %v2405
        %2407 = vdwg.mxu0
        %v2409 = vsel %vm2046, %v2078, 0
        %2411 = vmatprep.subr.mxu0 %v2110
        %2412 = vmatpush1.msra.mxu0 %v2109
        %2413 = vmatprep.subr.mxu0 %v2108
        %2414 = vmatpush1.msra.mxu0 %v2107
        %2415 = vmatprep.subr.mxu0 %v2106
        %2416 = vmatpush1.msra.mxu0 %v2105
        %2417 = vmatprep.subr.mxu0 %v2104
        %2418 = vmatpush1.msra.mxu0 %v2103
        %2419 = vmatprep.subr.mxu0 %v2102
        %2420 = vmatpush1.msra.mxu0 %v2101
        %2421 = vmatprep.subr.mxu0 %v2100
        %2422 = vmatpush1.msra.mxu0 %v2099
        %2423 = vmatprep.subr.mxu0 %v2098
        %2424 = vmatpush1.msra.mxu0 %v2097
        %2425 = vmatprep.subr.mxu0 %v2096
        %2426 = vmatpush1.msra.mxu0 %v2095
        %2427 = vmatprep.subr.mxu0 %v2094
        %2428 = vmatpush1.msra.mxu0 %v2093
        %2429 = vmatprep.subr.mxu0 %v2092
        %2430 = vmatpush1.msra.mxu0 %v2091
        %2431 = vmatprep.subr.mxu0 %v2090
        %2432 = vmatpush1.msra.mxu0 %v2089
        %2433 = vmatprep.subr.mxu0 %v2088
        %2434 = vmatpush1.msra.mxu0 %v2087
        %2435 = vmatprep.subr.mxu0 %v2086
        %2436 = vmatpush1.msra.mxu0 %v2085
        %2437 = vmatprep.subr.mxu0 %v2084
        %2438 = vmatpush1.msra.mxu0 %v2083
        %2439 = vmatprep.subr.mxu0 %v2082
        %2440 = vmatpush1.msra.mxu0 %v2081
        %2441 = vmatprep.subr.mxu0 %v2080
        %2442 = vmatpush1.msra.mxu0 %v2079
        %2443 = vmatprep.subr.mxu0 %v2142
        %2444 = vmatpush2.msra.mxu0 %v2141
        %2445 = vmatprep.subr.mxu0 %v2140
        %2446 = vmatpush2.msra.mxu0 %v2139
        %2447 = vmatprep.subr.mxu0 %v2138
        %2448 = vmatpush2.msra.mxu0 %v2137
        %2449 = vmatprep.subr.mxu0 %v2136
        %2450 = vmatpush2.msra.mxu0 %v2135
        %2451 = vmatprep.subr.mxu0 %v2134
        %2452 = vmatpush2.msra.mxu0 %v2133
        %2453 = vmatprep.subr.mxu0 %v2132
        %2454 = vmatpush2.msra.mxu0 %v2131
        %2455 = vmatprep.subr.mxu0 %v2130
        %2456 = vmatpush2.msra.mxu0 %v2129
        %2457 = vmatprep.subr.mxu0 %v2128
        %2458 = vmatpush2.msra.mxu0 %v2127
        %2459 = vmatprep.subr.mxu0 %v2126
        %2460 = vmatpush2.msra.mxu0 %v2125
        %2461 = vmatprep.subr.mxu0 %v2124
        %2462 = vmatpush2.msra.mxu0 %v2123
        %2463 = vmatprep.subr.mxu0 %v2122
        %2464 = vmatpush2.msra.mxu0 %v2121
        %2465 = vmatprep.subr.mxu0 %v2120
        %2466 = vmatpush2.msra.mxu0 %v2119
        %2467 = vmatprep.subr.mxu0 %v2118
        %2468 = vmatpush2.msra.mxu0 %v2117
        %2469 = vmatprep.subr.mxu0 %v2116
        %2470 = vmatpush2.msra.mxu0 %v2115
        %2471 = vmatprep.subr.mxu0 %v2114
        %2472 = vmatpush2.msra.mxu0 %v2113
        %2473 = vmatprep.subr.mxu0 %v2112
        %2474 = vmatpush2.msra.mxu0 %v2111
        %2475 = vmatprep.mubr.f32.mxu0 %v2077
        %2476 = vmatmul.mubr.f32.gmra.mxu0 %v2076
        %v2477 = vpop.f32.mrf.mxu0
        %v2478 = vadd.f32 %v2404, %v2477
        %v2479 = vpop.f32.mrf.mxu0
        %v2480 = vadd.f32 %v2406, %v2479
        %2481 = vdwg.mxu0
        %2482 = vmatprep.subr.mxu0 0.0
        %2483 = vmatpush1.msra.mxu0 0.0
        %2484 = vmatprep.subr.mxu0 0.0
        %2485 = vmatpush1.msra.mxu0 0.0
        %2486 = vmatprep.subr.mxu0 0.0
        %2487 = vmatpush1.msra.mxu0 0.0
        %2488 = vmatprep.subr.mxu0 0.0
        %2489 = vmatpush1.msra.mxu0 0.0
        %2490 = vmatprep.subr.mxu0 0.0
        %2491 = vmatpush1.msra.mxu0 0.0
        %2492 = vmatprep.subr.mxu0 0.0
        %2493 = vmatpush1.msra.mxu0 0.0
        %2494 = vmatprep.subr.mxu0 0.0
        %2495 = vmatpush1.msra.mxu0 0.0
        %2496 = vmatprep.subr.mxu0 0.0
        %2497 = vmatpush1.msra.mxu0 0.0
        %2498 = vmatprep.subr.mxu0 %v2158
        %2499 = vmatpush1.msra.mxu0 %v2157
        %2500 = vmatprep.subr.mxu0 %v2156
        %2501 = vmatpush1.msra.mxu0 %v2155
        %2502 = vmatprep.subr.mxu0 %v2154
        %2503 = vmatpush1.msra.mxu0 %v2153
        %2504 = vmatprep.subr.mxu0 %v2152
        %2505 = vmatpush1.msra.mxu0 %v2151
        %2506 = vmatprep.subr.mxu0 %v2150
        %2507 = vmatpush1.msra.mxu0 %v2149
        %2508 = vmatprep.subr.mxu0 %v2148
        %2509 = vmatpush1.msra.mxu0 %v2147
        %2510 = vmatprep.subr.mxu0 %v2146
        %2511 = vmatpush1.msra.mxu0 %v2145
        %2512 = vmatprep.subr.mxu0 %v2144
        %2513 = vmatpush1.msra.mxu0 %v2143
        %2514 = vmatprep.subr.mxu0 0.0
        %2515 = vmatpush2.msra.mxu0 0.0
        %2516 = vmatprep.subr.mxu0 0.0
        %2517 = vmatpush2.msra.mxu0 0.0
        %2518 = vmatprep.subr.mxu0 0.0
        %2519 = vmatpush2.msra.mxu0 0.0
        %2520 = vmatprep.subr.mxu0 0.0
        %2521 = vmatpush2.msra.mxu0 0.0
        %2522 = vmatprep.subr.mxu0 0.0
        %2523 = vmatpush2.msra.mxu0 0.0
        %2524 = vmatprep.subr.mxu0 0.0
        %2525 = vmatpush2.msra.mxu0 0.0
        %2526 = vmatprep.subr.mxu0 0.0
        %2527 = vmatpush2.msra.mxu0 0.0
        %2528 = vmatprep.subr.mxu0 0.0
        %2529 = vmatpush2.msra.mxu0 0.0
        %2530 = vmatprep.subr.mxu0 0.0
        %2531 = vmatpush2.msra.mxu0 0.0
        %2532 = vmatprep.subr.mxu0 0.0
        %2533 = vmatpush2.msra.mxu0 0.0
        %2534 = vmatprep.subr.mxu0 0.0
        %2535 = vmatpush2.msra.mxu0 0.0
        %2536 = vmatprep.subr.mxu0 0.0
        %2537 = vmatpush2.msra.mxu0 0.0
        %2538 = vmatprep.subr.mxu0 0.0
        %2539 = vmatpush2.msra.mxu0 0.0
        %2540 = vmatprep.subr.mxu0 0.0
        %2541 = vmatpush2.msra.mxu0 0.0
        %2542 = vmatprep.subr.mxu0 0.0
        %2543 = vmatpush2.msra.mxu0 0.0
        %2544 = vmatprep.subr.mxu0 0.0
        %2545 = vmatpush2.msra.mxu0 0.0
        %2546 = vmatprep.mubr.f32.mxu0 0.0
        %2547 = vmatmul.mubr.f32.gmra.mxu0 %v2409
        %v2548 = vpop.f32.mrf.mxu0
        %v2549 = vadd.f32 %v2478, %v2548
        %v2550 = vpop.f32.mrf.mxu0
        %v2551 = vadd.f32 %v2480, %v2550
        %2552 = vdwg.mxu0
        %v2553 = vld [vmem:[#allocation4] sm:$0xfc]
        %v2554 = vld [vmem:[#allocation4 + $0x8] sm:$0xfc]
        %v2555 = vld [vmem:[#allocation4 + $0x10] sm:$0xfc]
        %v2556 = vld [vmem:[#allocation4 + $0x18] sm:$0x3]
        %v2557 = vld [vmem:[#allocation4 + $0x20] sm:$0x3]
        %v2558 = vld [vmem:[#allocation4 + $0x28] sm:$0x3]
        %s2559 = scalar_lea.vmem [#allocation11], 1280
        %v2560 = vld [vmem:[%s2559] sm:$0xff]
        %v2561 = vld [vmem:[%s2559 + $0x8] sm:$0xff]
        %v2562 = vld [vmem:[%s2559 + $0x10] sm:$0xff]
        %v2563 = vld [vmem:[%s2559 + $0x18] sm:$0xff]
        %v2564 = vld [vmem:[%s2559 + $0x20] sm:$0xff]
        %v2565 = vld [vmem:[%s2559 + $0x28] sm:$0xff]
        %v2566 = vld [vmem:[%s2559 + $0x30] sm:$0xff]
        %v2567 = vld [vmem:[%s2559 + $0x38] sm:$0xff]
        %v2568 = vld [vmem:[%s2559 + $0x40] sm:$0xff]
        %v2569 = vld [vmem:[%s2559 + $0x48] sm:$0xff]
        %v2570 = vld [vmem:[%s2559 + $0x50] sm:$0xff]
        %v2571 = vld [vmem:[%s2559 + $0x58] sm:$0xff]
        %v2572 = vld [vmem:[%s2559 + $0x60] sm:$0xff]
        %v2573 = vld [vmem:[%s2559 + $0x68] sm:$0xff]
        %v2574 = vld [vmem:[%s2559 + $0x70] sm:$0xff]
        %v2575 = vld [vmem:[%s2559 + $0x78] sm:$0xff]
        %v2576 = vld [vmem:[%s2559 + $0x80] sm:$0xff]
        %v2577 = vld [vmem:[%s2559 + $0x88] sm:$0xff]
        %v2578 = vld [vmem:[%s2559 + $0x90] sm:$0xff]
        %v2579 = vld [vmem:[%s2559 + $0x98] sm:$0xff]
        %v2580 = vld [vmem:[%s2559 + $0xa0] sm:$0xff]
        %v2581 = vld [vmem:[%s2559 + $0xa8] sm:$0xff]
        %v2582 = vld [vmem:[%s2559 + $0xb0] sm:$0xff]
        %v2583 = vld [vmem:[%s2559 + $0xb8] sm:$0xff]
        %v2584 = vld [vmem:[%s2559 + $0xc0] sm:$0xff]
        %v2585 = vld [vmem:[%s2559 + $0xc8] sm:$0xff]
        %v2586 = vld [vmem:[%s2559 + $0xd0] sm:$0xff]
        %v2587 = vld [vmem:[%s2559 + $0xd8] sm:$0xff]
        %v2588 = vld [vmem:[%s2559 + $0xe0] sm:$0xff]
        %v2589 = vld [vmem:[%s2559 + $0xe8] sm:$0xff]
        %v2590 = vld [vmem:[%s2559 + $0xf0] sm:$0xff]
        %v2591 = vld [vmem:[%s2559 + $0xf8] sm:$0xff]
        %v2592 = vld [vmem:[%s2559 + $0x100] sm:$0xff]
        %v2593 = vld [vmem:[%s2559 + $0x108] sm:$0xff]
        %v2594 = vld [vmem:[%s2559 + $0x110] sm:$0xff]
        %v2595 = vld [vmem:[%s2559 + $0x118] sm:$0xff]
        %v2596 = vld [vmem:[%s2559 + $0x120] sm:$0xff]
        %v2597 = vld [vmem:[%s2559 + $0x128] sm:$0xff]
        %v2598 = vld [vmem:[%s2559 + $0x130] sm:$0xff]
        %v2599 = vld [vmem:[%s2559 + $0x138] sm:$0xff]
        %v2600 = vld [vmem:[%s2559 + $0x140] sm:$0xff]
        %v2601 = vld [vmem:[%s2559 + $0x148] sm:$0xff]
        %v2602 = vld [vmem:[%s2559 + $0x150] sm:$0xff]
        %v2603 = vld [vmem:[%s2559 + $0x158] sm:$0xff]
        %v2604 = vld [vmem:[%s2559 + $0x160] sm:$0xff]
        %v2605 = vld [vmem:[%s2559 + $0x168] sm:$0xff]
        %v2606 = vld [vmem:[%s2559 + $0x170] sm:$0xff]
        %v2607 = vld [vmem:[%s2559 + $0x178] sm:$0xff]
        %v2608 = vld [vmem:[%s2559 + $0x180] sm:$0xff]
        %v2609 = vld [vmem:[%s2559 + $0x188] sm:$0xff]
        %v2610 = vld [vmem:[%s2559 + $0x190] sm:$0xff]
        %v2611 = vld [vmem:[%s2559 + $0x198] sm:$0xff]
        %v2612 = vld [vmem:[%s2559 + $0x1a0] sm:$0xff]
        %v2613 = vld [vmem:[%s2559 + $0x1a8] sm:$0xff]
        %v2614 = vld [vmem:[%s2559 + $0x1b0] sm:$0xff]
        %v2615 = vld [vmem:[%s2559 + $0x1b8] sm:$0xff]
        %v2616 = vld [vmem:[%s2559 + $0x1c0] sm:$0xff]
        %v2617 = vld [vmem:[%s2559 + $0x1c8] sm:$0xff]
        %v2618 = vld [vmem:[%s2559 + $0x1d0] sm:$0xff]
        %v2619 = vld [vmem:[%s2559 + $0x1d8] sm:$0xff]
        %v2620 = vld [vmem:[%s2559 + $0x1e0] sm:$0xff]
        %v2621 = vld [vmem:[%s2559 + $0x1e8] sm:$0xff]
        %v2622 = vld [vmem:[%s2559 + $0x1f0] sm:$0xff]
        %v2623 = vld [vmem:[%s2559 + $0x1f8] sm:$0xff]
        %v2624 = vld [vmem:[%s2559 + $0x200] sm:$0xff]
        %v2625 = vld [vmem:[%s2559 + $0x208] sm:$0xff]
        %v2626 = vld [vmem:[%s2559 + $0x210] sm:$0xff]
        %v2627 = vld [vmem:[%s2559 + $0x218] sm:$0xff]
        %v2628 = vld [vmem:[%s2559 + $0x220] sm:$0xff]
        %v2629 = vld [vmem:[%s2559 + $0x228] sm:$0xff]
        %v2630 = vld [vmem:[%s2559 + $0x230] sm:$0xff]
        %v2631 = vld [vmem:[%s2559 + $0x238] sm:$0xff]
        %v2632 = vld [vmem:[%s2559 + $0x240] sm:$0xff]
        %v2633 = vld [vmem:[%s2559 + $0x248] sm:$0xff]
        %v2634 = vld [vmem:[%s2559 + $0x250] sm:$0xff]
        %v2635 = vld [vmem:[%s2559 + $0x258] sm:$0xff]
        %v2636 = vld [vmem:[%s2559 + $0x260] sm:$0xff]
        %v2637 = vld [vmem:[%s2559 + $0x268] sm:$0xff]
        %v2638 = vld [vmem:[%s2559 + $0x270] sm:$0xff]
        %v2639 = vld [vmem:[%s2559 + $0x278] sm:$0xff]
        %vm2646 = vcmask 1045504
        %v2647 = vrot.slane %v2553, 2
        %v2648 = vrot.slane %v2556, 2
        %v2649 = vsel %vm2646, %v2647, %v2648
        %v2650 = vrot.slane %v2554, 2
        %v2651 = vrot.slane %v2557, 2
        %v2652 = vsel %vm2646, %v2650, %v2651
        %v2653 = vrot.slane %v2555, 2
        %v2654 = vrot.slane %v2558, 2
        %v2655 = vsel %vm2646, %v2653, %v2654
        %v2658 = vsel %vm2046, %v2655, 0
        %2660 = vmatprep.subr.mxu0 %v2591
        %2661 = vmatpush1.msra.mxu0 %v2590
        %2662 = vmatprep.subr.mxu0 %v2589
        %2663 = vmatpush1.msra.mxu0 %v2588
        %2664 = vmatprep.subr.mxu0 %v2587
        %2665 = vmatpush1.msra.mxu0 %v2586
        %2666 = vmatprep.subr.mxu0 %v2585
        %2667 = vmatpush1.msra.mxu0 %v2584
        %2668 = vmatprep.subr.mxu0 %v2583
        %2669 = vmatpush1.msra.mxu0 %v2582
        %2670 = vmatprep.subr.mxu0 %v2581
        %2671 = vmatpush1.msra.mxu0 %v2580
        %2672 = vmatprep.subr.mxu0 %v2579
        %2673 = vmatpush1.msra.mxu0 %v2578
        %2674 = vmatprep.subr.mxu0 %v2577
        %2675 = vmatpush1.msra.mxu0 %v2576
        %2676 = vmatprep.subr.mxu0 %v2575
        %2677 = vmatpush1.msra.mxu0 %v2574
        %2678 = vmatprep.subr.mxu0 %v2573
        %2679 = vmatpush1.msra.mxu0 %v2572
        %2680 = vmatprep.subr.mxu0 %v2571
        %2681 = vmatpush1.msra.mxu0 %v2570
        %2682 = vmatprep.subr.mxu0 %v2569
        %2683 = vmatpush1.msra.mxu0 %v2568
        %2684 = vmatprep.subr.mxu0 %v2567
        %2685 = vmatpush1.msra.mxu0 %v2566
        %2686 = vmatprep.subr.mxu0 %v2565
        %2687 = vmatpush1.msra.mxu0 %v2564
        %2688 = vmatprep.subr.mxu0 %v2563
        %2689 = vmatpush1.msra.mxu0 %v2562
        %2690 = vmatprep.subr.mxu0 %v2561
        %2691 = vmatpush1.msra.mxu0 %v2560
        %2692 = vmatprep.subr.mxu0 %v2623
        %2693 = vmatpush2.msra.mxu0 %v2622
        %2694 = vmatprep.subr.mxu0 %v2621
        %2695 = vmatpush2.msra.mxu0 %v2620
        %2696 = vmatprep.subr.mxu0 %v2619
        %2697 = vmatpush2.msra.mxu0 %v2618
        %2698 = vmatprep.subr.mxu0 %v2617
        %2699 = vmatpush2.msra.mxu0 %v2616
        %2700 = vmatprep.subr.mxu0 %v2615
        %2701 = vmatpush2.msra.mxu0 %v2614
        %2702 = vmatprep.subr.mxu0 %v2613
        %2703 = vmatpush2.msra.mxu0 %v2612
        %2704 = vmatprep.subr.mxu0 %v2611
        %2705 = vmatpush2.msra.mxu0 %v2610
        %2706 = vmatprep.subr.mxu0 %v2609
        %2707 = vmatpush2.msra.mxu0 %v2608
        %2708 = vmatprep.subr.mxu0 %v2607
        %2709 = vmatpush2.msra.mxu0 %v2606
        %2710 = vmatprep.subr.mxu0 %v2605
        %2711 = vmatpush2.msra.mxu0 %v2604
        %2712 = vmatprep.subr.mxu0 %v2603
        %2713 = vmatpush2.msra.mxu0 %v2602
        %2714 = vmatprep.subr.mxu0 %v2601
        %2715 = vmatpush2.msra.mxu0 %v2600
        %2716 = vmatprep.subr.mxu0 %v2599
        %2717 = vmatpush2.msra.mxu0 %v2598
        %2718 = vmatprep.subr.mxu0 %v2597
        %2719 = vmatpush2.msra.mxu0 %v2596
        %2720 = vmatprep.subr.mxu0 %v2595
        %2721 = vmatpush2.msra.mxu0 %v2594
        %2722 = vmatprep.subr.mxu0 %v2593
        %2723 = vmatpush2.msra.mxu0 %v2592
        %2724 = vmatprep.mubr.f32.mxu0 %v2652
        %2725 = vmatmul.mubr.f32.gmra.mxu0 %v2649
        %v2726 = vpop.f32.mrf.mxu0
        %v2727 = vadd.f32 0.0, %v2726
        %v2728 = vpop.f32.mrf.mxu0
        %v2729 = vadd.f32 0.0, %v2728
        %2730 = vdwg.mxu0
        %2731 = vmatprep.subr.mxu0 0.0
        %2732 = vmatpush1.msra.mxu0 0.0
        %2733 = vmatprep.subr.mxu0 0.0
        %2734 = vmatpush1.msra.mxu0 0.0
        %2735 = vmatprep.subr.mxu0 0.0
        %2736 = vmatpush1.msra.mxu0 0.0
        %2737 = vmatprep.subr.mxu0 0.0
        %2738 = vmatpush1.msra.mxu0 0.0
        %2739 = vmatprep.subr.mxu0 0.0
        %2740 = vmatpush1.msra.mxu0 0.0
        %2741 = vmatprep.subr.mxu0 0.0
        %2742 = vmatpush1.msra.mxu0 0.0
        %2743 = vmatprep.subr.mxu0 0.0
        %2744 = vmatpush1.msra.mxu0 0.0
        %2745 = vmatprep.subr.mxu0 0.0
        %2746 = vmatpush1.msra.mxu0 0.0
        %2747 = vmatprep.subr.mxu0 %v2639
        %2748 = vmatpush1.msra.mxu0 %v2638
        %2749 = vmatprep.subr.mxu0 %v2637
        %2750 = vmatpush1.msra.mxu0 %v2636
        %2751 = vmatprep.subr.mxu0 %v2635
        %2752 = vmatpush1.msra.mxu0 %v2634
        %2753 = vmatprep.subr.mxu0 %v2633
        %2754 = vmatpush1.msra.mxu0 %v2632
        %2755 = vmatprep.subr.mxu0 %v2631
        %2756 = vmatpush1.msra.mxu0 %v2630
        %2757 = vmatprep.subr.mxu0 %v2629
        %2758 = vmatpush1.msra.mxu0 %v2628
        %2759 = vmatprep.subr.mxu0 %v2627
        %2760 = vmatpush1.msra.mxu0 %v2626
        %2761 = vmatprep.subr.mxu0 %v2625
        %2762 = vmatpush1.msra.mxu0 %v2624
        %2763 = vmatprep.subr.mxu0 0.0
        %2764 = vmatpush2.msra.mxu0 0.0
        %2765 = vmatprep.subr.mxu0 0.0
        %2766 = vmatpush2.msra.mxu0 0.0
        %2767 = vmatprep.subr.mxu0 0.0
        %2768 = vmatpush2.msra.mxu0 0.0
        %2769 = vmatprep.subr.mxu0 0.0
        %2770 = vmatpush2.msra.mxu0 0.0
        %2771 = vmatprep.subr.mxu0 0.0
        %2772 = vmatpush2.msra.mxu0 0.0
        %2773 = vmatprep.subr.mxu0 0.0
        %2774 = vmatpush2.msra.mxu0 0.0
        %2775 = vmatprep.subr.mxu0 0.0
        %2776 = vmatpush2.msra.mxu0 0.0
        %2777 = vmatprep.subr.mxu0 0.0
        %2778 = vmatpush2.msra.mxu0 0.0
        %2779 = vmatprep.subr.mxu0 0.0
        %2780 = vmatpush2.msra.mxu0 0.0
        %2781 = vmatprep.subr.mxu0 0.0
        %2782 = vmatpush2.msra.mxu0 0.0
        %2783 = vmatprep.subr.mxu0 0.0
        %2784 = vmatpush2.msra.mxu0 0.0
        %2785 = vmatprep.subr.mxu0 0.0
        %2786 = vmatpush2.msra.mxu0 0.0
        %2787 = vmatprep.subr.mxu0 0.0
        %2788 = vmatpush2.msra.mxu0 0.0
        %2789 = vmatprep.subr.mxu0 0.0
        %2790 = vmatpush2.msra.mxu0 0.0
        %2791 = vmatprep.subr.mxu0 0.0
        %2792 = vmatpush2.msra.mxu0 0.0
        %2793 = vmatprep.subr.mxu0 0.0
        %2794 = vmatpush2.msra.mxu0 0.0
        %2795 = vmatprep.mubr.f32.mxu0 0.0
        %2796 = vmatmul.mubr.f32.gmra.mxu0 %v2658
        %v2797 = vpop.f32.mrf.mxu0
        %v2798 = vadd.f32 %v2727, %v2797
        %v2799 = vpop.f32.mrf.mxu0
        %v2800 = vadd.f32 %v2729, %v2799
        %2801 = vdwg.mxu0
        %v2802 = vadd.f32 %v2549, %v2798
        %v2803 = vadd.f32 %v2551, %v2800
        %v2804 = vld [vmem:[#allocation13] sm:$0x3]
        %v2806 = vlaneseq
        %v2807 = vshrl.u32 %v2806, 7
        %v2808 = vsub.s32 0, %v2807
        %v2809 = vrot.slane %v2804, %v2808
        %v2810 = vlaneseq
        %v2811 = vshrl.u32 %v2810, 7
        %v2812 = vsub.s32 1, %v2811
        %v2813 = vrot.slane %v2804, %v2812
        %v2816 = vadd.f32 %v2802, %v2809
        %v2817 = vadd.f32 %v2803, %v2813
        %v2818 = vmax.f32 %v2816, 0.0
        %v2819 = vmax.f32 %v2817, 0.0
        %v2822 = vrot.slane %v2818, 7
        %v2823 = vrot.slane %v2819, 7
        %2824 = vrot.lane.b32.xlu0 %v2822, 32
        %v2825 = vpop.permute.xlu0 %2824
        %2826 = vrot.lane.b32.xlu0 %v2823, 32
        %v2827 = vpop.permute.xlu0 %2826
        %v2828 = vsel %vm1472, %v2825, %v2827
        %2832 = vst.msk [vmem:[#allocation4] sm:$0xfe] %vm2066, %v2825
        %2833 = vst [vmem:[#allocation4 + $0x8] sm:$0xfe] %v2828
        %2834 = vst.msk [vmem:[#allocation4 + $0x10] sm:$0xfe] %vm2069, %v2827
        %2835 = vst.msk [vmem:[#allocation4 + $0x18] sm:$0x1] %vm2071, %v2825
        %2836 = vst [vmem:[#allocation4 + $0x20] sm:$0x1] %v2828
        %2837 = vst.msk [vmem:[#allocation4 + $0x28] sm:$0x1] %vm2074, %v2827
        %v2838 = vld [vmem:[#allocation4] sm:$0xff]
        %v2839 = vld [vmem:[#allocation4 + $0x8] sm:$0xff]
        %v2840 = vld [vmem:[#allocation4 + $0x10] sm:$0xff]
        %s2841 = scalar_lea.vmem [#allocation11], 1920
        %v2842 = vld [vmem:[%s2841] sm:$0xff]
        %v2843 = vld [vmem:[%s2841 + $0x8] sm:$0xff]
        %v2844 = vld [vmem:[%s2841 + $0x10] sm:$0xff]
        %v2845 = vld [vmem:[%s2841 + $0x18] sm:$0xff]
        %v2846 = vld [vmem:[%s2841 + $0x20] sm:$0xff]
        %v2847 = vld [vmem:[%s2841 + $0x28] sm:$0xff]
        %v2848 = vld [vmem:[%s2841 + $0x30] sm:$0xff]
        %v2849 = vld [vmem:[%s2841 + $0x38] sm:$0xff]
        %v2850 = vld [vmem:[%s2841 + $0x40] sm:$0xff]
        %v2851 = vld [vmem:[%s2841 + $0x48] sm:$0xff]
        %v2852 = vld [vmem:[%s2841 + $0x50] sm:$0xff]
        %v2853 = vld [vmem:[%s2841 + $0x58] sm:$0xff]
        %v2854 = vld [vmem:[%s2841 + $0x60] sm:$0xff]
        %v2855 = vld [vmem:[%s2841 + $0x68] sm:$0xff]
        %v2856 = vld [vmem:[%s2841 + $0x70] sm:$0xff]
        %v2857 = vld [vmem:[%s2841 + $0x78] sm:$0xff]
        %v2858 = vld [vmem:[%s2841 + $0x80] sm:$0xff]
        %v2859 = vld [vmem:[%s2841 + $0x88] sm:$0xff]
        %v2860 = vld [vmem:[%s2841 + $0x90] sm:$0xff]
        %v2861 = vld [vmem:[%s2841 + $0x98] sm:$0xff]
        %v2862 = vld [vmem:[%s2841 + $0xa0] sm:$0xff]
        %v2863 = vld [vmem:[%s2841 + $0xa8] sm:$0xff]
        %v2864 = vld [vmem:[%s2841 + $0xb0] sm:$0xff]
        %v2865 = vld [vmem:[%s2841 + $0xb8] sm:$0xff]
        %v2866 = vld [vmem:[%s2841 + $0xc0] sm:$0xff]
        %v2867 = vld [vmem:[%s2841 + $0xc8] sm:$0xff]
        %v2868 = vld [vmem:[%s2841 + $0xd0] sm:$0xff]
        %v2869 = vld [vmem:[%s2841 + $0xd8] sm:$0xff]
        %v2870 = vld [vmem:[%s2841 + $0xe0] sm:$0xff]
        %v2871 = vld [vmem:[%s2841 + $0xe8] sm:$0xff]
        %v2872 = vld [vmem:[%s2841 + $0xf0] sm:$0xff]
        %v2873 = vld [vmem:[%s2841 + $0xf8] sm:$0xff]
        %v2874 = vld [vmem:[%s2841 + $0x100] sm:$0xff]
        %v2875 = vld [vmem:[%s2841 + $0x108] sm:$0xff]
        %v2876 = vld [vmem:[%s2841 + $0x110] sm:$0xff]
        %v2877 = vld [vmem:[%s2841 + $0x118] sm:$0xff]
        %v2878 = vld [vmem:[%s2841 + $0x120] sm:$0xff]
        %v2879 = vld [vmem:[%s2841 + $0x128] sm:$0xff]
        %v2880 = vld [vmem:[%s2841 + $0x130] sm:$0xff]
        %v2881 = vld [vmem:[%s2841 + $0x138] sm:$0xff]
        %v2882 = vld [vmem:[%s2841 + $0x140] sm:$0xff]
        %v2883 = vld [vmem:[%s2841 + $0x148] sm:$0xff]
        %v2884 = vld [vmem:[%s2841 + $0x150] sm:$0xff]
        %v2885 = vld [vmem:[%s2841 + $0x158] sm:$0xff]
        %v2886 = vld [vmem:[%s2841 + $0x160] sm:$0xff]
        %v2887 = vld [vmem:[%s2841 + $0x168] sm:$0xff]
        %v2888 = vld [vmem:[%s2841 + $0x170] sm:$0xff]
        %v2889 = vld [vmem:[%s2841 + $0x178] sm:$0xff]
        %v2890 = vld [vmem:[%s2841 + $0x180] sm:$0xff]
        %v2891 = vld [vmem:[%s2841 + $0x188] sm:$0xff]
        %v2892 = vld [vmem:[%s2841 + $0x190] sm:$0xff]
        %v2893 = vld [vmem:[%s2841 + $0x198] sm:$0xff]
        %v2894 = vld [vmem:[%s2841 + $0x1a0] sm:$0xff]
        %v2895 = vld [vmem:[%s2841 + $0x1a8] sm:$0xff]
        %v2896 = vld [vmem:[%s2841 + $0x1b0] sm:$0xff]
        %v2897 = vld [vmem:[%s2841 + $0x1b8] sm:$0xff]
        %v2898 = vld [vmem:[%s2841 + $0x1c0] sm:$0xff]
        %v2899 = vld [vmem:[%s2841 + $0x1c8] sm:$0xff]
        %v2900 = vld [vmem:[%s2841 + $0x1d0] sm:$0xff]
        %v2901 = vld [vmem:[%s2841 + $0x1d8] sm:$0xff]
        %v2902 = vld [vmem:[%s2841 + $0x1e0] sm:$0xff]
        %v2903 = vld [vmem:[%s2841 + $0x1e8] sm:$0xff]
        %v2904 = vld [vmem:[%s2841 + $0x1f0] sm:$0xff]
        %v2905 = vld [vmem:[%s2841 + $0x1f8] sm:$0xff]
        %v2906 = vld [vmem:[%s2841 + $0x200] sm:$0xff]
        %v2907 = vld [vmem:[%s2841 + $0x208] sm:$0xff]
        %v2908 = vld [vmem:[%s2841 + $0x210] sm:$0xff]
        %v2909 = vld [vmem:[%s2841 + $0x218] sm:$0xff]
        %v2910 = vld [vmem:[%s2841 + $0x220] sm:$0xff]
        %v2911 = vld [vmem:[%s2841 + $0x228] sm:$0xff]
        %v2912 = vld [vmem:[%s2841 + $0x230] sm:$0xff]
        %v2913 = vld [vmem:[%s2841 + $0x238] sm:$0xff]
        %v2914 = vld [vmem:[%s2841 + $0x240] sm:$0xff]
        %v2915 = vld [vmem:[%s2841 + $0x248] sm:$0xff]
        %v2916 = vld [vmem:[%s2841 + $0x250] sm:$0xff]
        %v2917 = vld [vmem:[%s2841 + $0x258] sm:$0xff]
        %v2918 = vld [vmem:[%s2841 + $0x260] sm:$0xff]
        %v2919 = vld [vmem:[%s2841 + $0x268] sm:$0xff]
        %v2920 = vld [vmem:[%s2841 + $0x270] sm:$0xff]
        %v2921 = vld [vmem:[%s2841 + $0x278] sm:$0xff]
        %v2922 = vld [vmem:[#allocation4] sm:$0xfe]
        %v2923 = vld [vmem:[#allocation4 + $0x8] sm:$0xfe]
        %v2924 = vld [vmem:[#allocation4 + $0x10] sm:$0xfe]
        %v2925 = vld [vmem:[#allocation4 + $0x18] sm:$0x1]
        %v2926 = vld [vmem:[#allocation4 + $0x20] sm:$0x1]
        %v2927 = vld [vmem:[#allocation4 + $0x28] sm:$0x1]
        %s2928 = scalar_lea.vmem [#allocation11], 2560
        %v2929 = vld [vmem:[%s2928] sm:$0xff]
        %v2930 = vld [vmem:[%s2928 + $0x8] sm:$0xff]
        %v2931 = vld [vmem:[%s2928 + $0x10] sm:$0xff]
        %v2932 = vld [vmem:[%s2928 + $0x18] sm:$0xff]
        %v2933 = vld [vmem:[%s2928 + $0x20] sm:$0xff]
        %v2934 = vld [vmem:[%s2928 + $0x28] sm:$0xff]
        %v2935 = vld [vmem:[%s2928 + $0x30] sm:$0xff]
        %v2936 = vld [vmem:[%s2928 + $0x38] sm:$0xff]
        %v2937 = vld [vmem:[%s2928 + $0x40] sm:$0xff]
        %v2938 = vld [vmem:[%s2928 + $0x48] sm:$0xff]
        %v2939 = vld [vmem:[%s2928 + $0x50] sm:$0xff]
        %v2940 = vld [vmem:[%s2928 + $0x58] sm:$0xff]
        %v2941 = vld [vmem:[%s2928 + $0x60] sm:$0xff]
        %v2942 = vld [vmem:[%s2928 + $0x68] sm:$0xff]
        %v2943 = vld [vmem:[%s2928 + $0x70] sm:$0xff]
        %v2944 = vld [vmem:[%s2928 + $0x78] sm:$0xff]
        %v2945 = vld [vmem:[%s2928 + $0x80] sm:$0xff]
        %v2946 = vld [vmem:[%s2928 + $0x88] sm:$0xff]
        %v2947 = vld [vmem:[%s2928 + $0x90] sm:$0xff]
        %v2948 = vld [vmem:[%s2928 + $0x98] sm:$0xff]
        %v2949 = vld [vmem:[%s2928 + $0xa0] sm:$0xff]
        %v2950 = vld [vmem:[%s2928 + $0xa8] sm:$0xff]
        %v2951 = vld [vmem:[%s2928 + $0xb0] sm:$0xff]
        %v2952 = vld [vmem:[%s2928 + $0xb8] sm:$0xff]
        %v2953 = vld [vmem:[%s2928 + $0xc0] sm:$0xff]
        %v2954 = vld [vmem:[%s2928 + $0xc8] sm:$0xff]
        %v2955 = vld [vmem:[%s2928 + $0xd0] sm:$0xff]
        %v2956 = vld [vmem:[%s2928 + $0xd8] sm:$0xff]
        %v2957 = vld [vmem:[%s2928 + $0xe0] sm:$0xff]
        %v2958 = vld [vmem:[%s2928 + $0xe8] sm:$0xff]
        %v2959 = vld [vmem:[%s2928 + $0xf0] sm:$0xff]
        %v2960 = vld [vmem:[%s2928 + $0xf8] sm:$0xff]
        %v2961 = vld [vmem:[%s2928 + $0x100] sm:$0xff]
        %v2962 = vld [vmem:[%s2928 + $0x108] sm:$0xff]
        %v2963 = vld [vmem:[%s2928 + $0x110] sm:$0xff]
        %v2964 = vld [vmem:[%s2928 + $0x118] sm:$0xff]
        %v2965 = vld [vmem:[%s2928 + $0x120] sm:$0xff]
        %v2966 = vld [vmem:[%s2928 + $0x128] sm:$0xff]
        %v2967 = vld [vmem:[%s2928 + $0x130] sm:$0xff]
        %v2968 = vld [vmem:[%s2928 + $0x138] sm:$0xff]
        %v2969 = vld [vmem:[%s2928 + $0x140] sm:$0xff]
        %v2970 = vld [vmem:[%s2928 + $0x148] sm:$0xff]
        %v2971 = vld [vmem:[%s2928 + $0x150] sm:$0xff]
        %v2972 = vld [vmem:[%s2928 + $0x158] sm:$0xff]
        %v2973 = vld [vmem:[%s2928 + $0x160] sm:$0xff]
        %v2974 = vld [vmem:[%s2928 + $0x168] sm:$0xff]
        %v2975 = vld [vmem:[%s2928 + $0x170] sm:$0xff]
        %v2976 = vld [vmem:[%s2928 + $0x178] sm:$0xff]
        %v2977 = vld [vmem:[%s2928 + $0x180] sm:$0xff]
        %v2978 = vld [vmem:[%s2928 + $0x188] sm:$0xff]
        %v2979 = vld [vmem:[%s2928 + $0x190] sm:$0xff]
        %v2980 = vld [vmem:[%s2928 + $0x198] sm:$0xff]
        %v2981 = vld [vmem:[%s2928 + $0x1a0] sm:$0xff]
        %v2982 = vld [vmem:[%s2928 + $0x1a8] sm:$0xff]
        %v2983 = vld [vmem:[%s2928 + $0x1b0] sm:$0xff]
        %v2984 = vld [vmem:[%s2928 + $0x1b8] sm:$0xff]
        %v2985 = vld [vmem:[%s2928 + $0x1c0] sm:$0xff]
        %v2986 = vld [vmem:[%s2928 + $0x1c8] sm:$0xff]
        %v2987 = vld [vmem:[%s2928 + $0x1d0] sm:$0xff]
        %v2988 = vld [vmem:[%s2928 + $0x1d8] sm:$0xff]
        %v2989 = vld [vmem:[%s2928 + $0x1e0] sm:$0xff]
        %v2990 = vld [vmem:[%s2928 + $0x1e8] sm:$0xff]
        %v2991 = vld [vmem:[%s2928 + $0x1f0] sm:$0xff]
        %v2992 = vld [vmem:[%s2928 + $0x1f8] sm:$0xff]
        %v2993 = vld [vmem:[%s2928 + $0x200] sm:$0xff]
        %v2994 = vld [vmem:[%s2928 + $0x208] sm:$0xff]
        %v2995 = vld [vmem:[%s2928 + $0x210] sm:$0xff]
        %v2996 = vld [vmem:[%s2928 + $0x218] sm:$0xff]
        %v2997 = vld [vmem:[%s2928 + $0x220] sm:$0xff]
        %v2998 = vld [vmem:[%s2928 + $0x228] sm:$0xff]
        %v2999 = vld [vmem:[%s2928 + $0x230] sm:$0xff]
        %v3000 = vld [vmem:[%s2928 + $0x238] sm:$0xff]
        %v3001 = vld [vmem:[%s2928 + $0x240] sm:$0xff]
        %v3002 = vld [vmem:[%s2928 + $0x248] sm:$0xff]
        %v3003 = vld [vmem:[%s2928 + $0x250] sm:$0xff]
        %v3004 = vld [vmem:[%s2928 + $0x258] sm:$0xff]
        %v3005 = vld [vmem:[%s2928 + $0x260] sm:$0xff]
        %v3006 = vld [vmem:[%s2928 + $0x268] sm:$0xff]
        %v3007 = vld [vmem:[%s2928 + $0x270] sm:$0xff]
        %v3008 = vld [vmem:[%s2928 + $0x278] sm:$0xff]
        %v3015 = vrot.slane %v2922, 1
        %v3016 = vrot.slane %v2925, 1
        %v3017 = vsel %vm2252, %v3015, %v3016
        %v3018 = vrot.slane %v2923, 1
        %v3019 = vrot.slane %v2926, 1
        %v3020 = vsel %vm2252, %v3018, %v3019
        %v3021 = vrot.slane %v2924, 1
        %v3022 = vrot.slane %v2927, 1
        %v3023 = vsel %vm2252, %v3021, %v3022
        %v3026 = vsel %vm2046, %v3023, 0
        %3028 = vmatprep.subr.mxu0 %v2960
        %3029 = vmatpush1.msra.mxu0 %v2959
        %3030 = vmatprep.subr.mxu0 %v2958
        %3031 = vmatpush1.msra.mxu0 %v2957
        %3032 = vmatprep.subr.mxu0 %v2956
        %3033 = vmatpush1.msra.mxu0 %v2955
        %3034 = vmatprep.subr.mxu0 %v2954
        %3035 = vmatpush1.msra.mxu0 %v2953
        %3036 = vmatprep.subr.mxu0 %v2952
        %3037 = vmatpush1.msra.mxu0 %v2951
        %3038 = vmatprep.subr.mxu0 %v2950
        %3039 = vmatpush1.msra.mxu0 %v2949
        %3040 = vmatprep.subr.mxu0 %v2948
        %3041 = vmatpush1.msra.mxu0 %v2947
        %3042 = vmatprep.subr.mxu0 %v2946
        %3043 = vmatpush1.msra.mxu0 %v2945
        %3044 = vmatprep.subr.mxu0 %v2944
        %3045 = vmatpush1.msra.mxu0 %v2943
        %3046 = vmatprep.subr.mxu0 %v2942
        %3047 = vmatpush1.msra.mxu0 %v2941
        %3048 = vmatprep.subr.mxu0 %v2940
        %3049 = vmatpush1.msra.mxu0 %v2939
        %3050 = vmatprep.subr.mxu0 %v2938
        %3051 = vmatpush1.msra.mxu0 %v2937
        %3052 = vmatprep.subr.mxu0 %v2936
        %3053 = vmatpush1.msra.mxu0 %v2935
        %3054 = vmatprep.subr.mxu0 %v2934
        %3055 = vmatpush1.msra.mxu0 %v2933
        %3056 = vmatprep.subr.mxu0 %v2932
        %3057 = vmatpush1.msra.mxu0 %v2931
        %3058 = vmatprep.subr.mxu0 %v2930
        %3059 = vmatpush1.msra.mxu0 %v2929
        %3060 = vmatprep.subr.mxu0 %v2992
        %3061 = vmatpush2.msra.mxu0 %v2991
        %3062 = vmatprep.subr.mxu0 %v2990
        %3063 = vmatpush2.msra.mxu0 %v2989
        %3064 = vmatprep.subr.mxu0 %v2988
        %3065 = vmatpush2.msra.mxu0 %v2987
        %3066 = vmatprep.subr.mxu0 %v2986
        %3067 = vmatpush2.msra.mxu0 %v2985
        %3068 = vmatprep.subr.mxu0 %v2984
        %3069 = vmatpush2.msra.mxu0 %v2983
        %3070 = vmatprep.subr.mxu0 %v2982
        %3071 = vmatpush2.msra.mxu0 %v2981
        %3072 = vmatprep.subr.mxu0 %v2980
        %3073 = vmatpush2.msra.mxu0 %v2979
        %3074 = vmatprep.subr.mxu0 %v2978
        %3075 = vmatpush2.msra.mxu0 %v2977
        %3076 = vmatprep.subr.mxu0 %v2976
        %3077 = vmatpush2.msra.mxu0 %v2975
        %3078 = vmatprep.subr.mxu0 %v2974
        %3079 = vmatpush2.msra.mxu0 %v2973
        %3080 = vmatprep.subr.mxu0 %v2972
        %3081 = vmatpush2.msra.mxu0 %v2971
        %3082 = vmatprep.subr.mxu0 %v2970
        %3083 = vmatpush2.msra.mxu0 %v2969
        %3084 = vmatprep.subr.mxu0 %v2968
        %3085 = vmatpush2.msra.mxu0 %v2967
        %3086 = vmatprep.subr.mxu0 %v2966
        %3087 = vmatpush2.msra.mxu0 %v2965
        %3088 = vmatprep.subr.mxu0 %v2964
        %3089 = vmatpush2.msra.mxu0 %v2963
        %3090 = vmatprep.subr.mxu0 %v2962
        %3091 = vmatpush2.msra.mxu0 %v2961
        %3092 = vmatprep.mubr.f32.mxu0 %v3020
        %3093 = vmatmul.mubr.f32.gmra.mxu0 %v3017
        %v3094 = vpop.f32.mrf.mxu0
        %v3095 = vadd.f32 0.0, %v3094
        %v3096 = vpop.f32.mrf.mxu0
        %v3097 = vadd.f32 0.0, %v3096
        %3098 = vdwg.mxu0
        %3099 = vmatprep.subr.mxu0 0.0
        %3100 = vmatpush1.msra.mxu0 0.0
        %3101 = vmatprep.subr.mxu0 0.0
        %3102 = vmatpush1.msra.mxu0 0.0
        %3103 = vmatprep.subr.mxu0 0.0
        %3104 = vmatpush1.msra.mxu0 0.0
        %3105 = vmatprep.subr.mxu0 0.0
        %3106 = vmatpush1.msra.mxu0 0.0
        %3107 = vmatprep.subr.mxu0 0.0
        %3108 = vmatpush1.msra.mxu0 0.0
        %3109 = vmatprep.subr.mxu0 0.0
        %3110 = vmatpush1.msra.mxu0 0.0
        %3111 = vmatprep.subr.mxu0 0.0
        %3112 = vmatpush1.msra.mxu0 0.0
        %3113 = vmatprep.subr.mxu0 0.0
        %3114 = vmatpush1.msra.mxu0 0.0
        %3115 = vmatprep.subr.mxu0 %v3008
        %3116 = vmatpush1.msra.mxu0 %v3007
        %3117 = vmatprep.subr.mxu0 %v3006
        %3118 = vmatpush1.msra.mxu0 %v3005
        %3119 = vmatprep.subr.mxu0 %v3004
        %3120 = vmatpush1.msra.mxu0 %v3003
        %3121 = vmatprep.subr.mxu0 %v3002
        %3122 = vmatpush1.msra.mxu0 %v3001
        %3123 = vmatprep.subr.mxu0 %v3000
        %3124 = vmatpush1.msra.mxu0 %v2999
        %3125 = vmatprep.subr.mxu0 %v2998
        %3126 = vmatpush1.msra.mxu0 %v2997
        %3127 = vmatprep.subr.mxu0 %v2996
        %3128 = vmatpush1.msra.mxu0 %v2995
        %3129 = vmatprep.subr.mxu0 %v2994
        %3130 = vmatpush1.msra.mxu0 %v2993
        %3131 = vmatprep.subr.mxu0 0.0
        %3132 = vmatpush2.msra.mxu0 0.0
        %3133 = vmatprep.subr.mxu0 0.0
        %3134 = vmatpush2.msra.mxu0 0.0
        %3135 = vmatprep.subr.mxu0 0.0
        %3136 = vmatpush2.msra.mxu0 0.0
        %3137 = vmatprep.subr.mxu0 0.0
        %3138 = vmatpush2.msra.mxu0 0.0
        %3139 = vmatprep.subr.mxu0 0.0
        %3140 = vmatpush2.msra.mxu0 0.0
        %3141 = vmatprep.subr.mxu0 0.0
        %3142 = vmatpush2.msra.mxu0 0.0
        %3143 = vmatprep.subr.mxu0 0.0
        %3144 = vmatpush2.msra.mxu0 0.0
        %3145 = vmatprep.subr.mxu0 0.0
        %3146 = vmatpush2.msra.mxu0 0.0
        %3147 = vmatprep.subr.mxu0 0.0
        %3148 = vmatpush2.msra.mxu0 0.0
        %3149 = vmatprep.subr.mxu0 0.0
        %3150 = vmatpush2.msra.mxu0 0.0
        %3151 = vmatprep.subr.mxu0 0.0
        %3152 = vmatpush2.msra.mxu0 0.0
        %3153 = vmatprep.subr.mxu0 0.0
        %3154 = vmatpush2.msra.mxu0 0.0
        %3155 = vmatprep.subr.mxu0 0.0
        %3156 = vmatpush2.msra.mxu0 0.0
        %3157 = vmatprep.subr.mxu0 0.0
        %3158 = vmatpush2.msra.mxu0 0.0
        %3159 = vmatprep.subr.mxu0 0.0
        %3160 = vmatpush2.msra.mxu0 0.0
        %3161 = vmatprep.subr.mxu0 0.0
        %3162 = vmatpush2.msra.mxu0 0.0
        %3163 = vmatprep.mubr.f32.mxu0 0.0
        %3164 = vmatmul.mubr.f32.gmra.mxu0 %v3026
        %v3165 = vpop.f32.mrf.mxu0
        %v3166 = vadd.f32 %v3095, %v3165
        %v3167 = vpop.f32.mrf.mxu0
        %v3168 = vadd.f32 %v3097, %v3167
        %3169 = vdwg.mxu0
        %v3171 = vsel %vm2046, %v2840, 0
        %3173 = vmatprep.subr.mxu0 %v2873
        %3174 = vmatpush1.msra.mxu0 %v2872
        %3175 = vmatprep.subr.mxu0 %v2871
        %3176 = vmatpush1.msra.mxu0 %v2870
        %3177 = vmatprep.subr.mxu0 %v2869
        %3178 = vmatpush1.msra.mxu0 %v2868
        %3179 = vmatprep.subr.mxu0 %v2867
        %3180 = vmatpush1.msra.mxu0 %v2866
        %3181 = vmatprep.subr.mxu0 %v2865
        %3182 = vmatpush1.msra.mxu0 %v2864
        %3183 = vmatprep.subr.mxu0 %v2863
        %3184 = vmatpush1.msra.mxu0 %v2862
        %3185 = vmatprep.subr.mxu0 %v2861
        %3186 = vmatpush1.msra.mxu0 %v2860
        %3187 = vmatprep.subr.mxu0 %v2859
        %3188 = vmatpush1.msra.mxu0 %v2858
        %3189 = vmatprep.subr.mxu0 %v2857
        %3190 = vmatpush1.msra.mxu0 %v2856
        %3191 = vmatprep.subr.mxu0 %v2855
        %3192 = vmatpush1.msra.mxu0 %v2854
        %3193 = vmatprep.subr.mxu0 %v2853
        %3194 = vmatpush1.msra.mxu0 %v2852
        %3195 = vmatprep.subr.mxu0 %v2851
        %3196 = vmatpush1.msra.mxu0 %v2850
        %3197 = vmatprep.subr.mxu0 %v2849
        %3198 = vmatpush1.msra.mxu0 %v2848
        %3199 = vmatprep.subr.mxu0 %v2847
        %3200 = vmatpush1.msra.mxu0 %v2846
        %3201 = vmatprep.subr.mxu0 %v2845
        %3202 = vmatpush1.msra.mxu0 %v2844
        %3203 = vmatprep.subr.mxu0 %v2843
        %3204 = vmatpush1.msra.mxu0 %v2842
        %3205 = vmatprep.subr.mxu0 %v2905
        %3206 = vmatpush2.msra.mxu0 %v2904
        %3207 = vmatprep.subr.mxu0 %v2903
        %3208 = vmatpush2.msra.mxu0 %v2902
        %3209 = vmatprep.subr.mxu0 %v2901
        %3210 = vmatpush2.msra.mxu0 %v2900
        %3211 = vmatprep.subr.mxu0 %v2899
        %3212 = vmatpush2.msra.mxu0 %v2898
        %3213 = vmatprep.subr.mxu0 %v2897
        %3214 = vmatpush2.msra.mxu0 %v2896
        %3215 = vmatprep.subr.mxu0 %v2895
        %3216 = vmatpush2.msra.mxu0 %v2894
        %3217 = vmatprep.subr.mxu0 %v2893
        %3218 = vmatpush2.msra.mxu0 %v2892
        %3219 = vmatprep.subr.mxu0 %v2891
        %3220 = vmatpush2.msra.mxu0 %v2890
        %3221 = vmatprep.subr.mxu0 %v2889
        %3222 = vmatpush2.msra.mxu0 %v2888
        %3223 = vmatprep.subr.mxu0 %v2887
        %3224 = vmatpush2.msra.mxu0 %v2886
        %3225 = vmatprep.subr.mxu0 %v2885
        %3226 = vmatpush2.msra.mxu0 %v2884
        %3227 = vmatprep.subr.mxu0 %v2883
        %3228 = vmatpush2.msra.mxu0 %v2882
        %3229 = vmatprep.subr.mxu0 %v2881
        %3230 = vmatpush2.msra.mxu0 %v2880
        %3231 = vmatprep.subr.mxu0 %v2879
        %3232 = vmatpush2.msra.mxu0 %v2878
        %3233 = vmatprep.subr.mxu0 %v2877
        %3234 = vmatpush2.msra.mxu0 %v2876
        %3235 = vmatprep.subr.mxu0 %v2875
        %3236 = vmatpush2.msra.mxu0 %v2874
        %3237 = vmatprep.mubr.f32.mxu0 %v2839
        %3238 = vmatmul.mubr.f32.gmra.mxu0 %v2838
        %v3239 = vpop.f32.mrf.mxu0
        %v3240 = vadd.f32 %v3166, %v3239
        %v3241 = vpop.f32.mrf.mxu0
        %v3242 = vadd.f32 %v3168, %v3241
        %3243 = vdwg.mxu0
        %3244 = vmatprep.subr.mxu0 0.0
        %3245 = vmatpush1.msra.mxu0 0.0
        %3246 = vmatprep.subr.mxu0 0.0
        %3247 = vmatpush1.msra.mxu0 0.0
        %3248 = vmatprep.subr.mxu0 0.0
        %3249 = vmatpush1.msra.mxu0 0.0
        %3250 = vmatprep.subr.mxu0 0.0
        %3251 = vmatpush1.msra.mxu0 0.0
        %3252 = vmatprep.subr.mxu0 0.0
        %3253 = vmatpush1.msra.mxu0 0.0
        %3254 = vmatprep.subr.mxu0 0.0
        %3255 = vmatpush1.msra.mxu0 0.0
        %3256 = vmatprep.subr.mxu0 0.0
        %3257 = vmatpush1.msra.mxu0 0.0
        %3258 = vmatprep.subr.mxu0 0.0
        %3259 = vmatpush1.msra.mxu0 0.0
        %3260 = vmatprep.subr.mxu0 %v2921
        %3261 = vmatpush1.msra.mxu0 %v2920
        %3262 = vmatprep.subr.mxu0 %v2919
        %3263 = vmatpush1.msra.mxu0 %v2918
        %3264 = vmatprep.subr.mxu0 %v2917
        %3265 = vmatpush1.msra.mxu0 %v2916
        %3266 = vmatprep.subr.mxu0 %v2915
        %3267 = vmatpush1.msra.mxu0 %v2914
        %3268 = vmatprep.subr.mxu0 %v2913
        %3269 = vmatpush1.msra.mxu0 %v2912
        %3270 = vmatprep.subr.mxu0 %v2911
        %3271 = vmatpush1.msra.mxu0 %v2910
        %3272 = vmatprep.subr.mxu0 %v2909
        %3273 = vmatpush1.msra.mxu0 %v2908
        %3274 = vmatprep.subr.mxu0 %v2907
        %3275 = vmatpush1.msra.mxu0 %v2906
        %3276 = vmatprep.subr.mxu0 0.0
        %3277 = vmatpush2.msra.mxu0 0.0
        %3278 = vmatprep.subr.mxu0 0.0
        %3279 = vmatpush2.msra.mxu0 0.0
        %3280 = vmatprep.subr.mxu0 0.0
        %3281 = vmatpush2.msra.mxu0 0.0
        %3282 = vmatprep.subr.mxu0 0.0
        %3283 = vmatpush2.msra.mxu0 0.0
        %3284 = vmatprep.subr.mxu0 0.0
        %3285 = vmatpush2.msra.mxu0 0.0
        %3286 = vmatprep.subr.mxu0 0.0
        %3287 = vmatpush2.msra.mxu0 0.0
        %3288 = vmatprep.subr.mxu0 0.0
        %3289 = vmatpush2.msra.mxu0 0.0
        %3290 = vmatprep.subr.mxu0 0.0
        %3291 = vmatpush2.msra.mxu0 0.0
        %3292 = vmatprep.subr.mxu0 0.0
        %3293 = vmatpush2.msra.mxu0 0.0
        %3294 = vmatprep.subr.mxu0 0.0
        %3295 = vmatpush2.msra.mxu0 0.0
        %3296 = vmatprep.subr.mxu0 0.0
        %3297 = vmatpush2.msra.mxu0 0.0
        %3298 = vmatprep.subr.mxu0 0.0
        %3299 = vmatpush2.msra.mxu0 0.0
        %3300 = vmatprep.subr.mxu0 0.0
        %3301 = vmatpush2.msra.mxu0 0.0
        %3302 = vmatprep.subr.mxu0 0.0
        %3303 = vmatpush2.msra.mxu0 0.0
        %3304 = vmatprep.subr.mxu0 0.0
        %3305 = vmatpush2.msra.mxu0 0.0
        %3306 = vmatprep.subr.mxu0 0.0
        %3307 = vmatpush2.msra.mxu0 0.0
        %3308 = vmatprep.mubr.f32.mxu0 0.0
        %3309 = vmatmul.mubr.f32.gmra.mxu0 %v3171
        %v3310 = vpop.f32.mrf.mxu0
        %v3311 = vadd.f32 %v3240, %v3310
        %v3312 = vpop.f32.mrf.mxu0
        %v3313 = vadd.f32 %v3242, %v3312
        %3314 = vdwg.mxu0
        %v3315 = vld [vmem:[#allocation4] sm:$0xfc]
        %v3316 = vld [vmem:[#allocation4 + $0x8] sm:$0xfc]
        %v3317 = vld [vmem:[#allocation4 + $0x10] sm:$0xfc]
        %v3318 = vld [vmem:[#allocation4 + $0x18] sm:$0x3]
        %v3319 = vld [vmem:[#allocation4 + $0x20] sm:$0x3]
        %v3320 = vld [vmem:[#allocation4 + $0x28] sm:$0x3]
        %s3321 = scalar_lea.vmem [#allocation11], 3200
        %v3322 = vld [vmem:[%s3321] sm:$0xff]
        %v3323 = vld [vmem:[%s3321 + $0x8] sm:$0xff]
        %v3324 = vld [vmem:[%s3321 + $0x10] sm:$0xff]
        %v3325 = vld [vmem:[%s3321 + $0x18] sm:$0xff]
        %v3326 = vld [vmem:[%s3321 + $0x20] sm:$0xff]
        %v3327 = vld [vmem:[%s3321 + $0x28] sm:$0xff]
        %v3328 = vld [vmem:[%s3321 + $0x30] sm:$0xff]
        %v3329 = vld [vmem:[%s3321 + $0x38] sm:$0xff]
        %v3330 = vld [vmem:[%s3321 + $0x40] sm:$0xff]
        %v3331 = vld [vmem:[%s3321 + $0x48] sm:$0xff]
        %v3332 = vld [vmem:[%s3321 + $0x50] sm:$0xff]
        %v3333 = vld [vmem:[%s3321 + $0x58] sm:$0xff]
        %v3334 = vld [vmem:[%s3321 + $0x60] sm:$0xff]
        %v3335 = vld [vmem:[%s3321 + $0x68] sm:$0xff]
        %v3336 = vld [vmem:[%s3321 + $0x70] sm:$0xff]
        %v3337 = vld [vmem:[%s3321 + $0x78] sm:$0xff]
        %v3338 = vld [vmem:[%s3321 + $0x80] sm:$0xff]
        %v3339 = vld [vmem:[%s3321 + $0x88] sm:$0xff]
        %v3340 = vld [vmem:[%s3321 + $0x90] sm:$0xff]
        %v3341 = vld [vmem:[%s3321 + $0x98] sm:$0xff]
        %v3342 = vld [vmem:[%s3321 + $0xa0] sm:$0xff]
        %v3343 = vld [vmem:[%s3321 + $0xa8] sm:$0xff]
        %v3344 = vld [vmem:[%s3321 + $0xb0] sm:$0xff]
        %v3345 = vld [vmem:[%s3321 + $0xb8] sm:$0xff]
        %v3346 = vld [vmem:[%s3321 + $0xc0] sm:$0xff]
        %v3347 = vld [vmem:[%s3321 + $0xc8] sm:$0xff]
        %v3348 = vld [vmem:[%s3321 + $0xd0] sm:$0xff]
        %v3349 = vld [vmem:[%s3321 + $0xd8] sm:$0xff]
        %v3350 = vld [vmem:[%s3321 + $0xe0] sm:$0xff]
        %v3351 = vld [vmem:[%s3321 + $0xe8] sm:$0xff]
        %v3352 = vld [vmem:[%s3321 + $0xf0] sm:$0xff]
        %v3353 = vld [vmem:[%s3321 + $0xf8] sm:$0xff]
        %v3354 = vld [vmem:[%s3321 + $0x100] sm:$0xff]
        %v3355 = vld [vmem:[%s3321 + $0x108] sm:$0xff]
        %v3356 = vld [vmem:[%s3321 + $0x110] sm:$0xff]
        %v3357 = vld [vmem:[%s3321 + $0x118] sm:$0xff]
        %v3358 = vld [vmem:[%s3321 + $0x120] sm:$0xff]
        %v3359 = vld [vmem:[%s3321 + $0x128] sm:$0xff]
        %v3360 = vld [vmem:[%s3321 + $0x130] sm:$0xff]
        %v3361 = vld [vmem:[%s3321 + $0x138] sm:$0xff]
        %v3362 = vld [vmem:[%s3321 + $0x140] sm:$0xff]
        %v3363 = vld [vmem:[%s3321 + $0x148] sm:$0xff]
        %v3364 = vld [vmem:[%s3321 + $0x150] sm:$0xff]
        %v3365 = vld [vmem:[%s3321 + $0x158] sm:$0xff]
        %v3366 = vld [vmem:[%s3321 + $0x160] sm:$0xff]
        %v3367 = vld [vmem:[%s3321 + $0x168] sm:$0xff]
        %v3368 = vld [vmem:[%s3321 + $0x170] sm:$0xff]
        %v3369 = vld [vmem:[%s3321 + $0x178] sm:$0xff]
        %v3370 = vld [vmem:[%s3321 + $0x180] sm:$0xff]
        %v3371 = vld [vmem:[%s3321 + $0x188] sm:$0xff]
        %v3372 = vld [vmem:[%s3321 + $0x190] sm:$0xff]
        %v3373 = vld [vmem:[%s3321 + $0x198] sm:$0xff]
        %v3374 = vld [vmem:[%s3321 + $0x1a0] sm:$0xff]
        %v3375 = vld [vmem:[%s3321 + $0x1a8] sm:$0xff]
        %v3376 = vld [vmem:[%s3321 + $0x1b0] sm:$0xff]
        %v3377 = vld [vmem:[%s3321 + $0x1b8] sm:$0xff]
        %v3378 = vld [vmem:[%s3321 + $0x1c0] sm:$0xff]
        %v3379 = vld [vmem:[%s3321 + $0x1c8] sm:$0xff]
        %v3380 = vld [vmem:[%s3321 + $0x1d0] sm:$0xff]
        %v3381 = vld [vmem:[%s3321 + $0x1d8] sm:$0xff]
        %v3382 = vld [vmem:[%s3321 + $0x1e0] sm:$0xff]
        %v3383 = vld [vmem:[%s3321 + $0x1e8] sm:$0xff]
        %v3384 = vld [vmem:[%s3321 + $0x1f0] sm:$0xff]
        %v3385 = vld [vmem:[%s3321 + $0x1f8] sm:$0xff]
        %v3386 = vld [vmem:[%s3321 + $0x200] sm:$0xff]
        %v3387 = vld [vmem:[%s3321 + $0x208] sm:$0xff]
        %v3388 = vld [vmem:[%s3321 + $0x210] sm:$0xff]
        %v3389 = vld [vmem:[%s3321 + $0x218] sm:$0xff]
        %v3390 = vld [vmem:[%s3321 + $0x220] sm:$0xff]
        %v3391 = vld [vmem:[%s3321 + $0x228] sm:$0xff]
        %v3392 = vld [vmem:[%s3321 + $0x230] sm:$0xff]
        %v3393 = vld [vmem:[%s3321 + $0x238] sm:$0xff]
        %v3394 = vld [vmem:[%s3321 + $0x240] sm:$0xff]
        %v3395 = vld [vmem:[%s3321 + $0x248] sm:$0xff]
        %v3396 = vld [vmem:[%s3321 + $0x250] sm:$0xff]
        %v3397 = vld [vmem:[%s3321 + $0x258] sm:$0xff]
        %v3398 = vld [vmem:[%s3321 + $0x260] sm:$0xff]
        %v3399 = vld [vmem:[%s3321 + $0x268] sm:$0xff]
        %v3400 = vld [vmem:[%s3321 + $0x270] sm:$0xff]
        %v3401 = vld [vmem:[%s3321 + $0x278] sm:$0xff]
        %v3408 = vrot.slane %v3315, 2
        %v3409 = vrot.slane %v3318, 2
        %v3410 = vsel %vm2646, %v3408, %v3409
        %v3411 = vrot.slane %v3316, 2
        %v3412 = vrot.slane %v3319, 2
        %v3413 = vsel %vm2646, %v3411, %v3412
        %v3414 = vrot.slane %v3317, 2
        %v3415 = vrot.slane %v3320, 2
        %v3416 = vsel %vm2646, %v3414, %v3415
        %v3419 = vsel %vm2046, %v3416, 0
        %3421 = vmatprep.subr.mxu0 %v3353
        %3422 = vmatpush1.msra.mxu0 %v3352
        %3423 = vmatprep.subr.mxu0 %v3351
        %3424 = vmatpush1.msra.mxu0 %v3350
        %3425 = vmatprep.subr.mxu0 %v3349
        %3426 = vmatpush1.msra.mxu0 %v3348
        %3427 = vmatprep.subr.mxu0 %v3347
        %3428 = vmatpush1.msra.mxu0 %v3346
        %3429 = vmatprep.subr.mxu0 %v3345
        %3430 = vmatpush1.msra.mxu0 %v3344
        %3431 = vmatprep.subr.mxu0 %v3343
        %3432 = vmatpush1.msra.mxu0 %v3342
        %3433 = vmatprep.subr.mxu0 %v3341
        %3434 = vmatpush1.msra.mxu0 %v3340
        %3435 = vmatprep.subr.mxu0 %v3339
        %3436 = vmatpush1.msra.mxu0 %v3338
        %3437 = vmatprep.subr.mxu0 %v3337
        %3438 = vmatpush1.msra.mxu0 %v3336
        %3439 = vmatprep.subr.mxu0 %v3335
        %3440 = vmatpush1.msra.mxu0 %v3334
        %3441 = vmatprep.subr.mxu0 %v3333
        %3442 = vmatpush1.msra.mxu0 %v3332
        %3443 = vmatprep.subr.mxu0 %v3331
        %3444 = vmatpush1.msra.mxu0 %v3330
        %3445 = vmatprep.subr.mxu0 %v3329
        %3446 = vmatpush1.msra.mxu0 %v3328
        %3447 = vmatprep.subr.mxu0 %v3327
        %3448 = vmatpush1.msra.mxu0 %v3326
        %3449 = vmatprep.subr.mxu0 %v3325
        %3450 = vmatpush1.msra.mxu0 %v3324
        %3451 = vmatprep.subr.mxu0 %v3323
        %3452 = vmatpush1.msra.mxu0 %v3322
        %3453 = vmatprep.subr.mxu0 %v3385
        %3454 = vmatpush2.msra.mxu0 %v3384
        %3455 = vmatprep.subr.mxu0 %v3383
        %3456 = vmatpush2.msra.mxu0 %v3382
        %3457 = vmatprep.subr.mxu0 %v3381
        %3458 = vmatpush2.msra.mxu0 %v3380
        %3459 = vmatprep.subr.mxu0 %v3379
        %3460 = vmatpush2.msra.mxu0 %v3378
        %3461 = vmatprep.subr.mxu0 %v3377
        %3462 = vmatpush2.msra.mxu0 %v3376
        %3463 = vmatprep.subr.mxu0 %v3375
        %3464 = vmatpush2.msra.mxu0 %v3374
        %3465 = vmatprep.subr.mxu0 %v3373
        %3466 = vmatpush2.msra.mxu0 %v3372
        %3467 = vmatprep.subr.mxu0 %v3371
        %3468 = vmatpush2.msra.mxu0 %v3370
        %3469 = vmatprep.subr.mxu0 %v3369
        %3470 = vmatpush2.msra.mxu0 %v3368
        %3471 = vmatprep.subr.mxu0 %v3367
        %3472 = vmatpush2.msra.mxu0 %v3366
        %3473 = vmatprep.subr.mxu0 %v3365
        %3474 = vmatpush2.msra.mxu0 %v3364
        %3475 = vmatprep.subr.mxu0 %v3363
        %3476 = vmatpush2.msra.mxu0 %v3362
        %3477 = vmatprep.subr.mxu0 %v3361
        %3478 = vmatpush2.msra.mxu0 %v3360
        %3479 = vmatprep.subr.mxu0 %v3359
        %3480 = vmatpush2.msra.mxu0 %v3358
        %3481 = vmatprep.subr.mxu0 %v3357
        %3482 = vmatpush2.msra.mxu0 %v3356
        %3483 = vmatprep.subr.mxu0 %v3355
        %3484 = vmatpush2.msra.mxu0 %v3354
        %3485 = vmatprep.mubr.f32.mxu0 %v3413
        %3486 = vmatmul.mubr.f32.gmra.mxu0 %v3410
        %v3487 = vpop.f32.mrf.mxu0
        %v3488 = vadd.f32 0.0, %v3487
        %v3489 = vpop.f32.mrf.mxu0
        %v3490 = vadd.f32 0.0, %v3489
        %3491 = vdwg.mxu0
        %3492 = vmatprep.subr.mxu0 0.0
        %3493 = vmatpush1.msra.mxu0 0.0
        %3494 = vmatprep.subr.mxu0 0.0
        %3495 = vmatpush1.msra.mxu0 0.0
        %3496 = vmatprep.subr.mxu0 0.0
        %3497 = vmatpush1.msra.mxu0 0.0
        %3498 = vmatprep.subr.mxu0 0.0
        %3499 = vmatpush1.msra.mxu0 0.0
        %3500 = vmatprep.subr.mxu0 0.0
        %3501 = vmatpush1.msra.mxu0 0.0
        %3502 = vmatprep.subr.mxu0 0.0
        %3503 = vmatpush1.msra.mxu0 0.0
        %3504 = vmatprep.subr.mxu0 0.0
        %3505 = vmatpush1.msra.mxu0 0.0
        %3506 = vmatprep.subr.mxu0 0.0
        %3507 = vmatpush1.msra.mxu0 0.0
        %3508 = vmatprep.subr.mxu0 %v3401
        %3509 = vmatpush1.msra.mxu0 %v3400
        %3510 = vmatprep.subr.mxu0 %v3399
        %3511 = vmatpush1.msra.mxu0 %v3398
        %3512 = vmatprep.subr.mxu0 %v3397
        %3513 = vmatpush1.msra.mxu0 %v3396
        %3514 = vmatprep.subr.mxu0 %v3395
        %3515 = vmatpush1.msra.mxu0 %v3394
        %3516 = vmatprep.subr.mxu0 %v3393
        %3517 = vmatpush1.msra.mxu0 %v3392
        %3518 = vmatprep.subr.mxu0 %v3391
        %3519 = vmatpush1.msra.mxu0 %v3390
        %3520 = vmatprep.subr.mxu0 %v3389
        %3521 = vmatpush1.msra.mxu0 %v3388
        %3522 = vmatprep.subr.mxu0 %v3387
        %3523 = vmatpush1.msra.mxu0 %v3386
        %3524 = vmatprep.subr.mxu0 0.0
        %3525 = vmatpush2.msra.mxu0 0.0
        %3526 = vmatprep.subr.mxu0 0.0
        %3527 = vmatpush2.msra.mxu0 0.0
        %3528 = vmatprep.subr.mxu0 0.0
        %3529 = vmatpush2.msra.mxu0 0.0
        %3530 = vmatprep.subr.mxu0 0.0
        %3531 = vmatpush2.msra.mxu0 0.0
        %3532 = vmatprep.subr.mxu0 0.0
        %3533 = vmatpush2.msra.mxu0 0.0
        %3534 = vmatprep.subr.mxu0 0.0
        %3535 = vmatpush2.msra.mxu0 0.0
        %3536 = vmatprep.subr.mxu0 0.0
        %3537 = vmatpush2.msra.mxu0 0.0
        %3538 = vmatprep.subr.mxu0 0.0
        %3539 = vmatpush2.msra.mxu0 0.0
        %3540 = vmatprep.subr.mxu0 0.0
        %3541 = vmatpush2.msra.mxu0 0.0
        %3542 = vmatprep.subr.mxu0 0.0
        %3543 = vmatpush2.msra.mxu0 0.0
        %3544 = vmatprep.subr.mxu0 0.0
        %3545 = vmatpush2.msra.mxu0 0.0
        %3546 = vmatprep.subr.mxu0 0.0
        %3547 = vmatpush2.msra.mxu0 0.0
        %3548 = vmatprep.subr.mxu0 0.0
        %3549 = vmatpush2.msra.mxu0 0.0
        %3550 = vmatprep.subr.mxu0 0.0
        %3551 = vmatpush2.msra.mxu0 0.0
        %3552 = vmatprep.subr.mxu0 0.0
        %3553 = vmatpush2.msra.mxu0 0.0
        %3554 = vmatprep.subr.mxu0 0.0
        %3555 = vmatpush2.msra.mxu0 0.0
        %3556 = vmatprep.mubr.f32.mxu0 0.0
        %3557 = vmatmul.mubr.f32.gmra.mxu0 %v3419
        %v3558 = vpop.f32.mrf.mxu0
        %v3559 = vadd.f32 %v3488, %v3558
        %v3560 = vpop.f32.mrf.mxu0
        %v3561 = vadd.f32 %v3490, %v3560
        %3562 = vdwg.mxu0
        %v3563 = vadd.f32 %v3311, %v3559
        %v3564 = vadd.f32 %v3313, %v3561
        %s3565 = scalar_lea.vmem [#allocation13], 2
        %v3566 = vld [vmem:[%s3565] sm:$0x3]
        %v3568 = vlaneseq
        %v3569 = vshrl.u32 %v3568, 7
        %v3570 = vsub.s32 0, %v3569
        %v3571 = vrot.slane %v3566, %v3570
        %v3572 = vlaneseq
        %v3573 = vshrl.u32 %v3572, 7
        %v3574 = vsub.s32 1, %v3573
        %v3575 = vrot.slane %v3566, %v3574
        %v3578 = vadd.f32 %v3563, %v3571
        %v3579 = vadd.f32 %v3564, %v3575
        %v3580 = vadd.f32 %v3578, %v2040
        %v3581 = vadd.f32 %v3579, %v2042
        %v3582 = vmax.f32 %v3580, 0.0
        %v3583 = vmax.f32 %v3581, 0.0
        %v3586 = vrot.slane %v3582, 7
        %v3587 = vrot.slane %v3583, 7
        %3588 = vrot.lane.b32.xlu0 %v3586, 32
        %v3589 = vpop.permute.xlu0 %3588
        %3590 = vrot.lane.b32.xlu0 %v3587, 32
        %v3591 = vpop.permute.xlu0 %3590
        %v3592 = vsel %vm1472, %v3589, %v3591
        %3596 = vst.msk [vmem:[#allocation4] sm:$0xfe] %vm2066, %v3589
        %3597 = vst [vmem:[#allocation4 + $0x8] sm:$0xfe] %v3592
        %3598 = vst.msk [vmem:[#allocation4 + $0x10] sm:$0xfe] %vm2069, %v3591
        %3599 = vst.msk [vmem:[#allocation4 + $0x18] sm:$0x1] %vm2071, %v3589
        %3600 = vst [vmem:[#allocation4 + $0x20] sm:$0x1] %v3592
        %3601 = vst.msk [vmem:[#allocation4 + $0x28] sm:$0x1] %vm2074, %v3591
        %v3602 = vld [vmem:[#allocation4] sm:$0xff]
        %v3603 = vld [vmem:[#allocation4 + $0x8] sm:$0xff]
        %v3604 = vld [vmem:[#allocation4 + $0x10] sm:$0xff]
        %s3605 = scalar_lea.vmem [#allocation11], 3840
        %v3606 = vld [vmem:[%s3605] sm:$0xff]
        %v3607 = vld [vmem:[%s3605 + $0x8] sm:$0xff]
        %v3608 = vld [vmem:[%s3605 + $0x10] sm:$0xff]
        %v3609 = vld [vmem:[%s3605 + $0x18] sm:$0xff]
        %v3610 = vld [vmem:[%s3605 + $0x20] sm:$0xff]
        %v3611 = vld [vmem:[%s3605 + $0x28] sm:$0xff]
        %v3612 = vld [vmem:[%s3605 + $0x30] sm:$0xff]
        %v3613 = vld [vmem:[%s3605 + $0x38] sm:$0xff]
        %v3614 = vld [vmem:[%s3605 + $0x40] sm:$0xff]
        %v3615 = vld [vmem:[%s3605 + $0x48] sm:$0xff]
        %v3616 = vld [vmem:[%s3605 + $0x50] sm:$0xff]
        %v3617 = vld [vmem:[%s3605 + $0x58] sm:$0xff]
        %v3618 = vld [vmem:[%s3605 + $0x60] sm:$0xff]
        %v3619 = vld [vmem:[%s3605 + $0x68] sm:$0xff]
        %v3620 = vld [vmem:[%s3605 + $0x70] sm:$0xff]
        %v3621 = vld [vmem:[%s3605 + $0x78] sm:$0xff]
        %v3622 = vld [vmem:[%s3605 + $0x80] sm:$0xff]
        %v3623 = vld [vmem:[%s3605 + $0x88] sm:$0xff]
        %v3624 = vld [vmem:[%s3605 + $0x90] sm:$0xff]
        %v3625 = vld [vmem:[%s3605 + $0x98] sm:$0xff]
        %v3626 = vld [vmem:[%s3605 + $0xa0] sm:$0xff]
        %v3627 = vld [vmem:[%s3605 + $0xa8] sm:$0xff]
        %v3628 = vld [vmem:[%s3605 + $0xb0] sm:$0xff]
        %v3629 = vld [vmem:[%s3605 + $0xb8] sm:$0xff]
        %v3630 = vld [vmem:[%s3605 + $0xc0] sm:$0xff]
        %v3631 = vld [vmem:[%s3605 + $0xc8] sm:$0xff]
        %v3632 = vld [vmem:[%s3605 + $0xd0] sm:$0xff]
        %v3633 = vld [vmem:[%s3605 + $0xd8] sm:$0xff]
        %v3634 = vld [vmem:[%s3605 + $0xe0] sm:$0xff]
        %v3635 = vld [vmem:[%s3605 + $0xe8] sm:$0xff]
        %v3636 = vld [vmem:[%s3605 + $0xf0] sm:$0xff]
        %v3637 = vld [vmem:[%s3605 + $0xf8] sm:$0xff]
        %v3638 = vld [vmem:[%s3605 + $0x100] sm:$0xff]
        %v3639 = vld [vmem:[%s3605 + $0x108] sm:$0xff]
        %v3640 = vld [vmem:[%s3605 + $0x110] sm:$0xff]
        %v3641 = vld [vmem:[%s3605 + $0x118] sm:$0xff]
        %v3642 = vld [vmem:[%s3605 + $0x120] sm:$0xff]
        %v3643 = vld [vmem:[%s3605 + $0x128] sm:$0xff]
        %v3644 = vld [vmem:[%s3605 + $0x130] sm:$0xff]
        %v3645 = vld [vmem:[%s3605 + $0x138] sm:$0xff]
        %v3646 = vld [vmem:[%s3605 + $0x140] sm:$0xff]
        %v3647 = vld [vmem:[%s3605 + $0x148] sm:$0xff]
        %v3648 = vld [vmem:[%s3605 + $0x150] sm:$0xff]
        %v3649 = vld [vmem:[%s3605 + $0x158] sm:$0xff]
        %v3650 = vld [vmem:[%s3605 + $0x160] sm:$0xff]
        %v3651 = vld [vmem:[%s3605 + $0x168] sm:$0xff]
        %v3652 = vld [vmem:[%s3605 + $0x170] sm:$0xff]
        %v3653 = vld [vmem:[%s3605 + $0x178] sm:$0xff]
        %v3654 = vld [vmem:[%s3605 + $0x180] sm:$0xff]
        %v3655 = vld [vmem:[%s3605 + $0x188] sm:$0xff]
        %v3656 = vld [vmem:[%s3605 + $0x190] sm:$0xff]
        %v3657 = vld [vmem:[%s3605 + $0x198] sm:$0xff]
        %v3658 = vld [vmem:[%s3605 + $0x1a0] sm:$0xff]
        %v3659 = vld [vmem:[%s3605 + $0x1a8] sm:$0xff]
        %v3660 = vld [vmem:[%s3605 + $0x1b0] sm:$0xff]
        %v3661 = vld [vmem:[%s3605 + $0x1b8] sm:$0xff]
        %v3662 = vld [vmem:[%s3605 + $0x1c0] sm:$0xff]
        %v3663 = vld [vmem:[%s3605 + $0x1c8] sm:$0xff]
        %v3664 = vld [vmem:[%s3605 + $0x1d0] sm:$0xff]
        %v3665 = vld [vmem:[%s3605 + $0x1d8] sm:$0xff]
        %v3666 = vld [vmem:[%s3605 + $0x1e0] sm:$0xff]
        %v3667 = vld [vmem:[%s3605 + $0x1e8] sm:$0xff]
        %v3668 = vld [vmem:[%s3605 + $0x1f0] sm:$0xff]
        %v3669 = vld [vmem:[%s3605 + $0x1f8] sm:$0xff]
        %v3670 = vld [vmem:[%s3605 + $0x200] sm:$0xff]
        %v3671 = vld [vmem:[%s3605 + $0x208] sm:$0xff]
        %v3672 = vld [vmem:[%s3605 + $0x210] sm:$0xff]
        %v3673 = vld [vmem:[%s3605 + $0x218] sm:$0xff]
        %v3674 = vld [vmem:[%s3605 + $0x220] sm:$0xff]
        %v3675 = vld [vmem:[%s3605 + $0x228] sm:$0xff]
        %v3676 = vld [vmem:[%s3605 + $0x230] sm:$0xff]
        %v3677 = vld [vmem:[%s3605 + $0x238] sm:$0xff]
        %v3678 = vld [vmem:[%s3605 + $0x240] sm:$0xff]
        %v3679 = vld [vmem:[%s3605 + $0x248] sm:$0xff]
        %v3680 = vld [vmem:[%s3605 + $0x250] sm:$0xff]
        %v3681 = vld [vmem:[%s3605 + $0x258] sm:$0xff]
        %v3682 = vld [vmem:[%s3605 + $0x260] sm:$0xff]
        %v3683 = vld [vmem:[%s3605 + $0x268] sm:$0xff]
        %v3684 = vld [vmem:[%s3605 + $0x270] sm:$0xff]
        %v3685 = vld [vmem:[%s3605 + $0x278] sm:$0xff]
        %v3686 = vld [vmem:[#allocation4] sm:$0xfe]
        %v3687 = vld [vmem:[#allocation4 + $0x8] sm:$0xfe]
        %v3688 = vld [vmem:[#allocation4 + $0x10] sm:$0xfe]
        %v3689 = vld [vmem:[#allocation4 + $0x18] sm:$0x1]
        %v3690 = vld [vmem:[#allocation4 + $0x20] sm:$0x1]
        %v3691 = vld [vmem:[#allocation4 + $0x28] sm:$0x1]
        %s3692 = scalar_lea.vmem [#allocation11], 4480
        %v3693 = vld [vmem:[%s3692] sm:$0xff]
        %v3694 = vld [vmem:[%s3692 + $0x8] sm:$0xff]
        %v3695 = vld [vmem:[%s3692 + $0x10] sm:$0xff]
        %v3696 = vld [vmem:[%s3692 + $0x18] sm:$0xff]
        %v3697 = vld [vmem:[%s3692 + $0x20] sm:$0xff]
        %v3698 = vld [vmem:[%s3692 + $0x28] sm:$0xff]
        %v3699 = vld [vmem:[%s3692 + $0x30] sm:$0xff]
        %v3700 = vld [vmem:[%s3692 + $0x38] sm:$0xff]
        %v3701 = vld [vmem:[%s3692 + $0x40] sm:$0xff]
        %v3702 = vld [vmem:[%s3692 + $0x48] sm:$0xff]
        %v3703 = vld [vmem:[%s3692 + $0x50] sm:$0xff]
        %v3704 = vld [vmem:[%s3692 + $0x58] sm:$0xff]
        %v3705 = vld [vmem:[%s3692 + $0x60] sm:$0xff]
        %v3706 = vld [vmem:[%s3692 + $0x68] sm:$0xff]
        %v3707 = vld [vmem:[%s3692 + $0x70] sm:$0xff]
        %v3708 = vld [vmem:[%s3692 + $0x78] sm:$0xff]
        %v3709 = vld [vmem:[%s3692 + $0x80] sm:$0xff]
        %v3710 = vld [vmem:[%s3692 + $0x88] sm:$0xff]
        %v3711 = vld [vmem:[%s3692 + $0x90] sm:$0xff]
        %v3712 = vld [vmem:[%s3692 + $0x98] sm:$0xff]
        %v3713 = vld [vmem:[%s3692 + $0xa0] sm:$0xff]
        %v3714 = vld [vmem:[%s3692 + $0xa8] sm:$0xff]
        %v3715 = vld [vmem:[%s3692 + $0xb0] sm:$0xff]
        %v3716 = vld [vmem:[%s3692 + $0xb8] sm:$0xff]
        %v3717 = vld [vmem:[%s3692 + $0xc0] sm:$0xff]
        %v3718 = vld [vmem:[%s3692 + $0xc8] sm:$0xff]
        %v3719 = vld [vmem:[%s3692 + $0xd0] sm:$0xff]
        %v3720 = vld [vmem:[%s3692 + $0xd8] sm:$0xff]
        %v3721 = vld [vmem:[%s3692 + $0xe0] sm:$0xff]
        %v3722 = vld [vmem:[%s3692 + $0xe8] sm:$0xff]
        %v3723 = vld [vmem:[%s3692 + $0xf0] sm:$0xff]
        %v3724 = vld [vmem:[%s3692 + $0xf8] sm:$0xff]
        %v3725 = vld [vmem:[%s3692 + $0x100] sm:$0xff]
        %v3726 = vld [vmem:[%s3692 + $0x108] sm:$0xff]
        %v3727 = vld [vmem:[%s3692 + $0x110] sm:$0xff]
        %v3728 = vld [vmem:[%s3692 + $0x118] sm:$0xff]
        %v3729 = vld [vmem:[%s3692 + $0x120] sm:$0xff]
        %v3730 = vld [vmem:[%s3692 + $0x128] sm:$0xff]
        %v3731 = vld [vmem:[%s3692 + $0x130] sm:$0xff]
        %v3732 = vld [vmem:[%s3692 + $0x138] sm:$0xff]
        %v3733 = vld [vmem:[%s3692 + $0x140] sm:$0xff]
        %v3734 = vld [vmem:[%s3692 + $0x148] sm:$0xff]
        %v3735 = vld [vmem:[%s3692 + $0x150] sm:$0xff]
        %v3736 = vld [vmem:[%s3692 + $0x158] sm:$0xff]
        %v3737 = vld [vmem:[%s3692 + $0x160] sm:$0xff]
        %v3738 = vld [vmem:[%s3692 + $0x168] sm:$0xff]
        %v3739 = vld [vmem:[%s3692 + $0x170] sm:$0xff]
        %v3740 = vld [vmem:[%s3692 + $0x178] sm:$0xff]
        %v3741 = vld [vmem:[%s3692 + $0x180] sm:$0xff]
        %v3742 = vld [vmem:[%s3692 + $0x188] sm:$0xff]
        %v3743 = vld [vmem:[%s3692 + $0x190] sm:$0xff]
        %v3744 = vld [vmem:[%s3692 + $0x198] sm:$0xff]
        %v3745 = vld [vmem:[%s3692 + $0x1a0] sm:$0xff]
        %v3746 = vld [vmem:[%s3692 + $0x1a8] sm:$0xff]
        %v3747 = vld [vmem:[%s3692 + $0x1b0] sm:$0xff]
        %v3748 = vld [vmem:[%s3692 + $0x1b8] sm:$0xff]
        %v3749 = vld [vmem:[%s3692 + $0x1c0] sm:$0xff]
        %v3750 = vld [vmem:[%s3692 + $0x1c8] sm:$0xff]
        %v3751 = vld [vmem:[%s3692 + $0x1d0] sm:$0xff]
        %v3752 = vld [vmem:[%s3692 + $0x1d8] sm:$0xff]
        %v3753 = vld [vmem:[%s3692 + $0x1e0] sm:$0xff]
        %v3754 = vld [vmem:[%s3692 + $0x1e8] sm:$0xff]
        %v3755 = vld [vmem:[%s3692 + $0x1f0] sm:$0xff]
        %v3756 = vld [vmem:[%s3692 + $0x1f8] sm:$0xff]
        %v3757 = vld [vmem:[%s3692 + $0x200] sm:$0xff]
        %v3758 = vld [vmem:[%s3692 + $0x208] sm:$0xff]
        %v3759 = vld [vmem:[%s3692 + $0x210] sm:$0xff]
        %v3760 = vld [vmem:[%s3692 + $0x218] sm:$0xff]
        %v3761 = vld [vmem:[%s3692 + $0x220] sm:$0xff]
        %v3762 = vld [vmem:[%s3692 + $0x228] sm:$0xff]
        %v3763 = vld [vmem:[%s3692 + $0x230] sm:$0xff]
        %v3764 = vld [vmem:[%s3692 + $0x238] sm:$0xff]
        %v3765 = vld [vmem:[%s3692 + $0x240] sm:$0xff]
        %v3766 = vld [vmem:[%s3692 + $0x248] sm:$0xff]
        %v3767 = vld [vmem:[%s3692 + $0x250] sm:$0xff]
        %v3768 = vld [vmem:[%s3692 + $0x258] sm:$0xff]
        %v3769 = vld [vmem:[%s3692 + $0x260] sm:$0xff]
        %v3770 = vld [vmem:[%s3692 + $0x268] sm:$0xff]
        %v3771 = vld [vmem:[%s3692 + $0x270] sm:$0xff]
        %v3772 = vld [vmem:[%s3692 + $0x278] sm:$0xff]
        %v3779 = vrot.slane %v3686, 1
        %v3780 = vrot.slane %v3689, 1
        %v3781 = vsel %vm2252, %v3779, %v3780
        %v3782 = vrot.slane %v3687, 1
        %v3783 = vrot.slane %v3690, 1
        %v3784 = vsel %vm2252, %v3782, %v3783
        %v3785 = vrot.slane %v3688, 1
        %v3786 = vrot.slane %v3691, 1
        %v3787 = vsel %vm2252, %v3785, %v3786
        %v3790 = vsel %vm2046, %v3787, 0
        %3792 = vmatprep.subr.mxu0 %v3724
        %3793 = vmatpush1.msra.mxu0 %v3723
        %3794 = vmatprep.subr.mxu0 %v3722
        %3795 = vmatpush1.msra.mxu0 %v3721
        %3796 = vmatprep.subr.mxu0 %v3720
        %3797 = vmatpush1.msra.mxu0 %v3719
        %3798 = vmatprep.subr.mxu0 %v3718
        %3799 = vmatpush1.msra.mxu0 %v3717
        %3800 = vmatprep.subr.mxu0 %v3716
        %3801 = vmatpush1.msra.mxu0 %v3715
        %3802 = vmatprep.subr.mxu0 %v3714
        %3803 = vmatpush1.msra.mxu0 %v3713
        %3804 = vmatprep.subr.mxu0 %v3712
        %3805 = vmatpush1.msra.mxu0 %v3711
        %3806 = vmatprep.subr.mxu0 %v3710
        %3807 = vmatpush1.msra.mxu0 %v3709
        %3808 = vmatprep.subr.mxu0 %v3708
        %3809 = vmatpush1.msra.mxu0 %v3707
        %3810 = vmatprep.subr.mxu0 %v3706
        %3811 = vmatpush1.msra.mxu0 %v3705
        %3812 = vmatprep.subr.mxu0 %v3704
        %3813 = vmatpush1.msra.mxu0 %v3703
        %3814 = vmatprep.subr.mxu0 %v3702
        %3815 = vmatpush1.msra.mxu0 %v3701
        %3816 = vmatprep.subr.mxu0 %v3700
        %3817 = vmatpush1.msra.mxu0 %v3699
        %3818 = vmatprep.subr.mxu0 %v3698
        %3819 = vmatpush1.msra.mxu0 %v3697
        %3820 = vmatprep.subr.mxu0 %v3696
        %3821 = vmatpush1.msra.mxu0 %v3695
        %3822 = vmatprep.subr.mxu0 %v3694
        %3823 = vmatpush1.msra.mxu0 %v3693
        %3824 = vmatprep.subr.mxu0 %v3756
        %3825 = vmatpush2.msra.mxu0 %v3755
        %3826 = vmatprep.subr.mxu0 %v3754
        %3827 = vmatpush2.msra.mxu0 %v3753
        %3828 = vmatprep.subr.mxu0 %v3752
        %3829 = vmatpush2.msra.mxu0 %v3751
        %3830 = vmatprep.subr.mxu0 %v3750
        %3831 = vmatpush2.msra.mxu0 %v3749
        %3832 = vmatprep.subr.mxu0 %v3748
        %3833 = vmatpush2.msra.mxu0 %v3747
        %3834 = vmatprep.subr.mxu0 %v3746
        %3835 = vmatpush2.msra.mxu0 %v3745
        %3836 = vmatprep.subr.mxu0 %v3744
        %3837 = vmatpush2.msra.mxu0 %v3743
        %3838 = vmatprep.subr.mxu0 %v3742
        %3839 = vmatpush2.msra.mxu0 %v3741
        %3840 = vmatprep.subr.mxu0 %v3740
        %3841 = vmatpush2.msra.mxu0 %v3739
        %3842 = vmatprep.subr.mxu0 %v3738
        %3843 = vmatpush2.msra.mxu0 %v3737
        %3844 = vmatprep.subr.mxu0 %v3736
        %3845 = vmatpush2.msra.mxu0 %v3735
        %3846 = vmatprep.subr.mxu0 %v3734
        %3847 = vmatpush2.msra.mxu0 %v3733
        %3848 = vmatprep.subr.mxu0 %v3732
        %3849 = vmatpush2.msra.mxu0 %v3731
        %3850 = vmatprep.subr.mxu0 %v3730
        %3851 = vmatpush2.msra.mxu0 %v3729
        %3852 = vmatprep.subr.mxu0 %v3728
        %3853 = vmatpush2.msra.mxu0 %v3727
        %3854 = vmatprep.subr.mxu0 %v3726
        %3855 = vmatpush2.msra.mxu0 %v3725
        %3856 = vmatprep.mubr.f32.mxu0 %v3784
        %3857 = vmatmul.mubr.f32.gmra.mxu0 %v3781
        %v3858 = vpop.f32.mrf.mxu0
        %v3859 = vadd.f32 0.0, %v3858
        %v3860 = vpop.f32.mrf.mxu0
        %v3861 = vadd.f32 0.0, %v3860
        %3862 = vdwg.mxu0
        %3863 = vmatprep.subr.mxu0 0.0
        %3864 = vmatpush1.msra.mxu0 0.0
        %3865 = vmatprep.subr.mxu0 0.0
        %3866 = vmatpush1.msra.mxu0 0.0
        %3867 = vmatprep.subr.mxu0 0.0
        %3868 = vmatpush1.msra.mxu0 0.0
        %3869 = vmatprep.subr.mxu0 0.0
        %3870 = vmatpush1.msra.mxu0 0.0
        %3871 = vmatprep.subr.mxu0 0.0
        %3872 = vmatpush1.msra.mxu0 0.0
        %3873 = vmatprep.subr.mxu0 0.0
        %3874 = vmatpush1.msra.mxu0 0.0
        %3875 = vmatprep.subr.mxu0 0.0
        %3876 = vmatpush1.msra.mxu0 0.0
        %3877 = vmatprep.subr.mxu0 0.0
        %3878 = vmatpush1.msra.mxu0 0.0
        %3879 = vmatprep.subr.mxu0 %v3772
        %3880 = vmatpush1.msra.mxu0 %v3771
        %3881 = vmatprep.subr.mxu0 %v3770
        %3882 = vmatpush1.msra.mxu0 %v3769
        %3883 = vmatprep.subr.mxu0 %v3768
        %3884 = vmatpush1.msra.mxu0 %v3767
        %3885 = vmatprep.subr.mxu0 %v3766
        %3886 = vmatpush1.msra.mxu0 %v3765
        %3887 = vmatprep.subr.mxu0 %v3764
        %3888 = vmatpush1.msra.mxu0 %v3763
        %3889 = vmatprep.subr.mxu0 %v3762
        %3890 = vmatpush1.msra.mxu0 %v3761
        %3891 = vmatprep.subr.mxu0 %v3760
        %3892 = vmatpush1.msra.mxu0 %v3759
        %3893 = vmatprep.subr.mxu0 %v3758
        %3894 = vmatpush1.msra.mxu0 %v3757
        %3895 = vmatprep.subr.mxu0 0.0
        %3896 = vmatpush2.msra.mxu0 0.0
        %3897 = vmatprep.subr.mxu0 0.0
        %3898 = vmatpush2.msra.mxu0 0.0
        %3899 = vmatprep.subr.mxu0 0.0
        %3900 = vmatpush2.msra.mxu0 0.0
        %3901 = vmatprep.subr.mxu0 0.0
        %3902 = vmatpush2.msra.mxu0 0.0
        %3903 = vmatprep.subr.mxu0 0.0
        %3904 = vmatpush2.msra.mxu0 0.0
        %3905 = vmatprep.subr.mxu0 0.0
        %3906 = vmatpush2.msra.mxu0 0.0
        %3907 = vmatprep.subr.mxu0 0.0
        %3908 = vmatpush2.msra.mxu0 0.0
        %3909 = vmatprep.subr.mxu0 0.0
        %3910 = vmatpush2.msra.mxu0 0.0
        %3911 = vmatprep.subr.mxu0 0.0
        %3912 = vmatpush2.msra.mxu0 0.0
        %3913 = vmatprep.subr.mxu0 0.0
        %3914 = vmatpush2.msra.mxu0 0.0
        %3915 = vmatprep.subr.mxu0 0.0
        %3916 = vmatpush2.msra.mxu0 0.0
        %3917 = vmatprep.subr.mxu0 0.0
        %3918 = vmatpush2.msra.mxu0 0.0
        %3919 = vmatprep.subr.mxu0 0.0
        %3920 = vmatpush2.msra.mxu0 0.0
        %3921 = vmatprep.subr.mxu0 0.0
        %3922 = vmatpush2.msra.mxu0 0.0
        %3923 = vmatprep.subr.mxu0 0.0
        %3924 = vmatpush2.msra.mxu0 0.0
        %3925 = vmatprep.subr.mxu0 0.0
        %3926 = vmatpush2.msra.mxu0 0.0
        %3927 = vmatprep.mubr.f32.mxu0 0.0
        %3928 = vmatmul.mubr.f32.gmra.mxu0 %v3790
        %v3929 = vpop.f32.mrf.mxu0
        %v3930 = vadd.f32 %v3859, %v3929
        %v3931 = vpop.f32.mrf.mxu0
        %v3932 = vadd.f32 %v3861, %v3931
        %3933 = vdwg.mxu0
        %v3935 = vsel %vm2046, %v3604, 0
        %3937 = vmatprep.subr.mxu0 %v3637
        %3938 = vmatpush1.msra.mxu0 %v3636
        %3939 = vmatprep.subr.mxu0 %v3635
        %3940 = vmatpush1.msra.mxu0 %v3634
        %3941 = vmatprep.subr.mxu0 %v3633
        %3942 = vmatpush1.msra.mxu0 %v3632
        %3943 = vmatprep.subr.mxu0 %v3631
        %3944 = vmatpush1.msra.mxu0 %v3630
        %3945 = vmatprep.subr.mxu0 %v3629
        %3946 = vmatpush1.msra.mxu0 %v3628
        %3947 = vmatprep.subr.mxu0 %v3627
        %3948 = vmatpush1.msra.mxu0 %v3626
        %3949 = vmatprep.subr.mxu0 %v3625
        %3950 = vmatpush1.msra.mxu0 %v3624
        %3951 = vmatprep.subr.mxu0 %v3623
        %3952 = vmatpush1.msra.mxu0 %v3622
        %3953 = vmatprep.subr.mxu0 %v3621
        %3954 = vmatpush1.msra.mxu0 %v3620
        %3955 = vmatprep.subr.mxu0 %v3619
        %3956 = vmatpush1.msra.mxu0 %v3618
        %3957 = vmatprep.subr.mxu0 %v3617
        %3958 = vmatpush1.msra.mxu0 %v3616
        %3959 = vmatprep.subr.mxu0 %v3615
        %3960 = vmatpush1.msra.mxu0 %v3614
        %3961 = vmatprep.subr.mxu0 %v3613
        %3962 = vmatpush1.msra.mxu0 %v3612
        %3963 = vmatprep.subr.mxu0 %v3611
        %3964 = vmatpush1.msra.mxu0 %v3610
        %3965 = vmatprep.subr.mxu0 %v3609
        %3966 = vmatpush1.msra.mxu0 %v3608
        %3967 = vmatprep.subr.mxu0 %v3607
        %3968 = vmatpush1.msra.mxu0 %v3606
        %3969 = vmatprep.subr.mxu0 %v3669
        %3970 = vmatpush2.msra.mxu0 %v3668
        %3971 = vmatprep.subr.mxu0 %v3667
        %3972 = vmatpush2.msra.mxu0 %v3666
        %3973 = vmatprep.subr.mxu0 %v3665
        %3974 = vmatpush2.msra.mxu0 %v3664
        %3975 = vmatprep.subr.mxu0 %v3663
        %3976 = vmatpush2.msra.mxu0 %v3662
        %3977 = vmatprep.subr.mxu0 %v3661
        %3978 = vmatpush2.msra.mxu0 %v3660
        %3979 = vmatprep.subr.mxu0 %v3659
        %3980 = vmatpush2.msra.mxu0 %v3658
        %3981 = vmatprep.subr.mxu0 %v3657
        %3982 = vmatpush2.msra.mxu0 %v3656
        %3983 = vmatprep.subr.mxu0 %v3655
        %3984 = vmatpush2.msra.mxu0 %v3654
        %3985 = vmatprep.subr.mxu0 %v3653
        %3986 = vmatpush2.msra.mxu0 %v3652
        %3987 = vmatprep.subr.mxu0 %v3651
        %3988 = vmatpush2.msra.mxu0 %v3650
        %3989 = vmatprep.subr.mxu0 %v3649
        %3990 = vmatpush2.msra.mxu0 %v3648
        %3991 = vmatprep.subr.mxu0 %v3647
        %3992 = vmatpush2.msra.mxu0 %v3646
        %3993 = vmatprep.subr.mxu0 %v3645
        %3994 = vmatpush2.msra.mxu0 %v3644
        %3995 = vmatprep.subr.mxu0 %v3643
        %3996 = vmatpush2.msra.mxu0 %v3642
        %3997 = vmatprep.subr.mxu0 %v3641
        %3998 = vmatpush2.msra.mxu0 %v3640
        %3999 = vmatprep.subr.mxu0 %v3639
        %4000 = vmatpush2.msra.mxu0 %v3638
        %4001 = vmatprep.mubr.f32.mxu0 %v3603
        %4002 = vmatmul.mubr.f32.gmra.mxu0 %v3602
        %v4003 = vpop.f32.mrf.mxu0
        %v4004 = vadd.f32 %v3930, %v4003
        %v4005 = vpop.f32.mrf.mxu0
        %v4006 = vadd.f32 %v3932, %v4005
        %4007 = vdwg.mxu0
        %4008 = vmatprep.subr.mxu0 0.0
        %4009 = vmatpush1.msra.mxu0 0.0
        %4010 = vmatprep.subr.mxu0 0.0
        %4011 = vmatpush1.msra.mxu0 0.0
        %4012 = vmatprep.subr.mxu0 0.0
        %4013 = vmatpush1.msra.mxu0 0.0
        %4014 = vmatprep.subr.mxu0 0.0
        %4015 = vmatpush1.msra.mxu0 0.0
        %4016 = vmatprep.subr.mxu0 0.0
        %4017 = vmatpush1.msra.mxu0 0.0
        %4018 = vmatprep.subr.mxu0 0.0
        %4019 = vmatpush1.msra.mxu0 0.0
        %4020 = vmatprep.subr.mxu0 0.0
        %4021 = vmatpush1.msra.mxu0 0.0
        %4022 = vmatprep.subr.mxu0 0.0
        %4023 = vmatpush1.msra.mxu0 0.0
        %4024 = vmatprep.subr.mxu0 %v3685
        %4025 = vmatpush1.msra.mxu0 %v3684
        %4026 = vmatprep.subr.mxu0 %v3683
        %4027 = vmatpush1.msra.mxu0 %v3682
        %4028 = vmatprep.subr.mxu0 %v3681
        %4029 = vmatpush1.msra.mxu0 %v3680
        %4030 = vmatprep.subr.mxu0 %v3679
        %4031 = vmatpush1.msra.mxu0 %v3678
        %4032 = vmatprep.subr.mxu0 %v3677
        %4033 = vmatpush1.msra.mxu0 %v3676
        %4034 = vmatprep.subr.mxu0 %v3675
        %4035 = vmatpush1.msra.mxu0 %v3674
        %4036 = vmatprep.subr.mxu0 %v3673
        %4037 = vmatpush1.msra.mxu0 %v3672
        %4038 = vmatprep.subr.mxu0 %v3671
        %4039 = vmatpush1.msra.mxu0 %v3670
        %4040 = vmatprep.subr.mxu0 0.0
        %4041 = vmatpush2.msra.mxu0 0.0
        %4042 = vmatprep.subr.mxu0 0.0
        %4043 = vmatpush2.msra.mxu0 0.0
        %4044 = vmatprep.subr.mxu0 0.0
        %4045 = vmatpush2.msra.mxu0 0.0
        %4046 = vmatprep.subr.mxu0 0.0
        %4047 = vmatpush2.msra.mxu0 0.0
        %4048 = vmatprep.subr.mxu0 0.0
        %4049 = vmatpush2.msra.mxu0 0.0
        %4050 = vmatprep.subr.mxu0 0.0
        %4051 = vmatpush2.msra.mxu0 0.0
        %4052 = vmatprep.subr.mxu0 0.0
        %4053 = vmatpush2.msra.mxu0 0.0
        %4054 = vmatprep.subr.mxu0 0.0
        %4055 = vmatpush2.msra.mxu0 0.0
        %4056 = vmatprep.subr.mxu0 0.0
        %4057 = vmatpush2.msra.mxu0 0.0
        %4058 = vmatprep.subr.mxu0 0.0
        %4059 = vmatpush2.msra.mxu0 0.0
        %4060 = vmatprep.subr.mxu0 0.0
        %4061 = vmatpush2.msra.mxu0 0.0
        %4062 = vmatprep.subr.mxu0 0.0
        %4063 = vmatpush2.msra.mxu0 0.0
        %4064 = vmatprep.subr.mxu0 0.0
        %4065 = vmatpush2.msra.mxu0 0.0
        %4066 = vmatprep.subr.mxu0 0.0
        %4067 = vmatpush2.msra.mxu0 0.0
        %4068 = vmatprep.subr.mxu0 0.0
        %4069 = vmatpush2.msra.mxu0 0.0
        %4070 = vmatprep.subr.mxu0 0.0
        %4071 = vmatpush2.msra.mxu0 0.0
        %4072 = vmatprep.mubr.f32.mxu0 0.0
        %4073 = vmatmul.mubr.f32.gmra.mxu0 %v3935
        %v4074 = vpop.f32.mrf.mxu0
        %v4075 = vadd.f32 %v4004, %v4074
        %v4076 = vpop.f32.mrf.mxu0
        %v4077 = vadd.f32 %v4006, %v4076
        %4078 = vdwg.mxu0
        %v4079 = vld [vmem:[#allocation4] sm:$0xfc]
        %v4080 = vld [vmem:[#allocation4 + $0x8] sm:$0xfc]
        %v4081 = vld [vmem:[#allocation4 + $0x10] sm:$0xfc]
        %v4082 = vld [vmem:[#allocation4 + $0x18] sm:$0x3]
        %v4083 = vld [vmem:[#allocation4 + $0x20] sm:$0x3]
        %v4084 = vld [vmem:[#allocation4 + $0x28] sm:$0x3]
        %s4085 = scalar_lea.vmem [#allocation11], 5120
        %v4086 = vld [vmem:[%s4085] sm:$0xff]
        %v4087 = vld [vmem:[%s4085 + $0x8] sm:$0xff]
        %v4088 = vld [vmem:[%s4085 + $0x10] sm:$0xff]
        %v4089 = vld [vmem:[%s4085 + $0x18] sm:$0xff]
        %v4090 = vld [vmem:[%s4085 + $0x20] sm:$0xff]
        %v4091 = vld [vmem:[%s4085 + $0x28] sm:$0xff]
        %v4092 = vld [vmem:[%s4085 + $0x30] sm:$0xff]
        %v4093 = vld [vmem:[%s4085 + $0x38] sm:$0xff]
        %v4094 = vld [vmem:[%s4085 + $0x40] sm:$0xff]
        %v4095 = vld [vmem:[%s4085 + $0x48] sm:$0xff]
        %v4096 = vld [vmem:[%s4085 + $0x50] sm:$0xff]
        %v4097 = vld [vmem:[%s4085 + $0x58] sm:$0xff]
        %v4098 = vld [vmem:[%s4085 + $0x60] sm:$0xff]
        %v4099 = vld [vmem:[%s4085 + $0x68] sm:$0xff]
        %v4100 = vld [vmem:[%s4085 + $0x70] sm:$0xff]
        %v4101 = vld [vmem:[%s4085 + $0x78] sm:$0xff]
        %v4102 = vld [vmem:[%s4085 + $0x80] sm:$0xff]
        %v4103 = vld [vmem:[%s4085 + $0x88] sm:$0xff]
        %v4104 = vld [vmem:[%s4085 + $0x90] sm:$0xff]
        %v4105 = vld [vmem:[%s4085 + $0x98] sm:$0xff]
        %v4106 = vld [vmem:[%s4085 + $0xa0] sm:$0xff]
        %v4107 = vld [vmem:[%s4085 + $0xa8] sm:$0xff]
        %v4108 = vld [vmem:[%s4085 + $0xb0] sm:$0xff]
        %v4109 = vld [vmem:[%s4085 + $0xb8] sm:$0xff]
        %v4110 = vld [vmem:[%s4085 + $0xc0] sm:$0xff]
        %v4111 = vld [vmem:[%s4085 + $0xc8] sm:$0xff]
        %v4112 = vld [vmem:[%s4085 + $0xd0] sm:$0xff]
        %v4113 = vld [vmem:[%s4085 + $0xd8] sm:$0xff]
        %v4114 = vld [vmem:[%s4085 + $0xe0] sm:$0xff]
        %v4115 = vld [vmem:[%s4085 + $0xe8] sm:$0xff]
        %v4116 = vld [vmem:[%s4085 + $0xf0] sm:$0xff]
        %v4117 = vld [vmem:[%s4085 + $0xf8] sm:$0xff]
        %v4118 = vld [vmem:[%s4085 + $0x100] sm:$0xff]
        %v4119 = vld [vmem:[%s4085 + $0x108] sm:$0xff]
        %v4120 = vld [vmem:[%s4085 + $0x110] sm:$0xff]
        %v4121 = vld [vmem:[%s4085 + $0x118] sm:$0xff]
        %v4122 = vld [vmem:[%s4085 + $0x120] sm:$0xff]
        %v4123 = vld [vmem:[%s4085 + $0x128] sm:$0xff]
        %v4124 = vld [vmem:[%s4085 + $0x130] sm:$0xff]
        %v4125 = vld [vmem:[%s4085 + $0x138] sm:$0xff]
        %v4126 = vld [vmem:[%s4085 + $0x140] sm:$0xff]
        %v4127 = vld [vmem:[%s4085 + $0x148] sm:$0xff]
        %v4128 = vld [vmem:[%s4085 + $0x150] sm:$0xff]
        %v4129 = vld [vmem:[%s4085 + $0x158] sm:$0xff]
        %v4130 = vld [vmem:[%s4085 + $0x160] sm:$0xff]
        %v4131 = vld [vmem:[%s4085 + $0x168] sm:$0xff]
        %v4132 = vld [vmem:[%s4085 + $0x170] sm:$0xff]
        %v4133 = vld [vmem:[%s4085 + $0x178] sm:$0xff]
        %v4134 = vld [vmem:[%s4085 + $0x180] sm:$0xff]
        %v4135 = vld [vmem:[%s4085 + $0x188] sm:$0xff]
        %v4136 = vld [vmem:[%s4085 + $0x190] sm:$0xff]
        %v4137 = vld [vmem:[%s4085 + $0x198] sm:$0xff]
        %v4138 = vld [vmem:[%s4085 + $0x1a0] sm:$0xff]
        %v4139 = vld [vmem:[%s4085 + $0x1a8] sm:$0xff]
        %v4140 = vld [vmem:[%s4085 + $0x1b0] sm:$0xff]
        %v4141 = vld [vmem:[%s4085 + $0x1b8] sm:$0xff]
        %v4142 = vld [vmem:[%s4085 + $0x1c0] sm:$0xff]
        %v4143 = vld [vmem:[%s4085 + $0x1c8] sm:$0xff]
        %v4144 = vld [vmem:[%s4085 + $0x1d0] sm:$0xff]
        %v4145 = vld [vmem:[%s4085 + $0x1d8] sm:$0xff]
        %v4146 = vld [vmem:[%s4085 + $0x1e0] sm:$0xff]
        %v4147 = vld [vmem:[%s4085 + $0x1e8] sm:$0xff]
        %v4148 = vld [vmem:[%s4085 + $0x1f0] sm:$0xff]
        %v4149 = vld [vmem:[%s4085 + $0x1f8] sm:$0xff]
        %v4150 = vld [vmem:[%s4085 + $0x200] sm:$0xff]
        %v4151 = vld [vmem:[%s4085 + $0x208] sm:$0xff]
        %v4152 = vld [vmem:[%s4085 + $0x210] sm:$0xff]
        %v4153 = vld [vmem:[%s4085 + $0x218] sm:$0xff]
        %v4154 = vld [vmem:[%s4085 + $0x220] sm:$0xff]
        %v4155 = vld [vmem:[%s4085 + $0x228] sm:$0xff]
        %v4156 = vld [vmem:[%s4085 + $0x230] sm:$0xff]
        %v4157 = vld [vmem:[%s4085 + $0x238] sm:$0xff]
        %v4158 = vld [vmem:[%s4085 + $0x240] sm:$0xff]
        %v4159 = vld [vmem:[%s4085 + $0x248] sm:$0xff]
        %v4160 = vld [vmem:[%s4085 + $0x250] sm:$0xff]
        %v4161 = vld [vmem:[%s4085 + $0x258] sm:$0xff]
        %v4162 = vld [vmem:[%s4085 + $0x260] sm:$0xff]
        %v4163 = vld [vmem:[%s4085 + $0x268] sm:$0xff]
        %v4164 = vld [vmem:[%s4085 + $0x270] sm:$0xff]
        %v4165 = vld [vmem:[%s4085 + $0x278] sm:$0xff]
        %v4172 = vrot.slane %v4079, 2
        %v4173 = vrot.slane %v4082, 2
        %v4174 = vsel %vm2646, %v4172, %v4173
        %v4175 = vrot.slane %v4080, 2
        %v4176 = vrot.slane %v4083, 2
        %v4177 = vsel %vm2646, %v4175, %v4176
        %v4178 = vrot.slane %v4081, 2
        %v4179 = vrot.slane %v4084, 2
        %v4180 = vsel %vm2646, %v4178, %v4179
        %v4183 = vsel %vm2046, %v4180, 0
        %4185 = vmatprep.subr.mxu0 %v4117
        %4186 = vmatpush1.msra.mxu0 %v4116
        %4187 = vmatprep.subr.mxu0 %v4115
        %4188 = vmatpush1.msra.mxu0 %v4114
        %4189 = vmatprep.subr.mxu0 %v4113
        %4190 = vmatpush1.msra.mxu0 %v4112
        %4191 = vmatprep.subr.mxu0 %v4111
        %4192 = vmatpush1.msra.mxu0 %v4110
        %4193 = vmatprep.subr.mxu0 %v4109
        %4194 = vmatpush1.msra.mxu0 %v4108
        %4195 = vmatprep.subr.mxu0 %v4107
        %4196 = vmatpush1.msra.mxu0 %v4106
        %4197 = vmatprep.subr.mxu0 %v4105
        %4198 = vmatpush1.msra.mxu0 %v4104
        %4199 = vmatprep.subr.mxu0 %v4103
        %4200 = vmatpush1.msra.mxu0 %v4102
        %4201 = vmatprep.subr.mxu0 %v4101
        %4202 = vmatpush1.msra.mxu0 %v4100
        %4203 = vmatprep.subr.mxu0 %v4099
        %4204 = vmatpush1.msra.mxu0 %v4098
        %4205 = vmatprep.subr.mxu0 %v4097
        %4206 = vmatpush1.msra.mxu0 %v4096
        %4207 = vmatprep.subr.mxu0 %v4095
        %4208 = vmatpush1.msra.mxu0 %v4094
        %4209 = vmatprep.subr.mxu0 %v4093
        %4210 = vmatpush1.msra.mxu0 %v4092
        %4211 = vmatprep.subr.mxu0 %v4091
        %4212 = vmatpush1.msra.mxu0 %v4090
        %4213 = vmatprep.subr.mxu0 %v4089
        %4214 = vmatpush1.msra.mxu0 %v4088
        %4215 = vmatprep.subr.mxu0 %v4087
        %4216 = vmatpush1.msra.mxu0 %v4086
        %4217 = vmatprep.subr.mxu0 %v4149
        %4218 = vmatpush2.msra.mxu0 %v4148
        %4219 = vmatprep.subr.mxu0 %v4147
        %4220 = vmatpush2.msra.mxu0 %v4146
        %4221 = vmatprep.subr.mxu0 %v4145
        %4222 = vmatpush2.msra.mxu0 %v4144
        %4223 = vmatprep.subr.mxu0 %v4143
        %4224 = vmatpush2.msra.mxu0 %v4142
        %4225 = vmatprep.subr.mxu0 %v4141
        %4226 = vmatpush2.msra.mxu0 %v4140
        %4227 = vmatprep.subr.mxu0 %v4139
        %4228 = vmatpush2.msra.mxu0 %v4138
        %4229 = vmatprep.subr.mxu0 %v4137
        %4230 = vmatpush2.msra.mxu0 %v4136
        %4231 = vmatprep.subr.mxu0 %v4135
        %4232 = vmatpush2.msra.mxu0 %v4134
        %4233 = vmatprep.subr.mxu0 %v4133
        %4234 = vmatpush2.msra.mxu0 %v4132
        %4235 = vmatprep.subr.mxu0 %v4131
        %4236 = vmatpush2.msra.mxu0 %v4130
        %4237 = vmatprep.subr.mxu0 %v4129
        %4238 = vmatpush2.msra.mxu0 %v4128
        %4239 = vmatprep.subr.mxu0 %v4127
        %4240 = vmatpush2.msra.mxu0 %v4126
        %4241 = vmatprep.subr.mxu0 %v4125
        %4242 = vmatpush2.msra.mxu0 %v4124
        %4243 = vmatprep.subr.mxu0 %v4123
        %4244 = vmatpush2.msra.mxu0 %v4122
        %4245 = vmatprep.subr.mxu0 %v4121
        %4246 = vmatpush2.msra.mxu0 %v4120
        %4247 = vmatprep.subr.mxu0 %v4119
        %4248 = vmatpush2.msra.mxu0 %v4118
        %4249 = vmatprep.mubr.f32.mxu0 %v4177
        %4250 = vmatmul.mubr.f32.gmra.mxu0 %v4174
        %v4251 = vpop.f32.mrf.mxu0
        %v4252 = vadd.f32 0.0, %v4251
        %v4253 = vpop.f32.mrf.mxu0
        %v4254 = vadd.f32 0.0, %v4253
        %4255 = vdwg.mxu0
        %4256 = vmatprep.subr.mxu0 0.0
        %4257 = vmatpush1.msra.mxu0 0.0
        %4258 = vmatprep.subr.mxu0 0.0
        %4259 = vmatpush1.msra.mxu0 0.0
        %4260 = vmatprep.subr.mxu0 0.0
        %4261 = vmatpush1.msra.mxu0 0.0
        %4262 = vmatprep.subr.mxu0 0.0
        %4263 = vmatpush1.msra.mxu0 0.0
        %4264 = vmatprep.subr.mxu0 0.0
        %4265 = vmatpush1.msra.mxu0 0.0
        %4266 = vmatprep.subr.mxu0 0.0
        %4267 = vmatpush1.msra.mxu0 0.0
        %4268 = vmatprep.subr.mxu0 0.0
        %4269 = vmatpush1.msra.mxu0 0.0
        %4270 = vmatprep.subr.mxu0 0.0
        %4271 = vmatpush1.msra.mxu0 0.0
        %4272 = vmatprep.subr.mxu0 %v4165
        %4273 = vmatpush1.msra.mxu0 %v4164
        %4274 = vmatprep.subr.mxu0 %v4163
        %4275 = vmatpush1.msra.mxu0 %v4162
        %4276 = vmatprep.subr.mxu0 %v4161
        %4277 = vmatpush1.msra.mxu0 %v4160
        %4278 = vmatprep.subr.mxu0 %v4159
        %4279 = vmatpush1.msra.mxu0 %v4158
        %4280 = vmatprep.subr.mxu0 %v4157
        %4281 = vmatpush1.msra.mxu0 %v4156
        %4282 = vmatprep.subr.mxu0 %v4155
        %4283 = vmatpush1.msra.mxu0 %v4154
        %4284 = vmatprep.subr.mxu0 %v4153
        %4285 = vmatpush1.msra.mxu0 %v4152
        %4286 = vmatprep.subr.mxu0 %v4151
        %4287 = vmatpush1.msra.mxu0 %v4150
        %4288 = vmatprep.subr.mxu0 0.0
        %4289 = vmatpush2.msra.mxu0 0.0
        %4290 = vmatprep.subr.mxu0 0.0
        %4291 = vmatpush2.msra.mxu0 0.0
        %4292 = vmatprep.subr.mxu0 0.0
        %4293 = vmatpush2.msra.mxu0 0.0
        %4294 = vmatprep.subr.mxu0 0.0
        %4295 = vmatpush2.msra.mxu0 0.0
        %4296 = vmatprep.subr.mxu0 0.0
        %4297 = vmatpush2.msra.mxu0 0.0
        %4298 = vmatprep.subr.mxu0 0.0
        %4299 = vmatpush2.msra.mxu0 0.0
        %4300 = vmatprep.subr.mxu0 0.0
        %4301 = vmatpush2.msra.mxu0 0.0
        %4302 = vmatprep.subr.mxu0 0.0
        %4303 = vmatpush2.msra.mxu0 0.0
        %4304 = vmatprep.subr.mxu0 0.0
        %4305 = vmatpush2.msra.mxu0 0.0
        %4306 = vmatprep.subr.mxu0 0.0
        %4307 = vmatpush2.msra.mxu0 0.0
        %4308 = vmatprep.subr.mxu0 0.0
        %4309 = vmatpush2.msra.mxu0 0.0
        %4310 = vmatprep.subr.mxu0 0.0
        %4311 = vmatpush2.msra.mxu0 0.0
        %4312 = vmatprep.subr.mxu0 0.0
        %4313 = vmatpush2.msra.mxu0 0.0
        %4314 = vmatprep.subr.mxu0 0.0
        %4315 = vmatpush2.msra.mxu0 0.0
        %4316 = vmatprep.subr.mxu0 0.0
        %4317 = vmatpush2.msra.mxu0 0.0
        %4318 = vmatprep.subr.mxu0 0.0
        %4319 = vmatpush2.msra.mxu0 0.0
        %4320 = vmatprep.mubr.f32.mxu0 0.0
        %4321 = vmatmul.mubr.f32.gmra.mxu0 %v4183
        %v4322 = vpop.f32.mrf.mxu0
        %v4323 = vadd.f32 %v4252, %v4322
        %v4324 = vpop.f32.mrf.mxu0
        %v4325 = vadd.f32 %v4254, %v4324
        %4326 = vdwg.mxu0
        %v4327 = vadd.f32 %v4075, %v4323
        %v4328 = vadd.f32 %v4077, %v4325
        %s4329 = scalar_lea.vmem [#allocation13], 4
        %v4330 = vld [vmem:[%s4329] sm:$0x3]
        %v4332 = vlaneseq
        %v4333 = vshrl.u32 %v4332, 7
        %v4334 = vsub.s32 0, %v4333
        %v4335 = vrot.slane %v4330, %v4334
        %v4336 = vlaneseq
        %v4337 = vshrl.u32 %v4336, 7
        %v4338 = vsub.s32 1, %v4337
        %v4339 = vrot.slane %v4330, %v4338
        %v4342 = vadd.f32 %v4327, %v4335
        %v4343 = vadd.f32 %v4328, %v4339
        %v4344 = vmax.f32 %v4342, 0.0
        %v4345 = vmax.f32 %v4343, 0.0
        %v4348 = vrot.slane %v4344, 7
        %v4349 = vrot.slane %v4345, 7
        %4350 = vrot.lane.b32.xlu0 %v4348, 32
        %v4351 = vpop.permute.xlu0 %4350
        %4352 = vrot.lane.b32.xlu0 %v4349, 32
        %v4353 = vpop.permute.xlu0 %4352
        %v4354 = vsel %vm1472, %v4351, %v4353
        %4358 = vst.msk [vmem:[#allocation4] sm:$0xfe] %vm2066, %v4351
        %4359 = vst [vmem:[#allocation4 + $0x8] sm:$0xfe] %v4354
        %4360 = vst.msk [vmem:[#allocation4 + $0x10] sm:$0xfe] %vm2069, %v4353
        %4361 = vst.msk [vmem:[#allocation4 + $0x18] sm:$0x1] %vm2071, %v4351
        %4362 = vst [vmem:[#allocation4 + $0x20] sm:$0x1] %v4354
        %4363 = vst.msk [vmem:[#allocation4 + $0x28] sm:$0x1] %vm2074, %v4353
        %v4364 = vld [vmem:[#allocation4] sm:$0xff]
        %v4365 = vld [vmem:[#allocation4 + $0x8] sm:$0xff]
        %v4366 = vld [vmem:[#allocation4 + $0x10] sm:$0xff]
        %s4367 = scalar_lea.vmem [#allocation11], 5760
        %v4368 = vld [vmem:[%s4367] sm:$0xff]
        %v4369 = vld [vmem:[%s4367 + $0x8] sm:$0xff]
        %v4370 = vld [vmem:[%s4367 + $0x10] sm:$0xff]
        %v4371 = vld [vmem:[%s4367 + $0x18] sm:$0xff]
        %v4372 = vld [vmem:[%s4367 + $0x20] sm:$0xff]
        %v4373 = vld [vmem:[%s4367 + $0x28] sm:$0xff]
        %v4374 = vld [vmem:[%s4367 + $0x30] sm:$0xff]
        %v4375 = vld [vmem:[%s4367 + $0x38] sm:$0xff]
        %v4376 = vld [vmem:[%s4367 + $0x40] sm:$0xff]
        %v4377 = vld [vmem:[%s4367 + $0x48] sm:$0xff]
        %v4378 = vld [vmem:[%s4367 + $0x50] sm:$0xff]
        %v4379 = vld [vmem:[%s4367 + $0x58] sm:$0xff]
        %v4380 = vld [vmem:[%s4367 + $0x60] sm:$0xff]
        %v4381 = vld [vmem:[%s4367 + $0x68] sm:$0xff]
        %v4382 = vld [vmem:[%s4367 + $0x70] sm:$0xff]
        %v4383 = vld [vmem:[%s4367 + $0x78] sm:$0xff]
        %v4384 = vld [vmem:[%s4367 + $0x80] sm:$0xff]
        %v4385 = vld [vmem:[%s4367 + $0x88] sm:$0xff]
        %v4386 = vld [vmem:[%s4367 + $0x90] sm:$0xff]
        %v4387 = vld [vmem:[%s4367 + $0x98] sm:$0xff]
        %v4388 = vld [vmem:[%s4367 + $0xa0] sm:$0xff]
        %v4389 = vld [vmem:[%s4367 + $0xa8] sm:$0xff]
        %v4390 = vld [vmem:[%s4367 + $0xb0] sm:$0xff]
        %v4391 = vld [vmem:[%s4367 + $0xb8] sm:$0xff]
        %v4392 = vld [vmem:[%s4367 + $0xc0] sm:$0xff]
        %v4393 = vld [vmem:[%s4367 + $0xc8] sm:$0xff]
        %v4394 = vld [vmem:[%s4367 + $0xd0] sm:$0xff]
        %v4395 = vld [vmem:[%s4367 + $0xd8] sm:$0xff]
        %v4396 = vld [vmem:[%s4367 + $0xe0] sm:$0xff]
        %v4397 = vld [vmem:[%s4367 + $0xe8] sm:$0xff]
        %v4398 = vld [vmem:[%s4367 + $0xf0] sm:$0xff]
        %v4399 = vld [vmem:[%s4367 + $0xf8] sm:$0xff]
        %v4400 = vld [vmem:[%s4367 + $0x100] sm:$0xff]
        %v4401 = vld [vmem:[%s4367 + $0x108] sm:$0xff]
        %v4402 = vld [vmem:[%s4367 + $0x110] sm:$0xff]
        %v4403 = vld [vmem:[%s4367 + $0x118] sm:$0xff]
        %v4404 = vld [vmem:[%s4367 + $0x120] sm:$0xff]
        %v4405 = vld [vmem:[%s4367 + $0x128] sm:$0xff]
        %v4406 = vld [vmem:[%s4367 + $0x130] sm:$0xff]
        %v4407 = vld [vmem:[%s4367 + $0x138] sm:$0xff]
        %v4408 = vld [vmem:[%s4367 + $0x140] sm:$0xff]
        %v4409 = vld [vmem:[%s4367 + $0x148] sm:$0xff]
        %v4410 = vld [vmem:[%s4367 + $0x150] sm:$0xff]
        %v4411 = vld [vmem:[%s4367 + $0x158] sm:$0xff]
        %v4412 = vld [vmem:[%s4367 + $0x160] sm:$0xff]
        %v4413 = vld [vmem:[%s4367 + $0x168] sm:$0xff]
        %v4414 = vld [vmem:[%s4367 + $0x170] sm:$0xff]
        %v4415 = vld [vmem:[%s4367 + $0x178] sm:$0xff]
        %v4416 = vld [vmem:[%s4367 + $0x180] sm:$0xff]
        %v4417 = vld [vmem:[%s4367 + $0x188] sm:$0xff]
        %v4418 = vld [vmem:[%s4367 + $0x190] sm:$0xff]
        %v4419 = vld [vmem:[%s4367 + $0x198] sm:$0xff]
        %v4420 = vld [vmem:[%s4367 + $0x1a0] sm:$0xff]
        %v4421 = vld [vmem:[%s4367 + $0x1a8] sm:$0xff]
        %v4422 = vld [vmem:[%s4367 + $0x1b0] sm:$0xff]
        %v4423 = vld [vmem:[%s4367 + $0x1b8] sm:$0xff]
        %v4424 = vld [vmem:[%s4367 + $0x1c0] sm:$0xff]
        %v4425 = vld [vmem:[%s4367 + $0x1c8] sm:$0xff]
        %v4426 = vld [vmem:[%s4367 + $0x1d0] sm:$0xff]
        %v4427 = vld [vmem:[%s4367 + $0x1d8] sm:$0xff]
        %v4428 = vld [vmem:[%s4367 + $0x1e0] sm:$0xff]
        %v4429 = vld [vmem:[%s4367 + $0x1e8] sm:$0xff]
        %v4430 = vld [vmem:[%s4367 + $0x1f0] sm:$0xff]
        %v4431 = vld [vmem:[%s4367 + $0x1f8] sm:$0xff]
        %v4432 = vld [vmem:[%s4367 + $0x200] sm:$0xff]
        %v4433 = vld [vmem:[%s4367 + $0x208] sm:$0xff]
        %v4434 = vld [vmem:[%s4367 + $0x210] sm:$0xff]
        %v4435 = vld [vmem:[%s4367 + $0x218] sm:$0xff]
        %v4436 = vld [vmem:[%s4367 + $0x220] sm:$0xff]
        %v4437 = vld [vmem:[%s4367 + $0x228] sm:$0xff]
        %v4438 = vld [vmem:[%s4367 + $0x230] sm:$0xff]
        %v4439 = vld [vmem:[%s4367 + $0x238] sm:$0xff]
        %v4440 = vld [vmem:[%s4367 + $0x240] sm:$0xff]
        %v4441 = vld [vmem:[%s4367 + $0x248] sm:$0xff]
        %v4442 = vld [vmem:[%s4367 + $0x250] sm:$0xff]
        %v4443 = vld [vmem:[%s4367 + $0x258] sm:$0xff]
        %v4444 = vld [vmem:[%s4367 + $0x260] sm:$0xff]
        %v4445 = vld [vmem:[%s4367 + $0x268] sm:$0xff]
        %v4446 = vld [vmem:[%s4367 + $0x270] sm:$0xff]
        %v4447 = vld [vmem:[%s4367 + $0x278] sm:$0xff]
        %v4448 = vld [vmem:[#allocation4] sm:$0xfe]
        %v4449 = vld [vmem:[#allocation4 + $0x8] sm:$0xfe]
        %v4450 = vld [vmem:[#allocation4 + $0x10] sm:$0xfe]
        %v4451 = vld [vmem:[#allocation4 + $0x18] sm:$0x1]
        %v4452 = vld [vmem:[#allocation4 + $0x20] sm:$0x1]
        %v4453 = vld [vmem:[#allocation4 + $0x28] sm:$0x1]
        %s4454 = scalar_lea.vmem [#allocation11], 6400
        %v4455 = vld [vmem:[%s4454] sm:$0xff]
        %v4456 = vld [vmem:[%s4454 + $0x8] sm:$0xff]
        %v4457 = vld [vmem:[%s4454 + $0x10] sm:$0xff]
        %v4458 = vld [vmem:[%s4454 + $0x18] sm:$0xff]
        %v4459 = vld [vmem:[%s4454 + $0x20] sm:$0xff]
        %v4460 = vld [vmem:[%s4454 + $0x28] sm:$0xff]
        %v4461 = vld [vmem:[%s4454 + $0x30] sm:$0xff]
        %v4462 = vld [vmem:[%s4454 + $0x38] sm:$0xff]
        %v4463 = vld [vmem:[%s4454 + $0x40] sm:$0xff]
        %v4464 = vld [vmem:[%s4454 + $0x48] sm:$0xff]
        %v4465 = vld [vmem:[%s4454 + $0x50] sm:$0xff]
        %v4466 = vld [vmem:[%s4454 + $0x58] sm:$0xff]
        %v4467 = vld [vmem:[%s4454 + $0x60] sm:$0xff]
        %v4468 = vld [vmem:[%s4454 + $0x68] sm:$0xff]
        %v4469 = vld [vmem:[%s4454 + $0x70] sm:$0xff]
        %v4470 = vld [vmem:[%s4454 + $0x78] sm:$0xff]
        %v4471 = vld [vmem:[%s4454 + $0x80] sm:$0xff]
        %v4472 = vld [vmem:[%s4454 + $0x88] sm:$0xff]
        %v4473 = vld [vmem:[%s4454 + $0x90] sm:$0xff]
        %v4474 = vld [vmem:[%s4454 + $0x98] sm:$0xff]
        %v4475 = vld [vmem:[%s4454 + $0xa0] sm:$0xff]
        %v4476 = vld [vmem:[%s4454 + $0xa8] sm:$0xff]
        %v4477 = vld [vmem:[%s4454 + $0xb0] sm:$0xff]
        %v4478 = vld [vmem:[%s4454 + $0xb8] sm:$0xff]
        %v4479 = vld [vmem:[%s4454 + $0xc0] sm:$0xff]
        %v4480 = vld [vmem:[%s4454 + $0xc8] sm:$0xff]
        %v4481 = vld [vmem:[%s4454 + $0xd0] sm:$0xff]
        %v4482 = vld [vmem:[%s4454 + $0xd8] sm:$0xff]
        %v4483 = vld [vmem:[%s4454 + $0xe0] sm:$0xff]
        %v4484 = vld [vmem:[%s4454 + $0xe8] sm:$0xff]
        %v4485 = vld [vmem:[%s4454 + $0xf0] sm:$0xff]
        %v4486 = vld [vmem:[%s4454 + $0xf8] sm:$0xff]
        %v4487 = vld [vmem:[%s4454 + $0x100] sm:$0xff]
        %v4488 = vld [vmem:[%s4454 + $0x108] sm:$0xff]
        %v4489 = vld [vmem:[%s4454 + $0x110] sm:$0xff]
        %v4490 = vld [vmem:[%s4454 + $0x118] sm:$0xff]
        %v4491 = vld [vmem:[%s4454 + $0x120] sm:$0xff]
        %v4492 = vld [vmem:[%s4454 + $0x128] sm:$0xff]
        %v4493 = vld [vmem:[%s4454 + $0x130] sm:$0xff]
        %v4494 = vld [vmem:[%s4454 + $0x138] sm:$0xff]
        %v4495 = vld [vmem:[%s4454 + $0x140] sm:$0xff]
        %v4496 = vld [vmem:[%s4454 + $0x148] sm:$0xff]
        %v4497 = vld [vmem:[%s4454 + $0x150] sm:$0xff]
        %v4498 = vld [vmem:[%s4454 + $0x158] sm:$0xff]
        %v4499 = vld [vmem:[%s4454 + $0x160] sm:$0xff]
        %v4500 = vld [vmem:[%s4454 + $0x168] sm:$0xff]
        %v4501 = vld [vmem:[%s4454 + $0x170] sm:$0xff]
        %v4502 = vld [vmem:[%s4454 + $0x178] sm:$0xff]
        %v4503 = vld [vmem:[%s4454 + $0x180] sm:$0xff]
        %v4504 = vld [vmem:[%s4454 + $0x188] sm:$0xff]
        %v4505 = vld [vmem:[%s4454 + $0x190] sm:$0xff]
        %v4506 = vld [vmem:[%s4454 + $0x198] sm:$0xff]
        %v4507 = vld [vmem:[%s4454 + $0x1a0] sm:$0xff]
        %v4508 = vld [vmem:[%s4454 + $0x1a8] sm:$0xff]
        %v4509 = vld [vmem:[%s4454 + $0x1b0] sm:$0xff]
        %v4510 = vld [vmem:[%s4454 + $0x1b8] sm:$0xff]
        %v4511 = vld [vmem:[%s4454 + $0x1c0] sm:$0xff]
        %v4512 = vld [vmem:[%s4454 + $0x1c8] sm:$0xff]
        %v4513 = vld [vmem:[%s4454 + $0x1d0] sm:$0xff]
        %v4514 = vld [vmem:[%s4454 + $0x1d8] sm:$0xff]
        %v4515 = vld [vmem:[%s4454 + $0x1e0] sm:$0xff]
        %v4516 = vld [vmem:[%s4454 + $0x1e8] sm:$0xff]
        %v4517 = vld [vmem:[%s4454 + $0x1f0] sm:$0xff]
        %v4518 = vld [vmem:[%s4454 + $0x1f8] sm:$0xff]
        %v4519 = vld [vmem:[%s4454 + $0x200] sm:$0xff]
        %v4520 = vld [vmem:[%s4454 + $0x208] sm:$0xff]
        %v4521 = vld [vmem:[%s4454 + $0x210] sm:$0xff]
        %v4522 = vld [vmem:[%s4454 + $0x218] sm:$0xff]
        %v4523 = vld [vmem:[%s4454 + $0x220] sm:$0xff]
        %v4524 = vld [vmem:[%s4454 + $0x228] sm:$0xff]
        %v4525 = vld [vmem:[%s4454 + $0x230] sm:$0xff]
        %v4526 = vld [vmem:[%s4454 + $0x238] sm:$0xff]
        %v4527 = vld [vmem:[%s4454 + $0x240] sm:$0xff]
        %v4528 = vld [vmem:[%s4454 + $0x248] sm:$0xff]
        %v4529 = vld [vmem:[%s4454 + $0x250] sm:$0xff]
        %v4530 = vld [vmem:[%s4454 + $0x258] sm:$0xff]
        %v4531 = vld [vmem:[%s4454 + $0x260] sm:$0xff]
        %v4532 = vld [vmem:[%s4454 + $0x268] sm:$0xff]
        %v4533 = vld [vmem:[%s4454 + $0x270] sm:$0xff]
        %v4534 = vld [vmem:[%s4454 + $0x278] sm:$0xff]
        %v4541 = vrot.slane %v4448, 1
        %v4542 = vrot.slane %v4451, 1
        %v4543 = vsel %vm2252, %v4541, %v4542
        %v4544 = vrot.slane %v4449, 1
        %v4545 = vrot.slane %v4452, 1
        %v4546 = vsel %vm2252, %v4544, %v4545
        %v4547 = vrot.slane %v4450, 1
        %v4548 = vrot.slane %v4453, 1
        %v4549 = vsel %vm2252, %v4547, %v4548
        %v4552 = vsel %vm2046, %v4549, 0
        %4554 = vmatprep.subr.mxu0 %v4486
        %4555 = vmatpush1.msra.mxu0 %v4485
        %4556 = vmatprep.subr.mxu0 %v4484
        %4557 = vmatpush1.msra.mxu0 %v4483
        %4558 = vmatprep.subr.mxu0 %v4482
        %4559 = vmatpush1.msra.mxu0 %v4481
        %4560 = vmatprep.subr.mxu0 %v4480
        %4561 = vmatpush1.msra.mxu0 %v4479
        %4562 = vmatprep.subr.mxu0 %v4478
        %4563 = vmatpush1.msra.mxu0 %v4477
        %4564 = vmatprep.subr.mxu0 %v4476
        %4565 = vmatpush1.msra.mxu0 %v4475
        %4566 = vmatprep.subr.mxu0 %v4474
        %4567 = vmatpush1.msra.mxu0 %v4473
        %4568 = vmatprep.subr.mxu0 %v4472
        %4569 = vmatpush1.msra.mxu0 %v4471
        %4570 = vmatprep.subr.mxu0 %v4470
        %4571 = vmatpush1.msra.mxu0 %v4469
        %4572 = vmatprep.subr.mxu0 %v4468
        %4573 = vmatpush1.msra.mxu0 %v4467
        %4574 = vmatprep.subr.mxu0 %v4466
        %4575 = vmatpush1.msra.mxu0 %v4465
        %4576 = vmatprep.subr.mxu0 %v4464
        %4577 = vmatpush1.msra.mxu0 %v4463
        %4578 = vmatprep.subr.mxu0 %v4462
        %4579 = vmatpush1.msra.mxu0 %v4461
        %4580 = vmatprep.subr.mxu0 %v4460
        %4581 = vmatpush1.msra.mxu0 %v4459
        %4582 = vmatprep.subr.mxu0 %v4458
        %4583 = vmatpush1.msra.mxu0 %v4457
        %4584 = vmatprep.subr.mxu0 %v4456
        %4585 = vmatpush1.msra.mxu0 %v4455
        %4586 = vmatprep.subr.mxu0 %v4518
        %4587 = vmatpush2.msra.mxu0 %v4517
        %4588 = vmatprep.subr.mxu0 %v4516
        %4589 = vmatpush2.msra.mxu0 %v4515
        %4590 = vmatprep.subr.mxu0 %v4514
        %4591 = vmatpush2.msra.mxu0 %v4513
        %4592 = vmatprep.subr.mxu0 %v4512
        %4593 = vmatpush2.msra.mxu0 %v4511
        %4594 = vmatprep.subr.mxu0 %v4510
        %4595 = vmatpush2.msra.mxu0 %v4509
        %4596 = vmatprep.subr.mxu0 %v4508
        %4597 = vmatpush2.msra.mxu0 %v4507
        %4598 = vmatprep.subr.mxu0 %v4506
        %4599 = vmatpush2.msra.mxu0 %v4505
        %4600 = vmatprep.subr.mxu0 %v4504
        %4601 = vmatpush2.msra.mxu0 %v4503
        %4602 = vmatprep.subr.mxu0 %v4502
        %4603 = vmatpush2.msra.mxu0 %v4501
        %4604 = vmatprep.subr.mxu0 %v4500
        %4605 = vmatpush2.msra.mxu0 %v4499
        %4606 = vmatprep.subr.mxu0 %v4498
        %4607 = vmatpush2.msra.mxu0 %v4497
        %4608 = vmatprep.subr.mxu0 %v4496
        %4609 = vmatpush2.msra.mxu0 %v4495
        %4610 = vmatprep.subr.mxu0 %v4494
        %4611 = vmatpush2.msra.mxu0 %v4493
        %4612 = vmatprep.subr.mxu0 %v4492
        %4613 = vmatpush2.msra.mxu0 %v4491
        %4614 = vmatprep.subr.mxu0 %v4490
        %4615 = vmatpush2.msra.mxu0 %v4489
        %4616 = vmatprep.subr.mxu0 %v4488
        %4617 = vmatpush2.msra.mxu0 %v4487
        %4618 = vmatprep.mubr.f32.mxu0 %v4546
        %4619 = vmatmul.mubr.f32.gmra.mxu0 %v4543
        %v4620 = vpop.f32.mrf.mxu0
        %v4621 = vadd.f32 0.0, %v4620
        %v4622 = vpop.f32.mrf.mxu0
        %v4623 = vadd.f32 0.0, %v4622
        %4624 = vdwg.mxu0
        %4625 = vmatprep.subr.mxu0 0.0
        %4626 = vmatpush1.msra.mxu0 0.0
        %4627 = vmatprep.subr.mxu0 0.0
        %4628 = vmatpush1.msra.mxu0 0.0
        %4629 = vmatprep.subr.mxu0 0.0
        %4630 = vmatpush1.msra.mxu0 0.0
        %4631 = vmatprep.subr.mxu0 0.0
        %4632 = vmatpush1.msra.mxu0 0.0
        %4633 = vmatprep.subr.mxu0 0.0
        %4634 = vmatpush1.msra.mxu0 0.0
        %4635 = vmatprep.subr.mxu0 0.0
        %4636 = vmatpush1.msra.mxu0 0.0
        %4637 = vmatprep.subr.mxu0 0.0
        %4638 = vmatpush1.msra.mxu0 0.0
        %4639 = vmatprep.subr.mxu0 0.0
        %4640 = vmatpush1.msra.mxu0 0.0
        %4641 = vmatprep.subr.mxu0 %v4534
        %4642 = vmatpush1.msra.mxu0 %v4533
        %4643 = vmatprep.subr.mxu0 %v4532
        %4644 = vmatpush1.msra.mxu0 %v4531
        %4645 = vmatprep.subr.mxu0 %v4530
        %4646 = vmatpush1.msra.mxu0 %v4529
        %4647 = vmatprep.subr.mxu0 %v4528
        %4648 = vmatpush1.msra.mxu0 %v4527
        %4649 = vmatprep.subr.mxu0 %v4526
        %4650 = vmatpush1.msra.mxu0 %v4525
        %4651 = vmatprep.subr.mxu0 %v4524
        %4652 = vmatpush1.msra.mxu0 %v4523
        %4653 = vmatprep.subr.mxu0 %v4522
        %4654 = vmatpush1.msra.mxu0 %v4521
        %4655 = vmatprep.subr.mxu0 %v4520
        %4656 = vmatpush1.msra.mxu0 %v4519
        %4657 = vmatprep.subr.mxu0 0.0
        %4658 = vmatpush2.msra.mxu0 0.0
        %4659 = vmatprep.subr.mxu0 0.0
        %4660 = vmatpush2.msra.mxu0 0.0
        %4661 = vmatprep.subr.mxu0 0.0
        %4662 = vmatpush2.msra.mxu0 0.0
        %4663 = vmatprep.subr.mxu0 0.0
        %4664 = vmatpush2.msra.mxu0 0.0
        %4665 = vmatprep.subr.mxu0 0.0
        %4666 = vmatpush2.msra.mxu0 0.0
        %4667 = vmatprep.subr.mxu0 0.0
        %4668 = vmatpush2.msra.mxu0 0.0
        %4669 = vmatprep.subr.mxu0 0.0
        %4670 = vmatpush2.msra.mxu0 0.0
        %4671 = vmatprep.subr.mxu0 0.0
        %4672 = vmatpush2.msra.mxu0 0.0
        %4673 = vmatprep.subr.mxu0 0.0
        %4674 = vmatpush2.msra.mxu0 0.0
        %4675 = vmatprep.subr.mxu0 0.0
        %4676 = vmatpush2.msra.mxu0 0.0
        %4677 = vmatprep.subr.mxu0 0.0
        %4678 = vmatpush2.msra.mxu0 0.0
        %4679 = vmatprep.subr.mxu0 0.0
        %4680 = vmatpush2.msra.mxu0 0.0
        %4681 = vmatprep.subr.mxu0 0.0
        %4682 = vmatpush2.msra.mxu0 0.0
        %4683 = vmatprep.subr.mxu0 0.0
        %4684 = vmatpush2.msra.mxu0 0.0
        %4685 = vmatprep.subr.mxu0 0.0
        %4686 = vmatpush2.msra.mxu0 0.0
        %4687 = vmatprep.subr.mxu0 0.0
        %4688 = vmatpush2.msra.mxu0 0.0
        %4689 = vmatprep.mubr.f32.mxu0 0.0
        %4690 = vmatmul.mubr.f32.gmra.mxu0 %v4552
        %v4691 = vpop.f32.mrf.mxu0
        %v4692 = vadd.f32 %v4621, %v4691
        %v4693 = vpop.f32.mrf.mxu0
        %v4694 = vadd.f32 %v4623, %v4693
        %4695 = vdwg.mxu0
        %v4697 = vsel %vm2046, %v4366, 0
        %4699 = vmatprep.subr.mxu0 %v4399
        %4700 = vmatpush1.msra.mxu0 %v4398
        %4701 = vmatprep.subr.mxu0 %v4397
        %4702 = vmatpush1.msra.mxu0 %v4396
        %4703 = vmatprep.subr.mxu0 %v4395
        %4704 = vmatpush1.msra.mxu0 %v4394
        %4705 = vmatprep.subr.mxu0 %v4393
        %4706 = vmatpush1.msra.mxu0 %v4392
        %4707 = vmatprep.subr.mxu0 %v4391
        %4708 = vmatpush1.msra.mxu0 %v4390
        %4709 = vmatprep.subr.mxu0 %v4389
        %4710 = vmatpush1.msra.mxu0 %v4388
        %4711 = vmatprep.subr.mxu0 %v4387
        %4712 = vmatpush1.msra.mxu0 %v4386
        %4713 = vmatprep.subr.mxu0 %v4385
        %4714 = vmatpush1.msra.mxu0 %v4384
        %4715 = vmatprep.subr.mxu0 %v4383
        %4716 = vmatpush1.msra.mxu0 %v4382
        %4717 = vmatprep.subr.mxu0 %v4381
        %4718 = vmatpush1.msra.mxu0 %v4380
        %4719 = vmatprep.subr.mxu0 %v4379
        %4720 = vmatpush1.msra.mxu0 %v4378
        %4721 = vmatprep.subr.mxu0 %v4377
        %4722 = vmatpush1.msra.mxu0 %v4376
        %4723 = vmatprep.subr.mxu0 %v4375
        %4724 = vmatpush1.msra.mxu0 %v4374
        %4725 = vmatprep.subr.mxu0 %v4373
        %4726 = vmatpush1.msra.mxu0 %v4372
        %4727 = vmatprep.subr.mxu0 %v4371
        %4728 = vmatpush1.msra.mxu0 %v4370
        %4729 = vmatprep.subr.mxu0 %v4369
        %4730 = vmatpush1.msra.mxu0 %v4368
        %4731 = vmatprep.subr.mxu0 %v4431
        %4732 = vmatpush2.msra.mxu0 %v4430
        %4733 = vmatprep.subr.mxu0 %v4429
        %4734 = vmatpush2.msra.mxu0 %v4428
        %4735 = vmatprep.subr.mxu0 %v4427
        %4736 = vmatpush2.msra.mxu0 %v4426
        %4737 = vmatprep.subr.mxu0 %v4425
        %4738 = vmatpush2.msra.mxu0 %v4424
        %4739 = vmatprep.subr.mxu0 %v4423
        %4740 = vmatpush2.msra.mxu0 %v4422
        %4741 = vmatprep.subr.mxu0 %v4421
        %4742 = vmatpush2.msra.mxu0 %v4420
        %4743 = vmatprep.subr.mxu0 %v4419
        %4744 = vmatpush2.msra.mxu0 %v4418
        %4745 = vmatprep.subr.mxu0 %v4417
        %4746 = vmatpush2.msra.mxu0 %v4416
        %4747 = vmatprep.subr.mxu0 %v4415
        %4748 = vmatpush2.msra.mxu0 %v4414
        %4749 = vmatprep.subr.mxu0 %v4413
        %4750 = vmatpush2.msra.mxu0 %v4412
        %4751 = vmatprep.subr.mxu0 %v4411
        %4752 = vmatpush2.msra.mxu0 %v4410
        %4753 = vmatprep.subr.mxu0 %v4409
        %4754 = vmatpush2.msra.mxu0 %v4408
        %4755 = vmatprep.subr.mxu0 %v4407
        %4756 = vmatpush2.msra.mxu0 %v4406
        %4757 = vmatprep.subr.mxu0 %v4405
        %4758 = vmatpush2.msra.mxu0 %v4404
        %4759 = vmatprep.subr.mxu0 %v4403
        %4760 = vmatpush2.msra.mxu0 %v4402
        %4761 = vmatprep.subr.mxu0 %v4401
        %4762 = vmatpush2.msra.mxu0 %v4400
        %4763 = vmatprep.mubr.f32.mxu0 %v4365
        %4764 = vmatmul.mubr.f32.gmra.mxu0 %v4364
        %v4765 = vpop.f32.mrf.mxu0
        %v4766 = vadd.f32 %v4692, %v4765
        %v4767 = vpop.f32.mrf.mxu0
        %v4768 = vadd.f32 %v4694, %v4767
        %4769 = vdwg.mxu0
        %4770 = vmatprep.subr.mxu0 0.0
        %4771 = vmatpush1.msra.mxu0 0.0
        %4772 = vmatprep.subr.mxu0 0.0
        %4773 = vmatpush1.msra.mxu0 0.0
        %4774 = vmatprep.subr.mxu0 0.0
        %4775 = vmatpush1.msra.mxu0 0.0
        %4776 = vmatprep.subr.mxu0 0.0
        %4777 = vmatpush1.msra.mxu0 0.0
        %4778 = vmatprep.subr.mxu0 0.0
        %4779 = vmatpush1.msra.mxu0 0.0
        %4780 = vmatprep.subr.mxu0 0.0
        %4781 = vmatpush1.msra.mxu0 0.0
        %4782 = vmatprep.subr.mxu0 0.0
        %4783 = vmatpush1.msra.mxu0 0.0
        %4784 = vmatprep.subr.mxu0 0.0
        %4785 = vmatpush1.msra.mxu0 0.0
        %4786 = vmatprep.subr.mxu0 %v4447
        %4787 = vmatpush1.msra.mxu0 %v4446
        %4788 = vmatprep.subr.mxu0 %v4445
        %4789 = vmatpush1.msra.mxu0 %v4444
        %4790 = vmatprep.subr.mxu0 %v4443
        %4791 = vmatpush1.msra.mxu0 %v4442
        %4792 = vmatprep.subr.mxu0 %v4441
        %4793 = vmatpush1.msra.mxu0 %v4440
        %4794 = vmatprep.subr.mxu0 %v4439
        %4795 = vmatpush1.msra.mxu0 %v4438
        %4796 = vmatprep.subr.mxu0 %v4437
        %4797 = vmatpush1.msra.mxu0 %v4436
        %4798 = vmatprep.subr.mxu0 %v4435
        %4799 = vmatpush1.msra.mxu0 %v4434
        %4800 = vmatprep.subr.mxu0 %v4433
        %4801 = vmatpush1.msra.mxu0 %v4432
        %4802 = vmatprep.subr.mxu0 0.0
        %4803 = vmatpush2.msra.mxu0 0.0
        %4804 = vmatprep.subr.mxu0 0.0
        %4805 = vmatpush2.msra.mxu0 0.0
        %4806 = vmatprep.subr.mxu0 0.0
        %4807 = vmatpush2.msra.mxu0 0.0
        %4808 = vmatprep.subr.mxu0 0.0
        %4809 = vmatpush2.msra.mxu0 0.0
        %4810 = vmatprep.subr.mxu0 0.0
        %4811 = vmatpush2.msra.mxu0 0.0
        %4812 = vmatprep.subr.mxu0 0.0
        %4813 = vmatpush2.msra.mxu0 0.0
        %4814 = vmatprep.subr.mxu0 0.0
        %4815 = vmatpush2.msra.mxu0 0.0
        %4816 = vmatprep.subr.mxu0 0.0
        %4817 = vmatpush2.msra.mxu0 0.0
        %4818 = vmatprep.subr.mxu0 0.0
        %4819 = vmatpush2.msra.mxu0 0.0
        %4820 = vmatprep.subr.mxu0 0.0
        %4821 = vmatpush2.msra.mxu0 0.0
        %4822 = vmatprep.subr.mxu0 0.0
        %4823 = vmatpush2.msra.mxu0 0.0
        %4824 = vmatprep.subr.mxu0 0.0
        %4825 = vmatpush2.msra.mxu0 0.0
        %4826 = vmatprep.subr.mxu0 0.0
        %4827 = vmatpush2.msra.mxu0 0.0
        %4828 = vmatprep.subr.mxu0 0.0
        %4829 = vmatpush2.msra.mxu0 0.0
        %4830 = vmatprep.subr.mxu0 0.0
        %4831 = vmatpush2.msra.mxu0 0.0
        %4832 = vmatprep.subr.mxu0 0.0
        %4833 = vmatpush2.msra.mxu0 0.0
        %4834 = vmatprep.mubr.f32.mxu0 0.0
        %4835 = vmatmul.mubr.f32.gmra.mxu0 %v4697
        %v4836 = vpop.f32.mrf.mxu0
        %v4837 = vadd.f32 %v4766, %v4836
        %v4838 = vpop.f32.mrf.mxu0
        %v4839 = vadd.f32 %v4768, %v4838
        %4840 = vdwg.mxu0
        %v4841 = vld [vmem:[#allocation4] sm:$0xfc]
        %v4842 = vld [vmem:[#allocation4 + $0x8] sm:$0xfc]
        %v4843 = vld [vmem:[#allocation4 + $0x10] sm:$0xfc]
        %v4844 = vld [vmem:[#allocation4 + $0x18] sm:$0x3]
        %v4845 = vld [vmem:[#allocation4 + $0x20] sm:$0x3]
        %v4846 = vld [vmem:[#allocation4 + $0x28] sm:$0x3]
        %s4847 = scalar_lea.vmem [#allocation11], 7040
        %v4848 = vld [vmem:[%s4847] sm:$0xff]
        %v4849 = vld [vmem:[%s4847 + $0x8] sm:$0xff]
        %v4850 = vld [vmem:[%s4847 + $0x10] sm:$0xff]
        %v4851 = vld [vmem:[%s4847 + $0x18] sm:$0xff]
        %v4852 = vld [vmem:[%s4847 + $0x20] sm:$0xff]
        %v4853 = vld [vmem:[%s4847 + $0x28] sm:$0xff]
        %v4854 = vld [vmem:[%s4847 + $0x30] sm:$0xff]
        %v4855 = vld [vmem:[%s4847 + $0x38] sm:$0xff]
        %v4856 = vld [vmem:[%s4847 + $0x40] sm:$0xff]
        %v4857 = vld [vmem:[%s4847 + $0x48] sm:$0xff]
        %v4858 = vld [vmem:[%s4847 + $0x50] sm:$0xff]
        %v4859 = vld [vmem:[%s4847 + $0x58] sm:$0xff]
        %v4860 = vld [vmem:[%s4847 + $0x60] sm:$0xff]
        %v4861 = vld [vmem:[%s4847 + $0x68] sm:$0xff]
        %v4862 = vld [vmem:[%s4847 + $0x70] sm:$0xff]
        %v4863 = vld [vmem:[%s4847 + $0x78] sm:$0xff]
        %v4864 = vld [vmem:[%s4847 + $0x80] sm:$0xff]
        %v4865 = vld [vmem:[%s4847 + $0x88] sm:$0xff]
        %v4866 = vld [vmem:[%s4847 + $0x90] sm:$0xff]
        %v4867 = vld [vmem:[%s4847 + $0x98] sm:$0xff]
        %v4868 = vld [vmem:[%s4847 + $0xa0] sm:$0xff]
        %v4869 = vld [vmem:[%s4847 + $0xa8] sm:$0xff]
        %v4870 = vld [vmem:[%s4847 + $0xb0] sm:$0xff]
        %v4871 = vld [vmem:[%s4847 + $0xb8] sm:$0xff]
        %v4872 = vld [vmem:[%s4847 + $0xc0] sm:$0xff]
        %v4873 = vld [vmem:[%s4847 + $0xc8] sm:$0xff]
        %v4874 = vld [vmem:[%s4847 + $0xd0] sm:$0xff]
        %v4875 = vld [vmem:[%s4847 + $0xd8] sm:$0xff]
        %v4876 = vld [vmem:[%s4847 + $0xe0] sm:$0xff]
        %v4877 = vld [vmem:[%s4847 + $0xe8] sm:$0xff]
        %v4878 = vld [vmem:[%s4847 + $0xf0] sm:$0xff]
        %v4879 = vld [vmem:[%s4847 + $0xf8] sm:$0xff]
        %v4880 = vld [vmem:[%s4847 + $0x100] sm:$0xff]
        %v4881 = vld [vmem:[%s4847 + $0x108] sm:$0xff]
        %v4882 = vld [vmem:[%s4847 + $0x110] sm:$0xff]
        %v4883 = vld [vmem:[%s4847 + $0x118] sm:$0xff]
        %v4884 = vld [vmem:[%s4847 + $0x120] sm:$0xff]
        %v4885 = vld [vmem:[%s4847 + $0x128] sm:$0xff]
        %v4886 = vld [vmem:[%s4847 + $0x130] sm:$0xff]
        %v4887 = vld [vmem:[%s4847 + $0x138] sm:$0xff]
        %v4888 = vld [vmem:[%s4847 + $0x140] sm:$0xff]
        %v4889 = vld [vmem:[%s4847 + $0x148] sm:$0xff]
        %v4890 = vld [vmem:[%s4847 + $0x150] sm:$0xff]
        %v4891 = vld [vmem:[%s4847 + $0x158] sm:$0xff]
        %v4892 = vld [vmem:[%s4847 + $0x160] sm:$0xff]
        %v4893 = vld [vmem:[%s4847 + $0x168] sm:$0xff]
        %v4894 = vld [vmem:[%s4847 + $0x170] sm:$0xff]
        %v4895 = vld [vmem:[%s4847 + $0x178] sm:$0xff]
        %v4896 = vld [vmem:[%s4847 + $0x180] sm:$0xff]
        %v4897 = vld [vmem:[%s4847 + $0x188] sm:$0xff]
        %v4898 = vld [vmem:[%s4847 + $0x190] sm:$0xff]
        %v4899 = vld [vmem:[%s4847 + $0x198] sm:$0xff]
        %v4900 = vld [vmem:[%s4847 + $0x1a0] sm:$0xff]
        %v4901 = vld [vmem:[%s4847 + $0x1a8] sm:$0xff]
        %v4902 = vld [vmem:[%s4847 + $0x1b0] sm:$0xff]
        %v4903 = vld [vmem:[%s4847 + $0x1b8] sm:$0xff]
        %v4904 = vld [vmem:[%s4847 + $0x1c0] sm:$0xff]
        %v4905 = vld [vmem:[%s4847 + $0x1c8] sm:$0xff]
        %v4906 = vld [vmem:[%s4847 + $0x1d0] sm:$0xff]
        %v4907 = vld [vmem:[%s4847 + $0x1d8] sm:$0xff]
        %v4908 = vld [vmem:[%s4847 + $0x1e0] sm:$0xff]
        %v4909 = vld [vmem:[%s4847 + $0x1e8] sm:$0xff]
        %v4910 = vld [vmem:[%s4847 + $0x1f0] sm:$0xff]
        %v4911 = vld [vmem:[%s4847 + $0x1f8] sm:$0xff]
        %v4912 = vld [vmem:[%s4847 + $0x200] sm:$0xff]
        %v4913 = vld [vmem:[%s4847 + $0x208] sm:$0xff]
        %v4914 = vld [vmem:[%s4847 + $0x210] sm:$0xff]
        %v4915 = vld [vmem:[%s4847 + $0x218] sm:$0xff]
        %v4916 = vld [vmem:[%s4847 + $0x220] sm:$0xff]
        %v4917 = vld [vmem:[%s4847 + $0x228] sm:$0xff]
        %v4918 = vld [vmem:[%s4847 + $0x230] sm:$0xff]
        %v4919 = vld [vmem:[%s4847 + $0x238] sm:$0xff]
        %v4920 = vld [vmem:[%s4847 + $0x240] sm:$0xff]
        %v4921 = vld [vmem:[%s4847 + $0x248] sm:$0xff]
        %v4922 = vld [vmem:[%s4847 + $0x250] sm:$0xff]
        %v4923 = vld [vmem:[%s4847 + $0x258] sm:$0xff]
        %v4924 = vld [vmem:[%s4847 + $0x260] sm:$0xff]
        %v4925 = vld [vmem:[%s4847 + $0x268] sm:$0xff]
        %v4926 = vld [vmem:[%s4847 + $0x270] sm:$0xff]
        %v4927 = vld [vmem:[%s4847 + $0x278] sm:$0xff]
        %v4934 = vrot.slane %v4841, 2
        %v4935 = vrot.slane %v4844, 2
        %v4936 = vsel %vm2646, %v4934, %v4935
        %v4937 = vrot.slane %v4842, 2
        %v4938 = vrot.slane %v4845, 2
        %v4939 = vsel %vm2646, %v4937, %v4938
        %v4940 = vrot.slane %v4843, 2
        %v4941 = vrot.slane %v4846, 2
        %v4942 = vsel %vm2646, %v4940, %v4941
        %v4945 = vsel %vm2046, %v4942, 0
        %4947 = vmatprep.subr.mxu0 %v4879
        %4948 = vmatpush1.msra.mxu0 %v4878
        %4949 = vmatprep.subr.mxu0 %v4877
        %4950 = vmatpush1.msra.mxu0 %v4876
        %4951 = vmatprep.subr.mxu0 %v4875
        %4952 = vmatpush1.msra.mxu0 %v4874
        %4953 = vmatprep.subr.mxu0 %v4873
        %4954 = vmatpush1.msra.mxu0 %v4872
        %4955 = vmatprep.subr.mxu0 %v4871
        %4956 = vmatpush1.msra.mxu0 %v4870
        %4957 = vmatprep.subr.mxu0 %v4869
        %4958 = vmatpush1.msra.mxu0 %v4868
        %4959 = vmatprep.subr.mxu0 %v4867
        %4960 = vmatpush1.msra.mxu0 %v4866
        %4961 = vmatprep.subr.mxu0 %v4865
        %4962 = vmatpush1.msra.mxu0 %v4864
        %4963 = vmatprep.subr.mxu0 %v4863
        %4964 = vmatpush1.msra.mxu0 %v4862
        %4965 = vmatprep.subr.mxu0 %v4861
        %4966 = vmatpush1.msra.mxu0 %v4860
        %4967 = vmatprep.subr.mxu0 %v4859
        %4968 = vmatpush1.msra.mxu0 %v4858
        %4969 = vmatprep.subr.mxu0 %v4857
        %4970 = vmatpush1.msra.mxu0 %v4856
        %4971 = vmatprep.subr.mxu0 %v4855
        %4972 = vmatpush1.msra.mxu0 %v4854
        %4973 = vmatprep.subr.mxu0 %v4853
        %4974 = vmatpush1.msra.mxu0 %v4852
        %4975 = vmatprep.subr.mxu0 %v4851
        %4976 = vmatpush1.msra.mxu0 %v4850
        %4977 = vmatprep.subr.mxu0 %v4849
        %4978 = vmatpush1.msra.mxu0 %v4848
        %4979 = vmatprep.subr.mxu0 %v4911
        %4980 = vmatpush2.msra.mxu0 %v4910
        %4981 = vmatprep.subr.mxu0 %v4909
        %4982 = vmatpush2.msra.mxu0 %v4908
        %4983 = vmatprep.subr.mxu0 %v4907
        %4984 = vmatpush2.msra.mxu0 %v4906
        %4985 = vmatprep.subr.mxu0 %v4905
        %4986 = vmatpush2.msra.mxu0 %v4904
        %4987 = vmatprep.subr.mxu0 %v4903
        %4988 = vmatpush2.msra.mxu0 %v4902
        %4989 = vmatprep.subr.mxu0 %v4901
        %4990 = vmatpush2.msra.mxu0 %v4900
        %4991 = vmatprep.subr.mxu0 %v4899
        %4992 = vmatpush2.msra.mxu0 %v4898
        %4993 = vmatprep.subr.mxu0 %v4897
        %4994 = vmatpush2.msra.mxu0 %v4896
        %4995 = vmatprep.subr.mxu0 %v4895
        %4996 = vmatpush2.msra.mxu0 %v4894
        %4997 = vmatprep.subr.mxu0 %v4893
        %4998 = vmatpush2.msra.mxu0 %v4892
        %4999 = vmatprep.subr.mxu0 %v4891
        %5000 = vmatpush2.msra.mxu0 %v4890
        %5001 = vmatprep.subr.mxu0 %v4889
        %5002 = vmatpush2.msra.mxu0 %v4888
        %5003 = vmatprep.subr.mxu0 %v4887
        %5004 = vmatpush2.msra.mxu0 %v4886
        %5005 = vmatprep.subr.mxu0 %v4885
        %5006 = vmatpush2.msra.mxu0 %v4884
        %5007 = vmatprep.subr.mxu0 %v4883
        %5008 = vmatpush2.msra.mxu0 %v4882
        %5009 = vmatprep.subr.mxu0 %v4881
        %5010 = vmatpush2.msra.mxu0 %v4880
        %5011 = vmatprep.mubr.f32.mxu0 %v4939
        %5012 = vmatmul.mubr.f32.gmra.mxu0 %v4936
        %v5013 = vpop.f32.mrf.mxu0
        %v5014 = vadd.f32 0.0, %v5013
        %v5015 = vpop.f32.mrf.mxu0
        %v5016 = vadd.f32 0.0, %v5015
        %5017 = vdwg.mxu0
        %5018 = vmatprep.subr.mxu0 0.0
        %5019 = vmatpush1.msra.mxu0 0.0
        %5020 = vmatprep.subr.mxu0 0.0
        %5021 = vmatpush1.msra.mxu0 0.0
        %5022 = vmatprep.subr.mxu0 0.0
        %5023 = vmatpush1.msra.mxu0 0.0
        %5024 = vmatprep.subr.mxu0 0.0
        %5025 = vmatpush1.msra.mxu0 0.0
        %5026 = vmatprep.subr.mxu0 0.0
        %5027 = vmatpush1.msra.mxu0 0.0
        %5028 = vmatprep.subr.mxu0 0.0
        %5029 = vmatpush1.msra.mxu0 0.0
        %5030 = vmatprep.subr.mxu0 0.0
        %5031 = vmatpush1.msra.mxu0 0.0
        %5032 = vmatprep.subr.mxu0 0.0
        %5033 = vmatpush1.msra.mxu0 0.0
        %5034 = vmatprep.subr.mxu0 %v4927
        %5035 = vmatpush1.msra.mxu0 %v4926
        %5036 = vmatprep.subr.mxu0 %v4925
        %5037 = vmatpush1.msra.mxu0 %v4924
        %5038 = vmatprep.subr.mxu0 %v4923
        %5039 = vmatpush1.msra.mxu0 %v4922
        %5040 = vmatprep.subr.mxu0 %v4921
        %5041 = vmatpush1.msra.mxu0 %v4920
        %5042 = vmatprep.subr.mxu0 %v4919
        %5043 = vmatpush1.msra.mxu0 %v4918
        %5044 = vmatprep.subr.mxu0 %v4917
        %5045 = vmatpush1.msra.mxu0 %v4916
        %5046 = vmatprep.subr.mxu0 %v4915
        %5047 = vmatpush1.msra.mxu0 %v4914
        %5048 = vmatprep.subr.mxu0 %v4913
        %5049 = vmatpush1.msra.mxu0 %v4912
        %5050 = vmatprep.subr.mxu0 0.0
        %5051 = vmatpush2.msra.mxu0 0.0
        %5052 = vmatprep.subr.mxu0 0.0
        %5053 = vmatpush2.msra.mxu0 0.0
        %5054 = vmatprep.subr.mxu0 0.0
        %5055 = vmatpush2.msra.mxu0 0.0
        %5056 = vmatprep.subr.mxu0 0.0
        %5057 = vmatpush2.msra.mxu0 0.0
        %5058 = vmatprep.subr.mxu0 0.0
        %5059 = vmatpush2.msra.mxu0 0.0
        %5060 = vmatprep.subr.mxu0 0.0
        %5061 = vmatpush2.msra.mxu0 0.0
        %5062 = vmatprep.subr.mxu0 0.0
        %5063 = vmatpush2.msra.mxu0 0.0
        %5064 = vmatprep.subr.mxu0 0.0
        %5065 = vmatpush2.msra.mxu0 0.0
        %5066 = vmatprep.subr.mxu0 0.0
        %5067 = vmatpush2.msra.mxu0 0.0
        %5068 = vmatprep.subr.mxu0 0.0
        %5069 = vmatpush2.msra.mxu0 0.0
        %5070 = vmatprep.subr.mxu0 0.0
        %5071 = vmatpush2.msra.mxu0 0.0
        %5072 = vmatprep.subr.mxu0 0.0
        %5073 = vmatpush2.msra.mxu0 0.0
        %5074 = vmatprep.subr.mxu0 0.0
        %5075 = vmatpush2.msra.mxu0 0.0
        %5076 = vmatprep.subr.mxu0 0.0
        %5077 = vmatpush2.msra.mxu0 0.0
        %5078 = vmatprep.subr.mxu0 0.0
        %5079 = vmatpush2.msra.mxu0 0.0
        %5080 = vmatprep.subr.mxu0 0.0
        %5081 = vmatpush2.msra.mxu0 0.0
        %5082 = vmatprep.mubr.f32.mxu0 0.0
        %5083 = vmatmul.mubr.f32.gmra.mxu0 %v4945
        %v5084 = vpop.f32.mrf.mxu0
        %v5085 = vadd.f32 %v5014, %v5084
        %v5086 = vpop.f32.mrf.mxu0
        %v5087 = vadd.f32 %v5016, %v5086
        %5088 = vdwg.mxu0
        %v5089 = vadd.f32 %v4837, %v5085
        %v5090 = vadd.f32 %v4839, %v5087
        %s5091 = scalar_lea.vmem [#allocation13], 6
        %v5092 = vld [vmem:[%s5091] sm:$0x3]
        %v5094 = vlaneseq
        %v5095 = vshrl.u32 %v5094, 7
        %v5096 = vsub.s32 0, %v5095
        %v5097 = vrot.slane %v5092, %v5096
        %v5098 = vlaneseq
        %v5099 = vshrl.u32 %v5098, 7
        %v5100 = vsub.s32 1, %v5099
        %v5101 = vrot.slane %v5092, %v5100
        %v5104 = vadd.f32 %v5089, %v5097
        %v5105 = vadd.f32 %v5090, %v5101
        %v5106 = vadd.f32 %v5104, %v3580
        %v5107 = vadd.f32 %v5105, %v3581
        %5108 = vst [vmem:[%s340] sm:$0xff] %v5106
        %5109 = vst [vmem:[%s340 + $0x8] sm:$0xff] %v5107
        %s5110 = sand.u32 %s165, 1
        %s5111 = scalar_lea.sflag [#allocation7], %s5110
        %s5112 = sand.u32 %s165, 1
        %s5113 = smul.addr %s5112, 16
        %s5114 = scalar_lea.vmem [#allocation16], %s5113
        // Predicated region
        $region69: #{tpu_custom_call.1} parent=43 // pred_check
          %p5115 = pneg %p175
        $region70: #{tpu_custom_call.1} parent=43 // pred_check_branch
          %5117 = sbr.rel (%p5115) target = $region72
        $region71: #{tpu_custom_call.1} parent=43 // pred_region
          %s5119 = ssub.s32 256, 256
          %5120 = vsyncadd %s5111, %s5119
          %s5121 = smul.addr %s26, 2
          %s5122 = smul.addr %s5121, 128
          %s5123 = scalar_lea.hbm %s6, %s5122
          %s5125 = sshll.u32 %s5114, 4
          %s5126 = int_to_ptr.vmem [resolvable:$true] %s5125
          %5128 = dma.vmem_to_hbm [thread:$0]  %s5126, 256, %s5123, %s5111
        $region72: #{tpu_custom_call.1} parent=43 // pred_fallthru
          _
      $region44: #{tpu_custom_call.1} parent=5 // pred_fallthru
        _
      %p5129 = scmp.le.s32.totalorder 2, %s21
      // Predicated region
      $region73: #{tpu_custom_call.1} parent=5 // pred_check
        %p5130 = pneg %p5129
      $region74: #{tpu_custom_call.1} parent=5 // pred_check_branch
        %5132 = sbr.rel (%p5130) target = $region76
      $region75: #{tpu_custom_call.1} parent=5 // pred_region
        %s5133 = ssub.s32 %s21, 2
        // Predicated region
        $region77: #{tpu_custom_call.1} parent=75 // pred_check
          %p5134 = pneg %p181
        $region78: #{tpu_custom_call.1} parent=75 // pred_check_branch
          %5136 = sbr.rel (%p5134) target = $region80
        $region79: #{tpu_custom_call.1} parent=75 // pred_region
          %s5137 = sand.u32 %s166, 1
          %s5138 = scalar_lea.sflag [#allocation7], %s5137
          %s5139 = sand.u32 %s166, 1
          %s5140 = smul.addr %s5139, 16
          %s5141 = scalar_lea.vmem [#allocation16], %s5140
          %5142 = dma.done %s5138, 256
        $region80: #{tpu_custom_call.1} parent=75 // pred_fallthru
          _
      $region76: #{tpu_custom_call.1} parent=5 // pred_fallthru
        _
    $region6: #{tpu_custom_call.1} parent=1 // loop_footer
      %s25 = sadd.s32 1, %s21
    $region7: #{tpu_custom_call.1} parent=1 // loop_footer_branch
      %20 = sbr.rel target = $region3
    $region8: #{tpu_custom_call.1} parent=1 // loop_exit
      _
    %5143 = vsyncpa [#allocation6], 1
    %s5144 = scalar_lea.sflag [#allocation6], 1
    %5145 = vsyncpa %s5144, 1
    %5146 = vsyncpa [#allocation9], 1
    %5147 = vsyncpa [#allocation12], 1
    %5148 = vsyncpa [#allocation15], 1
    %5149 = vsyncpa [#allocation7], 1
    %s5150 = scalar_lea.sflag [#allocation7], 1
    %5151 = vsyncpa %s5150, 1

</llo_original>
